<compile_context>
chip_gen: v6e
topology: v6e:2x2x1
jax: 0.10.0
libtpu: 0.0.40
codegen_flags: <defaults>
</compile_context>

<pallas_src>
import functools

import jax
import jax.numpy as jnp
import numpy as np
from jax.experimental import pallas as pl
from jax.experimental.pallas import tpu as pltpu

MAX_ORDER = 8
NUM_POLY_COEF = sum(o + 1 for o in range(1, MAX_ORDER + 1))  # 44 polynomial coefficients
_LANE = 128
_SUBLANE = 8


def _round_up(v, m):
    return (v + m - 1) // m * m


def _layernorm(h, eps=1e-5):
    # torch.nn.LayerNorm with freshly-initialized (identity) affine, biased variance.
    # Centered two-pass variance (review: the one-pass form cancels badly here).
    mean = jnp.mean(h, axis=-1, keepdims=True)
    c = h - mean
    var = jnp.mean(c * c, axis=-1, keepdims=True)
    return c * jax.lax.rsqrt(var + eps)


def _ip_encoder_kernel(meta, n15, k_pad, mm_dtype,
                       x_ref, y_ref, xy_ref, w_wide_hbm, w_narrow_hbm, bpack_ref,
                       out14_ref, pred_ref,
                       wide_buf, narrow_buf, mono_ref, dma_sem):
    """meta: static tuple of (bucket, row_offset, d_in, d_out, rows_alloc) per layer."""
    num_layers = len(meta)
    w_hbm = (w_wide_hbm, w_narrow_hbm)
    bufs = (wide_buf, narrow_buf)

    def weight_copy(i, slot):
        bkt, roff, _din, _dout, rows = meta[i]
        lanes = bufs[bkt].shape[2]
        return pltpu.make_async_copy(
            w_hbm[bkt].at[pl.ds(roff, rows), pl.ds(0, lanes)],
            bufs[bkt].at[slot, pl.ds(0, rows), pl.ds(0, lanes)],
            dma_sem.at[bkt, slot])

    # Kick off the first (small) layer's weight slab immediately; everything below
    # until the first .wait() overlaps with that DMA.
    weight_copy(0, 0).start()

    x = x_ref[...]                       # (1, n1) f32
    y = y_ref[...]

    # ---- monomial matrix for the polynomial epilogue: mono[k, :] = x^a_k * y^b_k ----
    mono_ref[...] = jnp.zeros_like(mono_ref)   # one init also covers the k_pad-n15 pad rows
    xp = [jnp.ones_like(x)]
    yp = [jnp.ones_like(y)]
    for _ in range(MAX_ORDER):
        xp.append(xp[-1] * x)
        yp.append(yp[-1] * y)
    row = 0
    for order_num in range(1, MAX_ORDER + 1):
        for num in range(order_num + 1):
            mono_ref[pl.ds(row, 1), :] = xp[num] * yp[order_num - num]
            row += 1
    mono_ref[pl.ds(NUM_POLY_COEF, 1), :] = xp[0]   # constant-1 row -> trailing bias coeff

    # ---- fused layer chain: 14 serial matmuls, weights streamed / double-buffered ----
    h = xy_ref[...]                      # (1, 2*n1) f32, fused layer-1 input [x | y]
    l14 = None
    for i in range(num_layers):
        bkt, _roff, din, dout, _rows = meta[i]
        slot = i % 2
        if i + 1 < num_layers:
            weight_copy(i + 1, 1 - slot).start()   # prefetch next layer's slab
        weight_copy(i, slot).wait()
        w = bufs[bkt][slot, pl.ds(0, din), pl.ds(0, dout)]
        b = bpack_ref[pl.ds(i, 1), pl.ds(0, dout)]
        z = jnp.dot(h.astype(mm_dtype), w, preferred_element_type=jnp.float32) + b
        if i + 1 < num_layers:
            h = _layernorm(jnp.maximum(z, 0.0))
        else:
            l14 = z                                # (1, k_pad); lanes >= n15 are exactly 0

    out14_ref[...] = l14[:, :n15]
    # Polynomial reconstruction as a single MXU matmul: pred = layer14 @ mono.
    pred_ref[...] = jnp.dot(l14, mono_ref[...], precision=jax.lax.Precision.HIGHEST,
                            preferred_element_type=jnp.float32)


def _pack_params(weights, biases, matmul_dtype):
    assert len(weights) == 15 and len(biases) == 15
    w_np = [np.asarray(w, np.float32) for w in weights]
    b_np = [np.asarray(b, np.float32) for b in biases]

    # Fuse layer 1:  [x | y] @ [W1_1 ; W1_2] + (b1_1 + b1_2).
    layer_w = [np.concatenate([w_np[0], w_np[1]], axis=0)] + w_np[2:]
    layer_b = [b_np[0] + b_np[1]] + b_np[2:]
    num_layers = len(layer_w)                       # 14 matmul layers

    n15 = int(layer_w[-1].shape[1])
    k_pad = _round_up(n15, _SUBLANE)                # padded output width of the last layer

    dins = [int(w.shape[0]) for w in layer_w]
    douts = [int(w.shape[1]) for w in layer_w]
    douts[-1] = k_pad                               # compute layer 14 at padded width (zero cols)

    itemsize = np.dtype(matmul_dtype).itemsize
    row_align = _SUBLANE * max(1, 4 // itemsize)    # 16-row alignment for bf16, 8 for f32

    # Lane-tight packing: bucket 0 (wide) for dout > 128, bucket 1 (narrow, 128 lanes).
    buckets = [0 if d > _LANE else 1 for d in douts]
    wide_douts = [d for d, bkt in zip(douts, buckets) if bkt == 0]
    lane = [_round_up(max(wide_douts), _LANE) if wide_douts else _LANE, _LANE]

    rows_alloc = [_round_up(d, row_align) for d in dins]
    offsets, totals = [0] * num_layers, [0, 0]
    for i in range(num_layers):
        offsets[i] = totals[buckets[i]]
        totals[buckets[i]] += rows_alloc[i]

    packs = [np.zeros((max(totals[bkt], row_align), lane[bkt]), np.float32) for bkt in range(2)]
    bpack = np.zeros((num_layers, max(lane)), np.float32)
    for i in range(num_layers):
        bkt = buckets[i]
        packs[bkt][offsets[i]:offsets[i] + dins[i], :layer_w[i].shape[1]] = layer_w[i]
        bpack[i, :layer_b[i].shape[0]] = layer_b[i]

    meta = tuple((buckets[i], offsets[i], dins[i], douts[i], rows_alloc[i])
                 for i in range(num_layers))
    buf_rows = tuple(
        max([rows_alloc[i] for i in range(num_layers) if buckets[i] == bkt] or [row_align])
        for bkt in range(2))
    arrs = (jnp.asarray(packs[0], matmul_dtype),
            jnp.asarray(packs[1], matmul_dtype),
            jnp.asarray(bpack, jnp.float32))
    return arrs, meta, (n15, k_pad, tuple(lane), buf_rows)


def make_ip_encoder_forward(weights, biases, matmul_dtype=jnp.bfloat16):
    """Pack parameters once (host packing + H2D hoisted out of the per-call path)
    and return a jitted forward(x, y) -> (layer_14, pred)."""
    (w_wide, w_narrow, bpack), meta, (n15, k_pad, lane, buf_rows) = _pack_params(
        weights, biases, matmul_dtype)
    n1 = int(np.asarray(weights[0]).shape[0])
    assert n15 == NUM_POLY_COEF + 1, "n_hidden15 must equal 44 coefficients + 1 bias"
    # TODO(synk): pad activations if a contraction dim is ever not 8-aligned.
    assert all(m[2] % _SUBLANE == 0 for m in meta)

    kernel = functools.partial(_ip_encoder_kernel, meta, n15, k_pad, matmul_dtype)
    vmem = pltpu.MemorySpace.VMEM
    call = pl.pallas_call(
        kernel,
        out_shape=(jax.ShapeDtypeStruct((1, n15), jnp.float32),
                   jax.ShapeDtypeStruct((1, n1), jnp.float32)),
        in_specs=[pl.BlockSpec(memory_space=vmem),       # x
                  pl.BlockSpec(memory_space=vmem),       # y
                  pl.BlockSpec(memory_space=vmem),       # [x | y] fused layer-1 input
                  pl.BlockSpec(memory_space=pl.ANY),     # packed wide weights (stay in HBM)
                  pl.BlockSpec(memory_space=pl.ANY),     # packed narrow weights (stay in HBM)
                  pl.BlockSpec(memory_space=vmem)],      # packed biases
        out_specs=(pl.BlockSpec(memory_space=vmem),
                   pl.BlockSpec(memory_space=vmem)),
        scratch_shapes=[pltpu.VMEM((2, buf_rows[0], lane[0]), matmul_dtype),  # wide dbl-buffer
                        pltpu.VMEM((2, buf_rows[1], lane[1]), matmul_dtype),  # narrow dbl-buffer
                        pltpu.VMEM((k_pad, n1), jnp.float32),                 # monomial matrix
                        pltpu.SemaphoreType.DMA((2, 2))],                     # [bucket, slot]
    )

    @jax.jit
    def forward(x, y):
        x2 = jnp.asarray(x, jnp.float32).reshape(1, n1)
        y2 = jnp.asarray(y, jnp.float32).reshape(1, n1)
        xy2 = jnp.concatenate([x2, y2], axis=1)
        out14, pred = call(x2, y2, xy2, w_wide, w_narrow, bpack)
        return out14.reshape(n15), pred.reshape(n1)

    return forward


def reference_forward(x, y, weights, biases, matmul_dtype=jnp.float32):
    """Pure-JAX reference matching the PyTorch forward (1-D x, y).  Matmul operands
    are cast to matmul_dtype (f32 accumulation) so it can be precision-matched to
    the kernel's bf16 policy, or run fully in f32."""
    dt = matmul_dtype
    prec = jax.lax.Precision.HIGHEST if dt == jnp.float32 else jax.lax.Precision.DEFAULT

    def mm(a, w):
        return jnp.dot(a.astype(dt), w.astype(dt), precision=prec,
                       preferred_element_type=jnp.float32)

    h = jax.nn.relu(mm(x, weights[0]) + biases[0] + mm(y, weights[1]) + biases[1])
    h = _layernorm(h)
    for i in range(2, 14):
        h = _layernorm(jax.nn.relu(mm(h, weights[i]) + biases[i]))
    l14 = mm(h, weights[14]) + biases[14]

    pred = jnp.zeros_like(x)
    nums = 0
    for order_num in range(1, MAX_ORDER + 1):
        for num in range(order_num + 1):
            pred = pred + l14[nums] * (x ** num) * (y ** (order_num - num))
            nums += 1
    pred = pred + l14[-1]
    return l14, pred


if __name__ == "__main__":
    # Small shapes consistent with the module structure (original ~4000-wide dims
    # scaled down; only sizes change, not semantics).
    data_size = 16
    n1 = data_size * 3                            # n_hidden1 = 48
    num_coefficient_orig = 36
    n15 = num_coefficient_orig + MAX_ORDER + 1    # n_hidden15 = 45 (44 coeffs + bias)
    dims = [n1, 256, 224, 192, 160, 128, 112, 96, 80, 64, 56, 48, 40, 32, n15]

    key = jax.random.PRNGKey(0)
    keys = jax.random.split(key, 64)
    kidx = 0

    weights, biases = [], []
    for _ in range(2):                            # weights1_1, weights1_2 ~ U[0,1)
        weights.append(jax.random.uniform(keys[kidx], (dims[0], dims[1]), jnp.float32))
        kidx += 1
    for i in range(1, 14):                        # weights2..weights14
        weights.append(jax.random.uniform(keys[kidx], (dims[i], dims[i + 1]), jnp.float32))
        kidx += 1
    for _ in range(2):                            # bias1_1, bias1_2
        biases.append(jax.random.uniform(keys[kidx], (dims[1],), jnp.float32))
        kidx += 1
    for i in range(2, 15):                        # bias2..bias14
        biases.append(jax.random.uniform(keys[kidx], (dims[i],), jnp.float32))
        kidx += 1

    kx, ky = jax.random.split(keys[kidx], 2)
    x = 0.5 * jax.random.normal(kx, (n1,), jnp.float32)
    y = 0.5 * jax.random.normal(ky, (n1,), jnp.float32)

    forward = make_ip_encoder_forward(weights, biases, matmul_dtype=jnp.bfloat16)
    out14, pred = jax.block_until_ready(forward(x, y))

    # Precision-matched reference (same bf16 operand policy) -> tight kernel check.
    ref14_m, pred_m = reference_forward(x, y, weights, biases, jnp.bfloat16)
    # Full-f32 reference -> coarse sanity bound on the bf16 precision policy itself.
    ref14_f, pred_f = reference_forward(x, y, weights, biases, jnp.float32)

    out14_np, pred_np = np.asarray(out14), np.asarray(pred)
    assert out14_np.shape == (n15,) and pred_np.shape == (n1,)
    assert np.all(np.isfinite(out14_np)) and np.all(np.isfinite(pred_np))
    assert np.allclose(out14_np, np.asarray(ref14_m), rtol=1e-2, atol=1e-2)
    assert np.allclose(pred_np, np.asarray(pred_m), rtol=1e-2, atol=2e-2)

    def rel_l2(a, b):
        a = np.asarray(a, np.float64)
        b = np.asarray(b, np.float64)
        return float(np.linalg.norm(a - b) / (np.linalg.norm(b) + 1e-12))

    assert rel_l2(out14_np, ref14_f) < 0.1
    assert rel_l2(pred_np, pred_f) < 0.1
    print("KERNEL_OK")
</pallas_src>

<mosaic_0001>
module attributes {stable_mosaic.version = 11 : i64} {
  func.func @_ip_encoder_kernel(%arg0: memref<1x48xf32, #tpu.memory_space<vmem>>, %arg1: memref<1x48xf32, #tpu.memory_space<vmem>>, %arg2: memref<1x96xf32, #tpu.memory_space<vmem>>, %arg3: memref<768x256xbf16, #tpu.memory_space<any>>, %arg4: memref<832x128xbf16, #tpu.memory_space<any>>, %arg5: memref<14x256xf32, #tpu.memory_space<vmem>>, %arg6: memref<1x45xf32, #tpu.memory_space<vmem>>, %arg7: memref<1x48xf32, #tpu.memory_space<vmem>>, %arg8: memref<2x256x256xbf16, #tpu.memory_space<vmem>>, %arg9: memref<2x160x128xbf16, #tpu.memory_space<vmem>>, %arg10: memref<48x48xf32, #tpu.memory_space<vmem>>, %arg11: memref<2x2x!tpu.dma_semaphore, #tpu.memory_space<semaphore_mem>>) attributes {dimension_semantics = [], scalar_prefetch = 0 : i64, scratch_operands = 4 : i64, tpu.core_type = #tpu.core_type<tc>} {
    %c0_i32 = arith.constant 0 : i32
    %c0_i32_0 = arith.constant 0 : i32
    %c0_i32_1 = arith.constant 0 : i32
    %c0_i32_2 = arith.constant 0 : i32
    %c0_i32_3 = arith.constant 0 : i32
    %0 = tpu.memref_slice %arg3[%c0_i32_2, %c0_i32_3] : memref<768x256xbf16, #tpu.memory_space<any>> -> memref<96x256xbf16, #tpu.memory_space<any>>
    %c0_i32_4 = arith.constant 0 : i32
    %c0_i32_5 = arith.constant 0 : i32
    %1 = tpu.memref_slice %arg8[%c0_i32, %c0_i32_4, %c0_i32_5] : memref<2x256x256xbf16, #tpu.memory_space<vmem>> -> memref<1x96x256xbf16, #tpu.memory_space<vmem>>
    %2 = tpu.memref_squeeze %1 : memref<1x96x256xbf16, #tpu.memory_space<vmem>> -> memref<96x256xbf16, #tpu.memory_space<vmem>>
    %3 = tpu.memref_slice %arg11[%c0_i32_0, %c0_i32_1] : memref<2x2x!tpu.dma_semaphore, #tpu.memory_space<semaphore_mem>> -> memref<1x1x!tpu.dma_semaphore, #tpu.memory_space<semaphore_mem>>
    %4 = tpu.memref_squeeze %3 : memref<1x1x!tpu.dma_semaphore, #tpu.memory_space<semaphore_mem>> -> memref<!tpu.dma_semaphore, #tpu.memory_space<semaphore_mem>>
    tpu.enqueue_dma source(%0 : memref<96x256xbf16, #tpu.memory_space<any>>) target(%2 : memref<96x256xbf16, #tpu.memory_space<vmem>>) target_semaphore(%4 : memref<!tpu.dma_semaphore, #tpu.memory_space<semaphore_mem>>)
    %c0 = arith.constant 0 : index
    %c0_6 = arith.constant 0 : index
    %5 = vector.load %arg0[%c0, %c0_6] : memref<1x48xf32, #tpu.memory_space<vmem>>, vector<1x48xf32>
    %c0_7 = arith.constant 0 : index
    %c0_8 = arith.constant 0 : index
    %6 = vector.load %arg1[%c0_7, %c0_8] : memref<1x48xf32, #tpu.memory_space<vmem>>, vector<1x48xf32>
    %cst = arith.constant 0.000000e+00 : f32
    %7 = vector.broadcast %cst : f32 to vector<48x48xf32>
    %c0_9 = arith.constant 0 : index
    %c0_10 = arith.constant 0 : index
    %8 = vector.load %arg10[%c0_9, %c0_10] : memref<48x48xf32, #tpu.memory_space<vmem>>, vector<48x48xf32>
    tpu.vector_store %arg10[%c0_9, %c0_10], %7 {strides = array<i32>} : memref<48x48xf32, #tpu.memory_space<vmem>>, vector<48x48xf32>,
    %cst_11 = arith.constant 1.000000e+00 : f32
    %9 = vector.broadcast %cst_11 : f32 to vector<1x48xf32>
    %cst_12 = arith.constant 1.000000e+00 : f32
    %10 = vector.broadcast %cst_12 : f32 to vector<1x48xf32>
    %11 = arith.mulf %9, %5 : vector<1x48xf32>
    %12 = arith.mulf %10, %6 : vector<1x48xf32>
    %13 = arith.mulf %11, %5 : vector<1x48xf32>
    %14 = arith.mulf %12, %6 : vector<1x48xf32>
    %15 = arith.mulf %13, %5 : vector<1x48xf32>
    %16 = arith.mulf %14, %6 : vector<1x48xf32>
    %17 = arith.mulf %15, %5 : vector<1x48xf32>
    %18 = arith.mulf %16, %6 : vector<1x48xf32>
    %19 = arith.mulf %17, %5 : vector<1x48xf32>
    %20 = arith.mulf %18, %6 : vector<1x48xf32>
    %21 = arith.mulf %19, %5 : vector<1x48xf32>
    %22 = arith.mulf %20, %6 : vector<1x48xf32>
    %23 = arith.mulf %21, %5 : vector<1x48xf32>
    %24 = arith.mulf %22, %6 : vector<1x48xf32>
    %25 = arith.mulf %23, %5 : vector<1x48xf32>
    %26 = arith.mulf %24, %6 : vector<1x48xf32>
    %27 = arith.mulf %9, %12 : vector<1x48xf32>
    %c0_13 = arith.constant 0 : index
    %c0_14 = arith.constant 0 : index
    %28 = vector.load %arg10[%c0_13, %c0_14] : memref<48x48xf32, #tpu.memory_space<vmem>>, vector<1x48xf32>
    tpu.vector_store %arg10[%c0_13, %c0_14], %27 {strides = array<i32>} : memref<48x48xf32, #tpu.memory_space<vmem>>, vector<1x48xf32>,
    %29 = arith.mulf %11, %10 : vector<1x48xf32>
    %c1 = arith.constant 1 : index
    %c0_15 = arith.constant 0 : index
    %30 = vector.load %arg10[%c1, %c0_15] : memref<48x48xf32, #tpu.memory_space<vmem>>, vector<1x48xf32>
    tpu.vector_store %arg10[%c1, %c0_15], %29 {strides = array<i32>} : memref<48x48xf32, #tpu.memory_space<vmem>>, vector<1x48xf32>,
    %31 = arith.mulf %9, %14 : vector<1x48xf32>
    %c2 = arith.constant 2 : index
    %c0_16 = arith.constant 0 : index
    %32 = vector.load %arg10[%c2, %c0_16] : memref<48x48xf32, #tpu.memory_space<vmem>>, vector<1x48xf32>
    tpu.vector_store %arg10[%c2, %c0_16], %31 {strides = array<i32>} : memref<48x48xf32, #tpu.memory_space<vmem>>, vector<1x48xf32>,
    %33 = arith.mulf %11, %12 : vector<1x48xf32>
    %c3 = arith.constant 3 : index
    %c0_17 = arith.constant 0 : index
    %34 = vector.load %arg10[%c3, %c0_17] : memref<48x48xf32, #tpu.memory_space<vmem>>, vector<1x48xf32>
    tpu.vector_store %arg10[%c3, %c0_17], %33 {strides = array<i32>} : memref<48x48xf32, #tpu.memory_space<vmem>>, vector<1x48xf32>,
    %35 = arith.mulf %13, %10 : vector<1x48xf32>
    %c4 = arith.constant 4 : index
    %c0_18 = arith.constant 0 : index
    %36 = vector.load %arg10[%c4, %c0_18] : memref<48x48xf32, #tpu.memory_space<vmem>>, vector<1x48xf32>
    tpu.vector_store %arg10[%c4, %c0_18], %35 {strides = array<i32>} : memref<48x48xf32, #tpu.memory_space<vmem>>, vector<1x48xf32>,
    %37 = arith.mulf %9, %16 : vector<1x48xf32>
    %c5 = arith.constant 5 : index
    %c0_19 = arith.constant 0 : index
    %38 = vector.load %arg10[%c5, %c0_19] : memref<48x48xf32, #tpu.memory_space<vmem>>, vector<1x48xf32>
    tpu.vector_store %arg10[%c5, %c0_19], %37 {strides = array<i32>} : memref<48x48xf32, #tpu.memory_space<vmem>>, vector<1x48xf32>,
    %39 = arith.mulf %11, %14 : vector<1x48xf32>
    %c6 = arith.constant 6 : index
    %c0_20 = arith.constant 0 : index
    %40 = vector.load %arg10[%c6, %c0_20] : memref<48x48xf32, #tpu.memory_space<vmem>>, vector<1x48xf32>
    tpu.vector_store %arg10[%c6, %c0_20], %39 {strides = array<i32>} : memref<48x48xf32, #tpu.memory_space<vmem>>, vector<1x48xf32>,
    %41 = arith.mulf %13, %12 : vector<1x48xf32>
    %c7 = arith.constant 7 : index
    %c0_21 = arith.constant 0 : index
    %42 = vector.load %arg10[%c7, %c0_21] : memref<48x48xf32, #tpu.memory_space<vmem>>, vector<1x48xf32>
    tpu.vector_store %arg10[%c7, %c0_21], %41 {strides = array<i32>} : memref<48x48xf32, #tpu.memory_space<vmem>>, vector<1x48xf32>,
    %43 = arith.mulf %15, %10 : vector<1x48xf32>
    %c8 = arith.constant 8 : index
    %c0_22 = arith.constant 0 : index
    %44 = vector.load %arg10[%c8, %c0_22] : memref<48x48xf32, #tpu.memory_space<vmem>>, vector<1x48xf32>
    tpu.vector_store %arg10[%c8, %c0_22], %43 {strides = array<i32>} : memref<48x48xf32, #tpu.memory_space<vmem>>, vector<1x48xf32>,
    %45 = arith.mulf %9, %18 : vector<1x48xf32>
    %c9 = arith.constant 9 : index
    %c0_23 = arith.constant 0 : index
    %46 = vector.load %arg10[%c9, %c0_23] : memref<48x48xf32, #tpu.memory_space<vmem>>, vector<1x48xf32>
    tpu.vector_store %arg10[%c9, %c0_23], %45 {strides = array<i32>} : memref<48x48xf32, #tpu.memory_space<vmem>>, vector<1x48xf32>,
    %47 = arith.mulf %11, %16 : vector<1x48xf32>
    %c10 = arith.constant 10 : index
    %c0_24 = arith.constant 0 : index
    %48 = vector.load %arg10[%c10, %c0_24] : memref<48x48xf32, #tpu.memory_space<vmem>>, vector<1x48xf32>
    tpu.vector_store %arg10[%c10, %c0_24], %47 {strides = array<i32>} : memref<48x48xf32, #tpu.memory_space<vmem>>, vector<1x48xf32>,
    %49 = arith.mulf %13, %14 : vector<1x48xf32>
    %c11 = arith.constant 11 : index
    %c0_25 = arith.constant 0 : index
    %50 = vector.load %arg10[%c11, %c0_25] : memref<48x48xf32, #tpu.memory_space<vmem>>, vector<1x48xf32>
    tpu.vector_store %arg10[%c11, %c0_25], %49 {strides = array<i32>} : memref<48x48xf32, #tpu.memory_space<vmem>>, vector<1x48xf32>,
    %51 = arith.mulf %15, %12 : vector<1x48xf32>
    %c12 = arith.constant 12 : index
    %c0_26 = arith.constant 0 : index
    %52 = vector.load %arg10[%c12, %c0_26] : memref<48x48xf32, #tpu.memory_space<vmem>>, vector<1x48xf32>
    tpu.vector_store %arg10[%c12, %c0_26], %51 {strides = array<i32>} : memref<48x48xf32, #tpu.memory_space<vmem>>, vector<1x48xf32>,
    %53 = arith.mulf %17, %10 : vector<1x48xf32>
    %c13 = arith.constant 13 : index
    %c0_27 = arith.constant 0 : index
    %54 = vector.load %arg10[%c13, %c0_27] : memref<48x48xf32, #tpu.memory_space<vmem>>, vector<1x48xf32>
    tpu.vector_store %arg10[%c13, %c0_27], %53 {strides = array<i32>} : memref<48x48xf32, #tpu.memory_space<vmem>>, vector<1x48xf32>,
    %55 = arith.mulf %9, %20 : vector<1x48xf32>
    %c14 = arith.constant 14 : index
    %c0_28 = arith.constant 0 : index
    %56 = vector.load %arg10[%c14, %c0_28] : memref<48x48xf32, #tpu.memory_space<vmem>>, vector<1x48xf32>
    tpu.vector_store %arg10[%c14, %c0_28], %55 {strides = array<i32>} : memref<48x48xf32, #tpu.memory_space<vmem>>, vector<1x48xf32>,
    %57 = arith.mulf %11, %18 : vector<1x48xf32>
    %c15 = arith.constant 15 : index
    %c0_29 = arith.constant 0 : index
    %58 = vector.load %arg10[%c15, %c0_29] : memref<48x48xf32, #tpu.memory_space<vmem>>, vector<1x48xf32>
    tpu.vector_store %arg10[%c15, %c0_29], %57 {strides = array<i32>} : memref<48x48xf32, #tpu.memory_space<vmem>>, vector<1x48xf32>,
    %59 = arith.mulf %13, %16 : vector<1x48xf32>
    %c16 = arith.constant 16 : index
    %c0_30 = arith.constant 0 : index
    %60 = vector.load %arg10[%c16, %c0_30] : memref<48x48xf32, #tpu.memory_space<vmem>>, vector<1x48xf32>
    tpu.vector_store %arg10[%c16, %c0_30], %59 {strides = array<i32>} : memref<48x48xf32, #tpu.memory_space<vmem>>, vector<1x48xf32>,
    %61 = arith.mulf %15, %14 : vector<1x48xf32>
    %c17 = arith.constant 17 : index
    %c0_31 = arith.constant 0 : index
    %62 = vector.load %arg10[%c17, %c0_31] : memref<48x48xf32, #tpu.memory_space<vmem>>, vector<1x48xf32>
    tpu.vector_store %arg10[%c17, %c0_31], %61 {strides = array<i32>} : memref<48x48xf32, #tpu.memory_space<vmem>>, vector<1x48xf32>,
    %63 = arith.mulf %17, %12 : vector<1x48xf32>
    %c18 = arith.constant 18 : index
    %c0_32 = arith.constant 0 : index
    %64 = vector.load %arg10[%c18, %c0_32] : memref<48x48xf32, #tpu.memory_space<vmem>>, vector<1x48xf32>
    tpu.vector_store %arg10[%c18, %c0_32], %63 {strides = array<i32>} : memref<48x48xf32, #tpu.memory_space<vmem>>, vector<1x48xf32>,
    %65 = arith.mulf %19, %10 : vector<1x48xf32>
    %c19 = arith.constant 19 : index
    %c0_33 = arith.constant 0 : index
    %66 = vector.load %arg10[%c19, %c0_33] : memref<48x48xf32, #tpu.memory_space<vmem>>, vector<1x48xf32>
    tpu.vector_store %arg10[%c19, %c0_33], %65 {strides = array<i32>} : memref<48x48xf32, #tpu.memory_space<vmem>>, vector<1x48xf32>,
    %67 = arith.mulf %9, %22 : vector<1x48xf32>
    %c20 = arith.constant 20 : index
    %c0_34 = arith.constant 0 : index
    %68 = vector.load %arg10[%c20, %c0_34] : memref<48x48xf32, #tpu.memory_space<vmem>>, vector<1x48xf32>
    tpu.vector_store %arg10[%c20, %c0_34], %67 {strides = array<i32>} : memref<48x48xf32, #tpu.memory_space<vmem>>, vector<1x48xf32>,
    %69 = arith.mulf %11, %20 : vector<1x48xf32>
    %c21 = arith.constant 21 : index
    %c0_35 = arith.constant 0 : index
    %70 = vector.load %arg10[%c21, %c0_35] : memref<48x48xf32, #tpu.memory_space<vmem>>, vector<1x48xf32>
    tpu.vector_store %arg10[%c21, %c0_35], %69 {strides = array<i32>} : memref<48x48xf32, #tpu.memory_space<vmem>>, vector<1x48xf32>,
    %71 = arith.mulf %13, %18 : vector<1x48xf32>
    %c22 = arith.constant 22 : index
    %c0_36 = arith.constant 0 : index
    %72 = vector.load %arg10[%c22, %c0_36] : memref<48x48xf32, #tpu.memory_space<vmem>>, vector<1x48xf32>
    tpu.vector_store %arg10[%c22, %c0_36], %71 {strides = array<i32>} : memref<48x48xf32, #tpu.memory_space<vmem>>, vector<1x48xf32>,
    %73 = arith.mulf %15, %16 : vector<1x48xf32>
    %c23 = arith.constant 23 : index
    %c0_37 = arith.constant 0 : index
    %74 = vector.load %arg10[%c23, %c0_37] : memref<48x48xf32, #tpu.memory_space<vmem>>, vector<1x48xf32>
    tpu.vector_store %arg10[%c23, %c0_37], %73 {strides = array<i32>} : memref<48x48xf32, #tpu.memory_space<vmem>>, vector<1x48xf32>,
    %75 = arith.mulf %17, %14 : vector<1x48xf32>
    %c24 = arith.constant 24 : index
    %c0_38 = arith.constant 0 : index
    %76 = vector.load %arg10[%c24, %c0_38] : memref<48x48xf32, #tpu.memory_space<vmem>>, vector<1x48xf32>
    tpu.vector_store %arg10[%c24, %c0_38], %75 {strides = array<i32>} : memref<48x48xf32, #tpu.memory_space<vmem>>, vector<1x48xf32>,
    %77 = arith.mulf %19, %12 : vector<1x48xf32>
    %c25 = arith.constant 25 : index
    %c0_39 = arith.constant 0 : index
    %78 = vector.load %arg10[%c25, %c0_39] : memref<48x48xf32, #tpu.memory_space<vmem>>, vector<1x48xf32>
    tpu.vector_store %arg10[%c25, %c0_39], %77 {strides = array<i32>} : memref<48x48xf32, #tpu.memory_space<vmem>>, vector<1x48xf32>,
    %79 = arith.mulf %21, %10 : vector<1x48xf32>
    %c26 = arith.constant 26 : index
    %c0_40 = arith.constant 0 : index
    %80 = vector.load %arg10[%c26, %c0_40] : memref<48x48xf32, #tpu.memory_space<vmem>>, vector<1x48xf32>
    tpu.vector_store %arg10[%c26, %c0_40], %79 {strides = array<i32>} : memref<48x48xf32, #tpu.memory_space<vmem>>, vector<1x48xf32>,
    %81 = arith.mulf %9, %24 : vector<1x48xf32>
    %c27 = arith.constant 27 : index
    %c0_41 = arith.constant 0 : index
    %82 = vector.load %arg10[%c27, %c0_41] : memref<48x48xf32, #tpu.memory_space<vmem>>, vector<1x48xf32>
    tpu.vector_store %arg10[%c27, %c0_41], %81 {strides = array<i32>} : memref<48x48xf32, #tpu.memory_space<vmem>>, vector<1x48xf32>,
    %83 = arith.mulf %11, %22 : vector<1x48xf32>
    %c28 = arith.constant 28 : index
    %c0_42 = arith.constant 0 : index
    %84 = vector.load %arg10[%c28, %c0_42] : memref<48x48xf32, #tpu.memory_space<vmem>>, vector<1x48xf32>
    tpu.vector_store %arg10[%c28, %c0_42], %83 {strides = array<i32>} : memref<48x48xf32, #tpu.memory_space<vmem>>, vector<1x48xf32>,
    %85 = arith.mulf %13, %20 : vector<1x48xf32>
    %c29 = arith.constant 29 : index
    %c0_43 = arith.constant 0 : index
    %86 = vector.load %arg10[%c29, %c0_43] : memref<48x48xf32, #tpu.memory_space<vmem>>, vector<1x48xf32>
    tpu.vector_store %arg10[%c29, %c0_43], %85 {strides = array<i32>} : memref<48x48xf32, #tpu.memory_space<vmem>>, vector<1x48xf32>,
    %87 = arith.mulf %15, %18 : vector<1x48xf32>
    %c30 = arith.constant 30 : index
    %c0_44 = arith.constant 0 : index
    %88 = vector.load %arg10[%c30, %c0_44] : memref<48x48xf32, #tpu.memory_space<vmem>>, vector<1x48xf32>
    tpu.vector_store %arg10[%c30, %c0_44], %87 {strides = array<i32>} : memref<48x48xf32, #tpu.memory_space<vmem>>, vector<1x48xf32>,
    %89 = arith.mulf %17, %16 : vector<1x48xf32>
    %c31 = arith.constant 31 : index
    %c0_45 = arith.constant 0 : index
    %90 = vector.load %arg10[%c31, %c0_45] : memref<48x48xf32, #tpu.memory_space<vmem>>, vector<1x48xf32>
    tpu.vector_store %arg10[%c31, %c0_45], %89 {strides = array<i32>} : memref<48x48xf32, #tpu.memory_space<vmem>>, vector<1x48xf32>,
    %91 = arith.mulf %19, %14 : vector<1x48xf32>
    %c32 = arith.constant 32 : index
    %c0_46 = arith.constant 0 : index
    %92 = vector.load %arg10[%c32, %c0_46] : memref<48x48xf32, #tpu.memory_space<vmem>>, vector<1x48xf32>
    tpu.vector_store %arg10[%c32, %c0_46], %91 {strides = array<i32>} : memref<48x48xf32, #tpu.memory_space<vmem>>, vector<1x48xf32>,
    %93 = arith.mulf %21, %12 : vector<1x48xf32>
    %c33 = arith.constant 33 : index
    %c0_47 = arith.constant 0 : index
    %94 = vector.load %arg10[%c33, %c0_47] : memref<48x48xf32, #tpu.memory_space<vmem>>, vector<1x48xf32>
    tpu.vector_store %arg10[%c33, %c0_47], %93 {strides = array<i32>} : memref<48x48xf32, #tpu.memory_space<vmem>>, vector<1x48xf32>,
    %95 = arith.mulf %23, %10 : vector<1x48xf32>
    %c34 = arith.constant 34 : index
    %c0_48 = arith.constant 0 : index
    %96 = vector.load %arg10[%c34, %c0_48] : memref<48x48xf32, #tpu.memory_space<vmem>>, vector<1x48xf32>
    tpu.vector_store %arg10[%c34, %c0_48], %95 {strides = array<i32>} : memref<48x48xf32, #tpu.memory_space<vmem>>, vector<1x48xf32>,
    %97 = arith.mulf %9, %26 : vector<1x48xf32>
    %c35 = arith.constant 35 : index
    %c0_49 = arith.constant 0 : index
    %98 = vector.load %arg10[%c35, %c0_49] : memref<48x48xf32, #tpu.memory_space<vmem>>, vector<1x48xf32>
    tpu.vector_store %arg10[%c35, %c0_49], %97 {strides = array<i32>} : memref<48x48xf32, #tpu.memory_space<vmem>>, vector<1x48xf32>,
    %99 = arith.mulf %11, %24 : vector<1x48xf32>
    %c36 = arith.constant 36 : index
    %c0_50 = arith.constant 0 : index
    %100 = vector.load %arg10[%c36, %c0_50] : memref<48x48xf32, #tpu.memory_space<vmem>>, vector<1x48xf32>
    tpu.vector_store %arg10[%c36, %c0_50], %99 {strides = array<i32>} : memref<48x48xf32, #tpu.memory_space<vmem>>, vector<1x48xf32>,
    %101 = arith.mulf %13, %22 : vector<1x48xf32>
    %c37 = arith.constant 37 : index
    %c0_51 = arith.constant 0 : index
    %102 = vector.load %arg10[%c37, %c0_51] : memref<48x48xf32, #tpu.memory_space<vmem>>, vector<1x48xf32>
    tpu.vector_store %arg10[%c37, %c0_51], %101 {strides = array<i32>} : memref<48x48xf32, #tpu.memory_space<vmem>>, vector<1x48xf32>,
    %103 = arith.mulf %15, %20 : vector<1x48xf32>
    %c38 = arith.constant 38 : index
    %c0_52 = arith.constant 0 : index
    %104 = vector.load %arg10[%c38, %c0_52] : memref<48x48xf32, #tpu.memory_space<vmem>>, vector<1x48xf32>
    tpu.vector_store %arg10[%c38, %c0_52], %103 {strides = array<i32>} : memref<48x48xf32, #tpu.memory_space<vmem>>, vector<1x48xf32>,
    %105 = arith.mulf %17, %18 : vector<1x48xf32>
    %c39 = arith.constant 39 : index
    %c0_53 = arith.constant 0 : index
    %106 = vector.load %arg10[%c39, %c0_53] : memref<48x48xf32, #tpu.memory_space<vmem>>, vector<1x48xf32>
    tpu.vector_store %arg10[%c39, %c0_53], %105 {strides = array<i32>} : memref<48x48xf32, #tpu.memory_space<vmem>>, vector<1x48xf32>,
    %107 = arith.mulf %19, %16 : vector<1x48xf32>
    %c40 = arith.constant 40 : index
    %c0_54 = arith.constant 0 : index
    %108 = vector.load %arg10[%c40, %c0_54] : memref<48x48xf32, #tpu.memory_space<vmem>>, vector<1x48xf32>
    tpu.vector_store %arg10[%c40, %c0_54], %107 {strides = array<i32>} : memref<48x48xf32, #tpu.memory_space<vmem>>, vector<1x48xf32>,
    %109 = arith.mulf %21, %14 : vector<1x48xf32>
    %c41 = arith.constant 41 : index
    %c0_55 = arith.constant 0 : index
    %110 = vector.load %arg10[%c41, %c0_55] : memref<48x48xf32, #tpu.memory_space<vmem>>, vector<1x48xf32>
    tpu.vector_store %arg10[%c41, %c0_55], %109 {strides = array<i32>} : memref<48x48xf32, #tpu.memory_space<vmem>>, vector<1x48xf32>,
    %111 = arith.mulf %23, %12 : vector<1x48xf32>
    %c42 = arith.constant 42 : index
    %c0_56 = arith.constant 0 : index
    %112 = vector.load %arg10[%c42, %c0_56] : memref<48x48xf32, #tpu.memory_space<vmem>>, vector<1x48xf32>
    tpu.vector_store %arg10[%c42, %c0_56], %111 {strides = array<i32>} : memref<48x48xf32, #tpu.memory_space<vmem>>, vector<1x48xf32>,
    %113 = arith.mulf %25, %10 : vector<1x48xf32>
    %c43 = arith.constant 43 : index
    %c0_57 = arith.constant 0 : index
    %114 = vector.load %arg10[%c43, %c0_57] : memref<48x48xf32, #tpu.memory_space<vmem>>, vector<1x48xf32>
    tpu.vector_store %arg10[%c43, %c0_57], %113 {strides = array<i32>} : memref<48x48xf32, #tpu.memory_space<vmem>>, vector<1x48xf32>,
    %c44 = arith.constant 44 : index
    %c0_58 = arith.constant 0 : index
    %115 = vector.load %arg10[%c44, %c0_58] : memref<48x48xf32, #tpu.memory_space<vmem>>, vector<1x48xf32>
    tpu.vector_store %arg10[%c44, %c0_58], %9 {strides = array<i32>} : memref<48x48xf32, #tpu.memory_space<vmem>>, vector<1x48xf32>,
    %c0_59 = arith.constant 0 : index
    %c0_60 = arith.constant 0 : index
    %116 = vector.load %arg2[%c0_59, %c0_60] : memref<1x96xf32, #tpu.memory_space<vmem>>, vector<1x96xf32>
    %c1_i32 = arith.constant 1 : i32
    %c0_i32_61 = arith.constant 0 : i32
    %c1_i32_62 = arith.constant 1 : i32
    %c96_i32 = arith.constant 96 : i32
    %c0_i32_63 = arith.constant 0 : i32
    %117 = tpu.memref_slice %arg3[%c96_i32, %c0_i32_63] : memref<768x256xbf16, #tpu.memory_space<any>> -> memref<256x256xbf16, #tpu.memory_space<any>>
    %c0_i32_64 = arith.constant 0 : i32
    %c0_i32_65 = arith.constant 0 : i32
    %118 = tpu.memref_slice %arg8[%c1_i32, %c0_i32_64, %c0_i32_65] : memref<2x256x256xbf16, #tpu.memory_space<vmem>> -> memref<1x256x256xbf16, #tpu.memory_space<vmem>>
    %119 = tpu.memref_squeeze %118 : memref<1x256x256xbf16, #tpu.memory_space<vmem>> -> memref<256x256xbf16, #tpu.memory_space<vmem>>
    %120 = tpu.memref_slice %arg11[%c0_i32_61, %c1_i32_62] : memref<2x2x!tpu.dma_semaphore, #tpu.memory_space<semaphore_mem>> -> memref<1x1x!tpu.dma_semaphore, #tpu.memory_space<semaphore_mem>>
    %121 = tpu.memref_squeeze %120 : memref<1x1x!tpu.dma_semaphore, #tpu.memory_space<semaphore_mem>> -> memref<!tpu.dma_semaphore, #tpu.memory_space<semaphore_mem>>
    tpu.enqueue_dma source(%117 : memref<256x256xbf16, #tpu.memory_space<any>>) target(%119 : memref<256x256xbf16, #tpu.memory_space<vmem>>) target_semaphore(%121 : memref<!tpu.dma_semaphore, #tpu.memory_space<semaphore_mem>>)
    %c0_i32_66 = arith.constant 0 : i32
    %c0_i32_67 = arith.constant 0 : i32
    %c0_i32_68 = arith.constant 0 : i32
    %c0_i32_69 = arith.constant 0 : i32
    %c0_i32_70 = arith.constant 0 : i32
    %122 = tpu.memref_slice %arg3[%c0_i32_69, %c0_i32_70] : memref<768x256xbf16, #tpu.memory_space<any>> -> memref<96x256xbf16, #tpu.memory_space<any>>
    %c0_i32_71 = arith.constant 0 : i32
    %c0_i32_72 = arith.constant 0 : i32
    %123 = tpu.memref_slice %arg8[%c0_i32_66, %c0_i32_71, %c0_i32_72] : memref<2x256x256xbf16, #tpu.memory_space<vmem>> -> memref<1x96x256xbf16, #tpu.memory_space<vmem>>
    %124 = tpu.memref_squeeze %123 : memref<1x96x256xbf16, #tpu.memory_space<vmem>> -> memref<96x256xbf16, #tpu.memory_space<vmem>>
    %125 = tpu.memref_slice %arg11[%c0_i32_67, %c0_i32_68] : memref<2x2x!tpu.dma_semaphore, #tpu.memory_space<semaphore_mem>> -> memref<1x1x!tpu.dma_semaphore, #tpu.memory_space<semaphore_mem>>
    %126 = tpu.memref_squeeze %125 : memref<1x1x!tpu.dma_semaphore, #tpu.memory_space<semaphore_mem>> -> memref<!tpu.dma_semaphore, #tpu.memory_space<semaphore_mem>>
    tpu.wait_dma2 semaphore(%126 : memref<!tpu.dma_semaphore, #tpu.memory_space<semaphore_mem>>) src(%122 : memref<96x256xbf16, #tpu.memory_space<any>>) dst(%124 : memref<96x256xbf16, #tpu.memory_space<vmem>>)
    %c0_73 = arith.constant 0 : index
    %c0_74 = arith.constant 0 : index
    %c0_75 = arith.constant 0 : index
    %127 = vector.load %arg8[%c0_73, %c0_74, %c0_75] : memref<2x256x256xbf16, #tpu.memory_space<vmem>>, vector<1x96x256xbf16>
    %128 = vector.shape_cast %127 : vector<1x96x256xbf16> to vector<96x256xbf16>
    %c0_76 = arith.constant 0 : index
    %c0_77 = arith.constant 0 : index
    %129 = vector.load %arg5[%c0_76, %c0_77] : memref<14x256xf32, #tpu.memory_space<vmem>>, vector<1x256xf32>
    %130 = arith.truncf %116 : vector<1x96xf32> to vector<1x96xbf16>
    %cst_78 = arith.constant dense<0.000000e+00> : vector<1x256xf32>
    %131 = tpu.matmul %130, %128, %cst_78 {dimension_numbers = #tpu.dot_dimension_numbers<[1], [0], [0], [1], [0, 0, 1, 1], [], []>} : vector<1x96xbf16>, vector<96x256xbf16>, vector<1x256xf32> -> vector<1x256xf32>
    %132 = arith.addf %131, %129 : vector<1x256xf32>
    %cst_79 = arith.constant 0.000000e+00 : f32
    %133 = vector.broadcast %cst_79 : f32 to vector<1x256xf32>
    %134 = arith.maximumf %132, %133 : vector<1x256xf32>
    %cst_80 = arith.constant dense<0.000000e+00> : vector<1xf32>
    %135 = vector.multi_reduction <add>, %134, %cst_80 [1] : vector<1x256xf32> to vector<1xf32>
    %136 = vector.shape_cast %135 : vector<1xf32> to vector<1x1xf32>
    %cst_81 = arith.constant 2.560000e+02 : f32
    %137 = vector.broadcast %cst_81 : f32 to vector<1x1xf32>
    %138 = arith.divf %136, %137 : vector<1x1xf32>
    %139 = vector.broadcast %138 : vector<1x1xf32> to vector<1x256xf32>
    %140 = arith.subf %134, %139 : vector<1x256xf32>
    %141 = arith.mulf %140, %140 : vector<1x256xf32>
    %cst_82 = arith.constant dense<0.000000e+00> : vector<1xf32>
    %142 = vector.multi_reduction <add>, %141, %cst_82 [1] : vector<1x256xf32> to vector<1xf32>
    %143 = vector.shape_cast %142 : vector<1xf32> to vector<1x1xf32>
    %cst_83 = arith.constant 2.560000e+02 : f32
    %144 = vector.broadcast %cst_83 : f32 to vector<1x1xf32>
    %145 = arith.divf %143, %144 : vector<1x1xf32>
    %cst_84 = arith.constant 9.99999974E-6 : f32
    %146 = vector.broadcast %cst_84 : f32 to vector<1x1xf32>
    %147 = arith.addf %145, %146 : vector<1x1xf32>
    %148 = math.rsqrt %147 : vector<1x1xf32>
    %149 = vector.broadcast %148 : vector<1x1xf32> to vector<1x256xf32>
    %150 = arith.mulf %140, %149 : vector<1x256xf32>
    %c0_i32_85 = arith.constant 0 : i32
    %c0_i32_86 = arith.constant 0 : i32
    %c0_i32_87 = arith.constant 0 : i32
    %c352_i32 = arith.constant 352 : i32
    %c0_i32_88 = arith.constant 0 : i32
    %151 = tpu.memref_slice %arg3[%c352_i32, %c0_i32_88] : memref<768x256xbf16, #tpu.memory_space<any>> -> memref<224x256xbf16, #tpu.memory_space<any>>
    %c0_i32_89 = arith.constant 0 : i32
    %c0_i32_90 = arith.constant 0 : i32
    %152 = tpu.memref_slice %arg8[%c0_i32_85, %c0_i32_89, %c0_i32_90] : memref<2x256x256xbf16, #tpu.memory_space<vmem>> -> memref<1x224x256xbf16, #tpu.memory_space<vmem>>
    %153 = tpu.memref_squeeze %152 : memref<1x224x256xbf16, #tpu.memory_space<vmem>> -> memref<224x256xbf16, #tpu.memory_space<vmem>>
    %154 = tpu.memref_slice %arg11[%c0_i32_86, %c0_i32_87] : memref<2x2x!tpu.dma_semaphore, #tpu.memory_space<semaphore_mem>> -> memref<1x1x!tpu.dma_semaphore, #tpu.memory_space<semaphore_mem>>
    %155 = tpu.memref_squeeze %154 : memref<1x1x!tpu.dma_semaphore, #tpu.memory_space<semaphore_mem>> -> memref<!tpu.dma_semaphore, #tpu.memory_space<semaphore_mem>>
    tpu.enqueue_dma source(%151 : memref<224x256xbf16, #tpu.memory_space<any>>) target(%153 : memref<224x256xbf16, #tpu.memory_space<vmem>>) target_semaphore(%155 : memref<!tpu.dma_semaphore, #tpu.memory_space<semaphore_mem>>)
    %c1_i32_91 = arith.constant 1 : i32
    %c0_i32_92 = arith.constant 0 : i32
    %c1_i32_93 = arith.constant 1 : i32
    %c96_i32_94 = arith.constant 96 : i32
    %c0_i32_95 = arith.constant 0 : i32
    %156 = tpu.memref_slice %arg3[%c96_i32_94, %c0_i32_95] : memref<768x256xbf16, #tpu.memory_space<any>> -> memref<256x256xbf16, #tpu.memory_space<any>>
    %c0_i32_96 = arith.constant 0 : i32
    %c0_i32_97 = arith.constant 0 : i32
    %157 = tpu.memref_slice %arg8[%c1_i32_91, %c0_i32_96, %c0_i32_97] : memref<2x256x256xbf16, #tpu.memory_space<vmem>> -> memref<1x256x256xbf16, #tpu.memory_space<vmem>>
    %158 = tpu.memref_squeeze %157 : memref<1x256x256xbf16, #tpu.memory_space<vmem>> -> memref<256x256xbf16, #tpu.memory_space<vmem>>
    %159 = tpu.memref_slice %arg11[%c0_i32_92, %c1_i32_93] : memref<2x2x!tpu.dma_semaphore, #tpu.memory_space<semaphore_mem>> -> memref<1x1x!tpu.dma_semaphore, #tpu.memory_space<semaphore_mem>>
    %160 = tpu.memref_squeeze %159 : memref<1x1x!tpu.dma_semaphore, #tpu.memory_space<semaphore_mem>> -> memref<!tpu.dma_semaphore, #tpu.memory_space<semaphore_mem>>
    tpu.wait_dma2 semaphore(%160 : memref<!tpu.dma_semaphore, #tpu.memory_space<semaphore_mem>>) src(%156 : memref<256x256xbf16, #tpu.memory_space<any>>) dst(%158 : memref<256x256xbf16, #tpu.memory_space<vmem>>)
    %c1_98 = arith.constant 1 : index
    %c0_99 = arith.constant 0 : index
    %c0_100 = arith.constant 0 : index
    %161 = vector.load %arg8[%c1_98, %c0_99, %c0_100] : memref<2x256x256xbf16, #tpu.memory_space<vmem>>, vector<1x256x224xbf16>
    %162 = vector.shape_cast %161 : vector<1x256x224xbf16> to vector<256x224xbf16>
    %c1_101 = arith.constant 1 : index
    %c0_102 = arith.constant 0 : index
    %163 = vector.load %arg5[%c1_101, %c0_102] : memref<14x256xf32, #tpu.memory_space<vmem>>, vector<1x224xf32>
    %164 = arith.truncf %150 : vector<1x256xf32> to vector<1x256xbf16>
    %cst_103 = arith.constant dense<0.000000e+00> : vector<1x224xf32>
    %165 = tpu.matmul %164, %162, %cst_103 {dimension_numbers = #tpu.dot_dimension_numbers<[1], [0], [0], [1], [0, 0, 1, 1], [], []>} : vector<1x256xbf16>, vector<256x224xbf16>, vector<1x224xf32> -> vector<1x224xf32>
    %166 = arith.addf %165, %163 : vector<1x224xf32>
    %cst_104 = arith.constant 0.000000e+00 : f32
    %167 = vector.broadcast %cst_104 : f32 to vector<1x224xf32>
    %168 = arith.maximumf %166, %167 : vector<1x224xf32>
    %cst_105 = arith.constant dense<0.000000e+00> : vector<1xf32>
    %169 = vector.multi_reduction <add>, %168, %cst_105 [1] : vector<1x224xf32> to vector<1xf32>
    %170 = vector.shape_cast %169 : vector<1xf32> to vector<1x1xf32>
    %cst_106 = arith.constant 2.240000e+02 : f32
    %171 = vector.broadcast %cst_106 : f32 to vector<1x1xf32>
    %172 = arith.divf %170, %171 : vector<1x1xf32>
    %173 = vector.broadcast %172 : vector<1x1xf32> to vector<1x224xf32>
    %174 = arith.subf %168, %173 : vector<1x224xf32>
    %175 = arith.mulf %174, %174 : vector<1x224xf32>
    %cst_107 = arith.constant dense<0.000000e+00> : vector<1xf32>
    %176 = vector.multi_reduction <add>, %175, %cst_107 [1] : vector<1x224xf32> to vector<1xf32>
    %177 = vector.shape_cast %176 : vector<1xf32> to vector<1x1xf32>
    %cst_108 = arith.constant 2.240000e+02 : f32
    %178 = vector.broadcast %cst_108 : f32 to vector<1x1xf32>
    %179 = arith.divf %177, %178 : vector<1x1xf32>
    %cst_109 = arith.constant 9.99999974E-6 : f32
    %180 = vector.broadcast %cst_109 : f32 to vector<1x1xf32>
    %181 = arith.addf %179, %180 : vector<1x1xf32>
    %182 = math.rsqrt %181 : vector<1x1xf32>
    %183 = vector.broadcast %182 : vector<1x1xf32> to vector<1x224xf32>
    %184 = arith.mulf %174, %183 : vector<1x224xf32>
    %c1_i32_110 = arith.constant 1 : i32
    %c0_i32_111 = arith.constant 0 : i32
    %c1_i32_112 = arith.constant 1 : i32
    %c576_i32 = arith.constant 576 : i32
    %c0_i32_113 = arith.constant 0 : i32
    %185 = tpu.memref_slice %arg3[%c576_i32, %c0_i32_113] : memref<768x256xbf16, #tpu.memory_space<any>> -> memref<192x256xbf16, #tpu.memory_space<any>>
    %c0_i32_114 = arith.constant 0 : i32
    %c0_i32_115 = arith.constant 0 : i32
    %186 = tpu.memref_slice %arg8[%c1_i32_110, %c0_i32_114, %c0_i32_115] : memref<2x256x256xbf16, #tpu.memory_space<vmem>> -> memref<1x192x256xbf16, #tpu.memory_space<vmem>>
    %187 = tpu.memref_squeeze %186 : memref<1x192x256xbf16, #tpu.memory_space<vmem>> -> memref<192x256xbf16, #tpu.memory_space<vmem>>
    %188 = tpu.memref_slice %arg11[%c0_i32_111, %c1_i32_112] : memref<2x2x!tpu.dma_semaphore, #tpu.memory_space<semaphore_mem>> -> memref<1x1x!tpu.dma_semaphore, #tpu.memory_space<semaphore_mem>>
    %189 = tpu.memref_squeeze %188 : memref<1x1x!tpu.dma_semaphore, #tpu.memory_space<semaphore_mem>> -> memref<!tpu.dma_semaphore, #tpu.memory_space<semaphore_mem>>
    tpu.enqueue_dma source(%185 : memref<192x256xbf16, #tpu.memory_space<any>>) target(%187 : memref<192x256xbf16, #tpu.memory_space<vmem>>) target_semaphore(%189 : memref<!tpu.dma_semaphore, #tpu.memory_space<semaphore_mem>>)
    %c0_i32_116 = arith.constant 0 : i32
    %c0_i32_117 = arith.constant 0 : i32
    %c0_i32_118 = arith.constant 0 : i32
    %c352_i32_119 = arith.constant 352 : i32
    %c0_i32_120 = arith.constant 0 : i32
    %190 = tpu.memref_slice %arg3[%c352_i32_119, %c0_i32_120] : memref<768x256xbf16, #tpu.memory_space<any>> -> memref<224x256xbf16, #tpu.memory_space<any>>
    %c0_i32_121 = arith.constant 0 : i32
    %c0_i32_122 = arith.constant 0 : i32
    %191 = tpu.memref_slice %arg8[%c0_i32_116, %c0_i32_121, %c0_i32_122] : memref<2x256x256xbf16, #tpu.memory_space<vmem>> -> memref<1x224x256xbf16, #tpu.memory_space<vmem>>
    %192 = tpu.memref_squeeze %191 : memref<1x224x256xbf16, #tpu.memory_space<vmem>> -> memref<224x256xbf16, #tpu.memory_space<vmem>>
    %193 = tpu.memref_slice %arg11[%c0_i32_117, %c0_i32_118] : memref<2x2x!tpu.dma_semaphore, #tpu.memory_space<semaphore_mem>> -> memref<1x1x!tpu.dma_semaphore, #tpu.memory_space<semaphore_mem>>
    %194 = tpu.memref_squeeze %193 : memref<1x1x!tpu.dma_semaphore, #tpu.memory_space<semaphore_mem>> -> memref<!tpu.dma_semaphore, #tpu.memory_space<semaphore_mem>>
    tpu.wait_dma2 semaphore(%194 : memref<!tpu.dma_semaphore, #tpu.memory_space<semaphore_mem>>) src(%190 : memref<224x256xbf16, #tpu.memory_space<any>>) dst(%192 : memref<224x256xbf16, #tpu.memory_space<vmem>>)
    %c0_123 = arith.constant 0 : index
    %c0_124 = arith.constant 0 : index
    %c0_125 = arith.constant 0 : index
    %195 = vector.load %arg8[%c0_123, %c0_124, %c0_125] : memref<2x256x256xbf16, #tpu.memory_space<vmem>>, vector<1x224x192xbf16>
    %196 = vector.shape_cast %195 : vector<1x224x192xbf16> to vector<224x192xbf16>
    %c2_126 = arith.constant 2 : index
    %c0_127 = arith.constant 0 : index
    %197 = vector.load %arg5[%c2_126, %c0_127] : memref<14x256xf32, #tpu.memory_space<vmem>>, vector<1x192xf32>
    %198 = arith.truncf %184 : vector<1x224xf32> to vector<1x224xbf16>
    %cst_128 = arith.constant dense<0.000000e+00> : vector<1x192xf32>
    %199 = tpu.matmul %198, %196, %cst_128 {dimension_numbers = #tpu.dot_dimension_numbers<[1], [0], [0], [1], [0, 0, 1, 1], [], []>} : vector<1x224xbf16>, vector<224x192xbf16>, vector<1x192xf32> -> vector<1x192xf32>
    %200 = arith.addf %199, %197 : vector<1x192xf32>
    %cst_129 = arith.constant 0.000000e+00 : f32
    %201 = vector.broadcast %cst_129 : f32 to vector<1x192xf32>
    %202 = arith.maximumf %200, %201 : vector<1x192xf32>
    %cst_130 = arith.constant dense<0.000000e+00> : vector<1xf32>
    %203 = vector.multi_reduction <add>, %202, %cst_130 [1] : vector<1x192xf32> to vector<1xf32>
    %204 = vector.shape_cast %203 : vector<1xf32> to vector<1x1xf32>
    %cst_131 = arith.constant 1.920000e+02 : f32
    %205 = vector.broadcast %cst_131 : f32 to vector<1x1xf32>
    %206 = arith.divf %204, %205 : vector<1x1xf32>
    %207 = vector.broadcast %206 : vector<1x1xf32> to vector<1x192xf32>
    %208 = arith.subf %202, %207 : vector<1x192xf32>
    %209 = arith.mulf %208, %208 : vector<1x192xf32>
    %cst_132 = arith.constant dense<0.000000e+00> : vector<1xf32>
    %210 = vector.multi_reduction <add>, %209, %cst_132 [1] : vector<1x192xf32> to vector<1xf32>
    %211 = vector.shape_cast %210 : vector<1xf32> to vector<1x1xf32>
    %cst_133 = arith.constant 1.920000e+02 : f32
    %212 = vector.broadcast %cst_133 : f32 to vector<1x1xf32>
    %213 = arith.divf %211, %212 : vector<1x1xf32>
    %cst_134 = arith.constant 9.99999974E-6 : f32
    %214 = vector.broadcast %cst_134 : f32 to vector<1x1xf32>
    %215 = arith.addf %213, %214 : vector<1x1xf32>
    %216 = math.rsqrt %215 : vector<1x1xf32>
    %217 = vector.broadcast %216 : vector<1x1xf32> to vector<1x192xf32>
    %218 = arith.mulf %208, %217 : vector<1x192xf32>
    %c0_i32_135 = arith.constant 0 : i32
    %c1_i32_136 = arith.constant 1 : i32
    %c0_i32_137 = arith.constant 0 : i32
    %c0_i32_138 = arith.constant 0 : i32
    %c0_i32_139 = arith.constant 0 : i32
    %219 = tpu.memref_slice %arg4[%c0_i32_138, %c0_i32_139] : memref<832x128xbf16, #tpu.memory_space<any>> -> memref<160x128xbf16, #tpu.memory_space<any>>
    %c0_i32_140 = arith.constant 0 : i32
    %c0_i32_141 = arith.constant 0 : i32
    %220 = tpu.memref_slice %arg9[%c0_i32_135, %c0_i32_140, %c0_i32_141] : memref<2x160x128xbf16, #tpu.memory_space<vmem>> -> memref<1x160x128xbf16, #tpu.memory_space<vmem>>
    %221 = tpu.memref_squeeze %220 : memref<1x160x128xbf16, #tpu.memory_space<vmem>> -> memref<160x128xbf16, #tpu.memory_space<vmem>>
    %222 = tpu.memref_slice %arg11[%c1_i32_136, %c0_i32_137] : memref<2x2x!tpu.dma_semaphore, #tpu.memory_space<semaphore_mem>> -> memref<1x1x!tpu.dma_semaphore, #tpu.memory_space<semaphore_mem>>
    %223 = tpu.memref_squeeze %222 : memref<1x1x!tpu.dma_semaphore, #tpu.memory_space<semaphore_mem>> -> memref<!tpu.dma_semaphore, #tpu.memory_space<semaphore_mem>>
    tpu.enqueue_dma source(%219 : memref<160x128xbf16, #tpu.memory_space<any>>) target(%221 : memref<160x128xbf16, #tpu.memory_space<vmem>>) target_semaphore(%223 : memref<!tpu.dma_semaphore, #tpu.memory_space<semaphore_mem>>)
    %c1_i32_142 = arith.constant 1 : i32
    %c0_i32_143 = arith.constant 0 : i32
    %c1_i32_144 = arith.constant 1 : i32
    %c576_i32_145 = arith.constant 576 : i32
    %c0_i32_146 = arith.constant 0 : i32
    %224 = tpu.memref_slice %arg3[%c576_i32_145, %c0_i32_146] : memref<768x256xbf16, #tpu.memory_space<any>> -> memref<192x256xbf16, #tpu.memory_space<any>>
    %c0_i32_147 = arith.constant 0 : i32
    %c0_i32_148 = arith.constant 0 : i32
    %225 = tpu.memref_slice %arg8[%c1_i32_142, %c0_i32_147, %c0_i32_148] : memref<2x256x256xbf16, #tpu.memory_space<vmem>> -> memref<1x192x256xbf16, #tpu.memory_space<vmem>>
    %226 = tpu.memref_squeeze %225 : memref<1x192x256xbf16, #tpu.memory_space<vmem>> -> memref<192x256xbf16, #tpu.memory_space<vmem>>
    %227 = tpu.memref_slice %arg11[%c0_i32_143, %c1_i32_144] : memref<2x2x!tpu.dma_semaphore, #tpu.memory_space<semaphore_mem>> -> memref<1x1x!tpu.dma_semaphore, #tpu.memory_space<semaphore_mem>>
    %228 = tpu.memref_squeeze %227 : memref<1x1x!tpu.dma_semaphore, #tpu.memory_space<semaphore_mem>> -> memref<!tpu.dma_semaphore, #tpu.memory_space<semaphore_mem>>
    tpu.wait_dma2 semaphore(%228 : memref<!tpu.dma_semaphore, #tpu.memory_space<semaphore_mem>>) src(%224 : memref<192x256xbf16, #tpu.memory_space<any>>) dst(%226 : memref<192x256xbf16, #tpu.memory_space<vmem>>)
    %c1_149 = arith.constant 1 : index
    %c0_150 = arith.constant 0 : index
    %c0_151 = arith.constant 0 : index
    %229 = vector.load %arg8[%c1_149, %c0_150, %c0_151] : memref<2x256x256xbf16, #tpu.memory_space<vmem>>, vector<1x192x160xbf16>
    %230 = vector.shape_cast %229 : vector<1x192x160xbf16> to vector<192x160xbf16>
    %c3_152 = arith.constant 3 : index
    %c0_153 = arith.constant 0 : index
    %231 = vector.load %arg5[%c3_152, %c0_153] : memref<14x256xf32, #tpu.memory_space<vmem>>, vector<1x160xf32>
    %232 = arith.truncf %218 : vector<1x192xf32> to vector<1x192xbf16>
    %cst_154 = arith.constant dense<0.000000e+00> : vector<1x160xf32>
    %233 = tpu.matmul %232, %230, %cst_154 {dimension_numbers = #tpu.dot_dimension_numbers<[1], [0], [0], [1], [0, 0, 1, 1], [], []>} : vector<1x192xbf16>, vector<192x160xbf16>, vector<1x160xf32> -> vector<1x160xf32>
    %234 = arith.addf %233, %231 : vector<1x160xf32>
    %cst_155 = arith.constant 0.000000e+00 : f32
    %235 = vector.broadcast %cst_155 : f32 to vector<1x160xf32>
    %236 = arith.maximumf %234, %235 : vector<1x160xf32>
    %cst_156 = arith.constant dense<0.000000e+00> : vector<1xf32>
    %237 = vector.multi_reduction <add>, %236, %cst_156 [1] : vector<1x160xf32> to vector<1xf32>
    %238 = vector.shape_cast %237 : vector<1xf32> to vector<1x1xf32>
    %cst_157 = arith.constant 1.600000e+02 : f32
    %239 = vector.broadcast %cst_157 : f32 to vector<1x1xf32>
    %240 = arith.divf %238, %239 : vector<1x1xf32>
    %241 = vector.broadcast %240 : vector<1x1xf32> to vector<1x160xf32>
    %242 = arith.subf %236, %241 : vector<1x160xf32>
    %243 = arith.mulf %242, %242 : vector<1x160xf32>
    %cst_158 = arith.constant dense<0.000000e+00> : vector<1xf32>
    %244 = vector.multi_reduction <add>, %243, %cst_158 [1] : vector<1x160xf32> to vector<1xf32>
    %245 = vector.shape_cast %244 : vector<1xf32> to vector<1x1xf32>
    %cst_159 = arith.constant 1.600000e+02 : f32
    %246 = vector.broadcast %cst_159 : f32 to vector<1x1xf32>
    %247 = arith.divf %245, %246 : vector<1x1xf32>
    %cst_160 = arith.constant 9.99999974E-6 : f32
    %248 = vector.broadcast %cst_160 : f32 to vector<1x1xf32>
    %249 = arith.addf %247, %248 : vector<1x1xf32>
    %250 = math.rsqrt %249 : vector<1x1xf32>
    %251 = vector.broadcast %250 : vector<1x1xf32> to vector<1x160xf32>
    %252 = arith.mulf %242, %251 : vector<1x160xf32>
    %c1_i32_161 = arith.constant 1 : i32
    %c1_i32_162 = arith.constant 1 : i32
    %c1_i32_163 = arith.constant 1 : i32
    %c160_i32 = arith.constant 160 : i32
    %c0_i32_164 = arith.constant 0 : i32
    %253 = tpu.memref_slice %arg4[%c160_i32, %c0_i32_164] : memref<832x128xbf16, #tpu.memory_space<any>> -> memref<128x128xbf16, #tpu.memory_space<any>>
    %c0_i32_165 = arith.constant 0 : i32
    %c0_i32_166 = arith.constant 0 : i32
    %254 = tpu.memref_slice %arg9[%c1_i32_161, %c0_i32_165, %c0_i32_166] : memref<2x160x128xbf16, #tpu.memory_space<vmem>> -> memref<1x128x128xbf16, #tpu.memory_space<vmem>>
    %255 = tpu.memref_squeeze %254 : memref<1x128x128xbf16, #tpu.memory_space<vmem>> -> memref<128x128xbf16, #tpu.memory_space<vmem>>
    %256 = tpu.memref_slice %arg11[%c1_i32_162, %c1_i32_163] : memref<2x2x!tpu.dma_semaphore, #tpu.memory_space<semaphore_mem>> -> memref<1x1x!tpu.dma_semaphore, #tpu.memory_space<semaphore_mem>>
    %257 = tpu.memref_squeeze %256 : memref<1x1x!tpu.dma_semaphore, #tpu.memory_space<semaphore_mem>> -> memref<!tpu.dma_semaphore, #tpu.memory_space<semaphore_mem>>
    tpu.enqueue_dma source(%253 : memref<128x128xbf16, #tpu.memory_space<any>>) target(%255 : memref<128x128xbf16, #tpu.memory_space<vmem>>) target_semaphore(%257 : memref<!tpu.dma_semaphore, #tpu.memory_space<semaphore_mem>>)
    %c0_i32_167 = arith.constant 0 : i32
    %c1_i32_168 = arith.constant 1 : i32
    %c0_i32_169 = arith.constant 0 : i32
    %c0_i32_170 = arith.constant 0 : i32
    %c0_i32_171 = arith.constant 0 : i32
    %258 = tpu.memref_slice %arg4[%c0_i32_170, %c0_i32_171] : memref<832x128xbf16, #tpu.memory_space<any>> -> memref<160x128xbf16, #tpu.memory_space<any>>
    %c0_i32_172 = arith.constant 0 : i32
    %c0_i32_173 = arith.constant 0 : i32
    %259 = tpu.memref_slice %arg9[%c0_i32_167, %c0_i32_172, %c0_i32_173] : memref<2x160x128xbf16, #tpu.memory_space<vmem>> -> memref<1x160x128xbf16, #tpu.memory_space<vmem>>
    %260 = tpu.memref_squeeze %259 : memref<1x160x128xbf16, #tpu.memory_space<vmem>> -> memref<160x128xbf16, #tpu.memory_space<vmem>>
    %261 = tpu.memref_slice %arg11[%c1_i32_168, %c0_i32_169] : memref<2x2x!tpu.dma_semaphore, #tpu.memory_space<semaphore_mem>> -> memref<1x1x!tpu.dma_semaphore, #tpu.memory_space<semaphore_mem>>
    %262 = tpu.memref_squeeze %261 : memref<1x1x!tpu.dma_semaphore, #tpu.memory_space<semaphore_mem>> -> memref<!tpu.dma_semaphore, #tpu.memory_space<semaphore_mem>>
    tpu.wait_dma2 semaphore(%262 : memref<!tpu.dma_semaphore, #tpu.memory_space<semaphore_mem>>) src(%258 : memref<160x128xbf16, #tpu.memory_space<any>>) dst(%260 : memref<160x128xbf16, #tpu.memory_space<vmem>>)
    %c0_174 = arith.constant 0 : index
    %c0_175 = arith.constant 0 : index
    %c0_176 = arith.constant 0 : index
    %263 = vector.load %arg9[%c0_174, %c0_175, %c0_176] : memref<2x160x128xbf16, #tpu.memory_space<vmem>>, vector<1x160x128xbf16>
    %264 = vector.shape_cast %263 : vector<1x160x128xbf16> to vector<160x128xbf16>
    %c4_177 = arith.constant 4 : index
    %c0_178 = arith.constant 0 : index
    %265 = vector.load %arg5[%c4_177, %c0_178] : memref<14x256xf32, #tpu.memory_space<vmem>>, vector<1x128xf32>
    %266 = arith.truncf %252 : vector<1x160xf32> to vector<1x160xbf16>
    %cst_179 = arith.constant dense<0.000000e+00> : vector<1x128xf32>
    %267 = tpu.matmul %266, %264, %cst_179 {dimension_numbers = #tpu.dot_dimension_numbers<[1], [0], [0], [1], [0, 0, 1, 1], [], []>} : vector<1x160xbf16>, vector<160x128xbf16>, vector<1x128xf32> -> vector<1x128xf32>
    %268 = arith.addf %267, %265 : vector<1x128xf32>
    %cst_180 = arith.constant 0.000000e+00 : f32
    %269 = vector.broadcast %cst_180 : f32 to vector<1x128xf32>
    %270 = arith.maximumf %268, %269 : vector<1x128xf32>
    %cst_181 = arith.constant dense<0.000000e+00> : vector<1xf32>
    %271 = vector.multi_reduction <add>, %270, %cst_181 [1] : vector<1x128xf32> to vector<1xf32>
    %272 = vector.shape_cast %271 : vector<1xf32> to vector<1x1xf32>
    %cst_182 = arith.constant 1.280000e+02 : f32
    %273 = vector.broadcast %cst_182 : f32 to vector<1x1xf32>
    %274 = arith.divf %272, %273 : vector<1x1xf32>
    %275 = vector.broadcast %274 : vector<1x1xf32> to vector<1x128xf32>
    %276 = arith.subf %270, %275 : vector<1x128xf32>
    %277 = arith.mulf %276, %276 : vector<1x128xf32>
    %cst_183 = arith.constant dense<0.000000e+00> : vector<1xf32>
    %278 = vector.multi_reduction <add>, %277, %cst_183 [1] : vector<1x128xf32> to vector<1xf32>
    %279 = vector.shape_cast %278 : vector<1xf32> to vector<1x1xf32>
    %cst_184 = arith.constant 1.280000e+02 : f32
    %280 = vector.broadcast %cst_184 : f32 to vector<1x1xf32>
    %281 = arith.divf %279, %280 : vector<1x1xf32>
    %cst_185 = arith.constant 9.99999974E-6 : f32
    %282 = vector.broadcast %cst_185 : f32 to vector<1x1xf32>
    %283 = arith.addf %281, %282 : vector<1x1xf32>
    %284 = math.rsqrt %283 : vector<1x1xf32>
    %285 = vector.broadcast %284 : vector<1x1xf32> to vector<1x128xf32>
    %286 = arith.mulf %276, %285 : vector<1x128xf32>
    %c0_i32_186 = arith.constant 0 : i32
    %c1_i32_187 = arith.constant 1 : i32
    %c0_i32_188 = arith.constant 0 : i32
    %c288_i32 = arith.constant 288 : i32
    %c0_i32_189 = arith.constant 0 : i32
    %287 = tpu.memref_slice %arg4[%c288_i32, %c0_i32_189] : memref<832x128xbf16, #tpu.memory_space<any>> -> memref<112x128xbf16, #tpu.memory_space<any>>
    %c0_i32_190 = arith.constant 0 : i32
    %c0_i32_191 = arith.constant 0 : i32
    %288 = tpu.memref_slice %arg9[%c0_i32_186, %c0_i32_190, %c0_i32_191] : memref<2x160x128xbf16, #tpu.memory_space<vmem>> -> memref<1x112x128xbf16, #tpu.memory_space<vmem>>
    %289 = tpu.memref_squeeze %288 : memref<1x112x128xbf16, #tpu.memory_space<vmem>> -> memref<112x128xbf16, #tpu.memory_space<vmem>>
    %290 = tpu.memref_slice %arg11[%c1_i32_187, %c0_i32_188] : memref<2x2x!tpu.dma_semaphore, #tpu.memory_space<semaphore_mem>> -> memref<1x1x!tpu.dma_semaphore, #tpu.memory_space<semaphore_mem>>
    %291 = tpu.memref_squeeze %290 : memref<1x1x!tpu.dma_semaphore, #tpu.memory_space<semaphore_mem>> -> memref<!tpu.dma_semaphore, #tpu.memory_space<semaphore_mem>>
    tpu.enqueue_dma source(%287 : memref<112x128xbf16, #tpu.memory_space<any>>) target(%289 : memref<112x128xbf16, #tpu.memory_space<vmem>>) target_semaphore(%291 : memref<!tpu.dma_semaphore, #tpu.memory_space<semaphore_mem>>)
    %c1_i32_192 = arith.constant 1 : i32
    %c1_i32_193 = arith.constant 1 : i32
    %c1_i32_194 = arith.constant 1 : i32
    %c160_i32_195 = arith.constant 160 : i32
    %c0_i32_196 = arith.constant 0 : i32
    %292 = tpu.memref_slice %arg4[%c160_i32_195, %c0_i32_196] : memref<832x128xbf16, #tpu.memory_space<any>> -> memref<128x128xbf16, #tpu.memory_space<any>>
    %c0_i32_197 = arith.constant 0 : i32
    %c0_i32_198 = arith.constant 0 : i32
    %293 = tpu.memref_slice %arg9[%c1_i32_192, %c0_i32_197, %c0_i32_198] : memref<2x160x128xbf16, #tpu.memory_space<vmem>> -> memref<1x128x128xbf16, #tpu.memory_space<vmem>>
    %294 = tpu.memref_squeeze %293 : memref<1x128x128xbf16, #tpu.memory_space<vmem>> -> memref<128x128xbf16, #tpu.memory_space<vmem>>
    %295 = tpu.memref_slice %arg11[%c1_i32_193, %c1_i32_194] : memref<2x2x!tpu.dma_semaphore, #tpu.memory_space<semaphore_mem>> -> memref<1x1x!tpu.dma_semaphore, #tpu.memory_space<semaphore_mem>>
    %296 = tpu.memref_squeeze %295 : memref<1x1x!tpu.dma_semaphore, #tpu.memory_space<semaphore_mem>> -> memref<!tpu.dma_semaphore, #tpu.memory_space<semaphore_mem>>
    tpu.wait_dma2 semaphore(%296 : memref<!tpu.dma_semaphore, #tpu.memory_space<semaphore_mem>>) src(%292 : memref<128x128xbf16, #tpu.memory_space<any>>) dst(%294 : memref<128x128xbf16, #tpu.memory_space<vmem>>)
    %c1_199 = arith.constant 1 : index
    %c0_200 = arith.constant 0 : index
    %c0_201 = arith.constant 0 : index
    %297 = vector.load %arg9[%c1_199, %c0_200, %c0_201] : memref<2x160x128xbf16, #tpu.memory_space<vmem>>, vector<1x128x112xbf16>
    %298 = vector.shape_cast %297 : vector<1x128x112xbf16> to vector<128x112xbf16>
    %c5_202 = arith.constant 5 : index
    %c0_203 = arith.constant 0 : index
    %299 = vector.load %arg5[%c5_202, %c0_203] : memref<14x256xf32, #tpu.memory_space<vmem>>, vector<1x112xf32>
    %300 = arith.truncf %286 : vector<1x128xf32> to vector<1x128xbf16>
    %cst_204 = arith.constant dense<0.000000e+00> : vector<1x112xf32>
    %301 = tpu.matmul %300, %298, %cst_204 {dimension_numbers = #tpu.dot_dimension_numbers<[1], [0], [0], [1], [0, 0, 1, 1], [], []>} : vector<1x128xbf16>, vector<128x112xbf16>, vector<1x112xf32> -> vector<1x112xf32>
    %302 = arith.addf %301, %299 : vector<1x112xf32>
    %cst_205 = arith.constant 0.000000e+00 : f32
    %303 = vector.broadcast %cst_205 : f32 to vector<1x112xf32>
    %304 = arith.maximumf %302, %303 : vector<1x112xf32>
    %cst_206 = arith.constant dense<0.000000e+00> : vector<1xf32>
    %305 = vector.multi_reduction <add>, %304, %cst_206 [1] : vector<1x112xf32> to vector<1xf32>
    %306 = vector.shape_cast %305 : vector<1xf32> to vector<1x1xf32>
    %cst_207 = arith.constant 1.120000e+02 : f32
    %307 = vector.broadcast %cst_207 : f32 to vector<1x1xf32>
    %308 = arith.divf %306, %307 : vector<1x1xf32>
    %309 = vector.broadcast %308 : vector<1x1xf32> to vector<1x112xf32>
    %310 = arith.subf %304, %309 : vector<1x112xf32>
    %311 = arith.mulf %310, %310 : vector<1x112xf32>
    %cst_208 = arith.constant dense<0.000000e+00> : vector<1xf32>
    %312 = vector.multi_reduction <add>, %311, %cst_208 [1] : vector<1x112xf32> to vector<1xf32>
    %313 = vector.shape_cast %312 : vector<1xf32> to vector<1x1xf32>
    %cst_209 = arith.constant 1.120000e+02 : f32
    %314 = vector.broadcast %cst_209 : f32 to vector<1x1xf32>
    %315 = arith.divf %313, %314 : vector<1x1xf32>
    %cst_210 = arith.constant 9.99999974E-6 : f32
    %316 = vector.broadcast %cst_210 : f32 to vector<1x1xf32>
    %317 = arith.addf %315, %316 : vector<1x1xf32>
    %318 = math.rsqrt %317 : vector<1x1xf32>
    %319 = vector.broadcast %318 : vector<1x1xf32> to vector<1x112xf32>
    %320 = arith.mulf %310, %319 : vector<1x112xf32>
    %c1_i32_211 = arith.constant 1 : i32
    %c1_i32_212 = arith.constant 1 : i32
    %c1_i32_213 = arith.constant 1 : i32
    %c400_i32 = arith.constant 400 : i32
    %c0_i32_214 = arith.constant 0 : i32
    %321 = tpu.memref_slice %arg4[%c400_i32, %c0_i32_214] : memref<832x128xbf16, #tpu.memory_space<any>> -> memref<96x128xbf16, #tpu.memory_space<any>>
    %c0_i32_215 = arith.constant 0 : i32
    %c0_i32_216 = arith.constant 0 : i32
    %322 = tpu.memref_slice %arg9[%c1_i32_211, %c0_i32_215, %c0_i32_216] : memref<2x160x128xbf16, #tpu.memory_space<vmem>> -> memref<1x96x128xbf16, #tpu.memory_space<vmem>>
    %323 = tpu.memref_squeeze %322 : memref<1x96x128xbf16, #tpu.memory_space<vmem>> -> memref<96x128xbf16, #tpu.memory_space<vmem>>
    %324 = tpu.memref_slice %arg11[%c1_i32_212, %c1_i32_213] : memref<2x2x!tpu.dma_semaphore, #tpu.memory_space<semaphore_mem>> -> memref<1x1x!tpu.dma_semaphore, #tpu.memory_space<semaphore_mem>>
    %325 = tpu.memref_squeeze %324 : memref<1x1x!tpu.dma_semaphore, #tpu.memory_space<semaphore_mem>> -> memref<!tpu.dma_semaphore, #tpu.memory_space<semaphore_mem>>
    tpu.enqueue_dma source(%321 : memref<96x128xbf16, #tpu.memory_space<any>>) target(%323 : memref<96x128xbf16, #tpu.memory_space<vmem>>) target_semaphore(%325 : memref<!tpu.dma_semaphore, #tpu.memory_space<semaphore_mem>>)
    %c0_i32_217 = arith.constant 0 : i32
    %c1_i32_218 = arith.constant 1 : i32
    %c0_i32_219 = arith.constant 0 : i32
    %c288_i32_220 = arith.constant 288 : i32
    %c0_i32_221 = arith.constant 0 : i32
    %326 = tpu.memref_slice %arg4[%c288_i32_220, %c0_i32_221] : memref<832x128xbf16, #tpu.memory_space<any>> -> memref<112x128xbf16, #tpu.memory_space<any>>
    %c0_i32_222 = arith.constant 0 : i32
    %c0_i32_223 = arith.constant 0 : i32
    %327 = tpu.memref_slice %arg9[%c0_i32_217, %c0_i32_222, %c0_i32_223] : memref<2x160x128xbf16, #tpu.memory_space<vmem>> -> memref<1x112x128xbf16, #tpu.memory_space<vmem>>
    %328 = tpu.memref_squeeze %327 : memref<1x112x128xbf16, #tpu.memory_space<vmem>> -> memref<112x128xbf16, #tpu.memory_space<vmem>>
    %329 = tpu.memref_slice %arg11[%c1_i32_218, %c0_i32_219] : memref<2x2x!tpu.dma_semaphore, #tpu.memory_space<semaphore_mem>> -> memref<1x1x!tpu.dma_semaphore, #tpu.memory_space<semaphore_mem>>
    %330 = tpu.memref_squeeze %329 : memref<1x1x!tpu.dma_semaphore, #tpu.memory_space<semaphore_mem>> -> memref<!tpu.dma_semaphore, #tpu.memory_space<semaphore_mem>>
    tpu.wait_dma2 semaphore(%330 : memref<!tpu.dma_semaphore, #tpu.memory_space<semaphore_mem>>) src(%326 : memref<112x128xbf16, #tpu.memory_space<any>>) dst(%328 : memref<112x128xbf16, #tpu.memory_space<vmem>>)
    %c0_224 = arith.constant 0 : index
    %c0_225 = arith.constant 0 : index
    %c0_226 = arith.constant 0 : index
    %331 = vector.load %arg9[%c0_224, %c0_225, %c0_226] : memref<2x160x128xbf16, #tpu.memory_space<vmem>>, vector<1x112x96xbf16>
    %332 = vector.shape_cast %331 : vector<1x112x96xbf16> to vector<112x96xbf16>
    %c6_227 = arith.constant 6 : index
    %c0_228 = arith.constant 0 : index
    %333 = vector.load %arg5[%c6_227, %c0_228] : memref<14x256xf32, #tpu.memory_space<vmem>>, vector<1x96xf32>
    %334 = arith.truncf %320 : vector<1x112xf32> to vector<1x112xbf16>
    %cst_229 = arith.constant dense<0.000000e+00> : vector<1x96xf32>
    %335 = tpu.matmul %334, %332, %cst_229 {dimension_numbers = #tpu.dot_dimension_numbers<[1], [0], [0], [1], [0, 0, 1, 1], [], []>} : vector<1x112xbf16>, vector<112x96xbf16>, vector<1x96xf32> -> vector<1x96xf32>
    %336 = arith.addf %335, %333 : vector<1x96xf32>
    %cst_230 = arith.constant 0.000000e+00 : f32
    %337 = vector.broadcast %cst_230 : f32 to vector<1x96xf32>
    %338 = arith.maximumf %336, %337 : vector<1x96xf32>
    %cst_231 = arith.constant dense<0.000000e+00> : vector<1xf32>
    %339 = vector.multi_reduction <add>, %338, %cst_231 [1] : vector<1x96xf32> to vector<1xf32>
    %340 = vector.shape_cast %339 : vector<1xf32> to vector<1x1xf32>
    %cst_232 = arith.constant 9.600000e+01 : f32
    %341 = vector.broadcast %cst_232 : f32 to vector<1x1xf32>
    %342 = arith.divf %340, %341 : vector<1x1xf32>
    %343 = vector.broadcast %342 : vector<1x1xf32> to vector<1x96xf32>
    %344 = arith.subf %338, %343 : vector<1x96xf32>
    %345 = arith.mulf %344, %344 : vector<1x96xf32>
    %cst_233 = arith.constant dense<0.000000e+00> : vector<1xf32>
    %346 = vector.multi_reduction <add>, %345, %cst_233 [1] : vector<1x96xf32> to vector<1xf32>
    %347 = vector.shape_cast %346 : vector<1xf32> to vector<1x1xf32>
    %cst_234 = arith.constant 9.600000e+01 : f32
    %348 = vector.broadcast %cst_234 : f32 to vector<1x1xf32>
    %349 = arith.divf %347, %348 : vector<1x1xf32>
    %cst_235 = arith.constant 9.99999974E-6 : f32
    %350 = vector.broadcast %cst_235 : f32 to vector<1x1xf32>
    %351 = arith.addf %349, %350 : vector<1x1xf32>
    %352 = math.rsqrt %351 : vector<1x1xf32>
    %353 = vector.broadcast %352 : vector<1x1xf32> to vector<1x96xf32>
    %354 = arith.mulf %344, %353 : vector<1x96xf32>
    %c0_i32_236 = arith.constant 0 : i32
    %c1_i32_237 = arith.constant 1 : i32
    %c0_i32_238 = arith.constant 0 : i32
    %c496_i32 = arith.constant 496 : i32
    %c0_i32_239 = arith.constant 0 : i32
    %355 = tpu.memref_slice %arg4[%c496_i32, %c0_i32_239] : memref<832x128xbf16, #tpu.memory_space<any>> -> memref<80x128xbf16, #tpu.memory_space<any>>
    %c0_i32_240 = arith.constant 0 : i32
    %c0_i32_241 = arith.constant 0 : i32
    %356 = tpu.memref_slice %arg9[%c0_i32_236, %c0_i32_240, %c0_i32_241] : memref<2x160x128xbf16, #tpu.memory_space<vmem>> -> memref<1x80x128xbf16, #tpu.memory_space<vmem>>
    %357 = tpu.memref_squeeze %356 : memref<1x80x128xbf16, #tpu.memory_space<vmem>> -> memref<80x128xbf16, #tpu.memory_space<vmem>>
    %358 = tpu.memref_slice %arg11[%c1_i32_237, %c0_i32_238] : memref<2x2x!tpu.dma_semaphore, #tpu.memory_space<semaphore_mem>> -> memref<1x1x!tpu.dma_semaphore, #tpu.memory_space<semaphore_mem>>
    %359 = tpu.memref_squeeze %358 : memref<1x1x!tpu.dma_semaphore, #tpu.memory_space<semaphore_mem>> -> memref<!tpu.dma_semaphore, #tpu.memory_space<semaphore_mem>>
    tpu.enqueue_dma source(%355 : memref<80x128xbf16, #tpu.memory_space<any>>) target(%357 : memref<80x128xbf16, #tpu.memory_space<vmem>>) target_semaphore(%359 : memref<!tpu.dma_semaphore, #tpu.memory_space<semaphore_mem>>)
    %c1_i32_242 = arith.constant 1 : i32
    %c1_i32_243 = arith.constant 1 : i32
    %c1_i32_244 = arith.constant 1 : i32
    %c400_i32_245 = arith.constant 400 : i32
    %c0_i32_246 = arith.constant 0 : i32
    %360 = tpu.memref_slice %arg4[%c400_i32_245, %c0_i32_246] : memref<832x128xbf16, #tpu.memory_space<any>> -> memref<96x128xbf16, #tpu.memory_space<any>>
    %c0_i32_247 = arith.constant 0 : i32
    %c0_i32_248 = arith.constant 0 : i32
    %361 = tpu.memref_slice %arg9[%c1_i32_242, %c0_i32_247, %c0_i32_248] : memref<2x160x128xbf16, #tpu.memory_space<vmem>> -> memref<1x96x128xbf16, #tpu.memory_space<vmem>>
    %362 = tpu.memref_squeeze %361 : memref<1x96x128xbf16, #tpu.memory_space<vmem>> -> memref<96x128xbf16, #tpu.memory_space<vmem>>
    %363 = tpu.memref_slice %arg11[%c1_i32_243, %c1_i32_244] : memref<2x2x!tpu.dma_semaphore, #tpu.memory_space<semaphore_mem>> -> memref<1x1x!tpu.dma_semaphore, #tpu.memory_space<semaphore_mem>>
    %364 = tpu.memref_squeeze %363 : memref<1x1x!tpu.dma_semaphore, #tpu.memory_space<semaphore_mem>> -> memref<!tpu.dma_semaphore, #tpu.memory_space<semaphore_mem>>
    tpu.wait_dma2 semaphore(%364 : memref<!tpu.dma_semaphore, #tpu.memory_space<semaphore_mem>>) src(%360 : memref<96x128xbf16, #tpu.memory_space<any>>) dst(%362 : memref<96x128xbf16, #tpu.memory_space<vmem>>)
    %c1_249 = arith.constant 1 : index
    %c0_250 = arith.constant 0 : index
    %c0_251 = arith.constant 0 : index
    %365 = vector.load %arg9[%c1_249, %c0_250, %c0_251] : memref<2x160x128xbf16, #tpu.memory_space<vmem>>, vector<1x96x80xbf16>
    %366 = vector.shape_cast %365 : vector<1x96x80xbf16> to vector<96x80xbf16>
    %c7_252 = arith.constant 7 : index
    %c0_253 = arith.constant 0 : index
    %367 = vector.load %arg5[%c7_252, %c0_253] : memref<14x256xf32, #tpu.memory_space<vmem>>, vector<1x80xf32>
    %368 = arith.truncf %354 : vector<1x96xf32> to vector<1x96xbf16>
    %cst_254 = arith.constant dense<0.000000e+00> : vector<1x80xf32>
    %369 = tpu.matmul %368, %366, %cst_254 {dimension_numbers = #tpu.dot_dimension_numbers<[1], [0], [0], [1], [0, 0, 1, 1], [], []>} : vector<1x96xbf16>, vector<96x80xbf16>, vector<1x80xf32> -> vector<1x80xf32>
    %370 = arith.addf %369, %367 : vector<1x80xf32>
    %cst_255 = arith.constant 0.000000e+00 : f32
    %371 = vector.broadcast %cst_255 : f32 to vector<1x80xf32>
    %372 = arith.maximumf %370, %371 : vector<1x80xf32>
    %cst_256 = arith.constant dense<0.000000e+00> : vector<1xf32>
    %373 = vector.multi_reduction <add>, %372, %cst_256 [1] : vector<1x80xf32> to vector<1xf32>
    %374 = vector.shape_cast %373 : vector<1xf32> to vector<1x1xf32>
    %cst_257 = arith.constant 8.000000e+01 : f32
    %375 = vector.broadcast %cst_257 : f32 to vector<1x1xf32>
    %376 = arith.divf %374, %375 : vector<1x1xf32>
    %377 = vector.broadcast %376 : vector<1x1xf32> to vector<1x80xf32>
    %378 = arith.subf %372, %377 : vector<1x80xf32>
    %379 = arith.mulf %378, %378 : vector<1x80xf32>
    %cst_258 = arith.constant dense<0.000000e+00> : vector<1xf32>
    %380 = vector.multi_reduction <add>, %379, %cst_258 [1] : vector<1x80xf32> to vector<1xf32>
    %381 = vector.shape_cast %380 : vector<1xf32> to vector<1x1xf32>
    %cst_259 = arith.constant 8.000000e+01 : f32
    %382 = vector.broadcast %cst_259 : f32 to vector<1x1xf32>
    %383 = arith.divf %381, %382 : vector<1x1xf32>
    %cst_260 = arith.constant 9.99999974E-6 : f32
    %384 = vector.broadcast %cst_260 : f32 to vector<1x1xf32>
    %385 = arith.addf %383, %384 : vector<1x1xf32>
    %386 = math.rsqrt %385 : vector<1x1xf32>
    %387 = vector.broadcast %386 : vector<1x1xf32> to vector<1x80xf32>
    %388 = arith.mulf %378, %387 : vector<1x80xf32>
    %c1_i32_261 = arith.constant 1 : i32
    %c1_i32_262 = arith.constant 1 : i32
    %c1_i32_263 = arith.constant 1 : i32
    %c576_i32_264 = arith.constant 576 : i32
    %c0_i32_265 = arith.constant 0 : i32
    %389 = tpu.memref_slice %arg4[%c576_i32_264, %c0_i32_265] : memref<832x128xbf16, #tpu.memory_space<any>> -> memref<64x128xbf16, #tpu.memory_space<any>>
    %c0_i32_266 = arith.constant 0 : i32
    %c0_i32_267 = arith.constant 0 : i32
    %390 = tpu.memref_slice %arg9[%c1_i32_261, %c0_i32_266, %c0_i32_267] : memref<2x160x128xbf16, #tpu.memory_space<vmem>> -> memref<1x64x128xbf16, #tpu.memory_space<vmem>>
    %391 = tpu.memref_squeeze %390 : memref<1x64x128xbf16, #tpu.memory_space<vmem>> -> memref<64x128xbf16, #tpu.memory_space<vmem>>
    %392 = tpu.memref_slice %arg11[%c1_i32_262, %c1_i32_263] : memref<2x2x!tpu.dma_semaphore, #tpu.memory_space<semaphore_mem>> -> memref<1x1x!tpu.dma_semaphore, #tpu.memory_space<semaphore_mem>>
    %393 = tpu.memref_squeeze %392 : memref<1x1x!tpu.dma_semaphore, #tpu.memory_space<semaphore_mem>> -> memref<!tpu.dma_semaphore, #tpu.memory_space<semaphore_mem>>
    tpu.enqueue_dma source(%389 : memref<64x128xbf16, #tpu.memory_space<any>>) target(%391 : memref<64x128xbf16, #tpu.memory_space<vmem>>) target_semaphore(%393 : memref<!tpu.dma_semaphore, #tpu.memory_space<semaphore_mem>>)
    %c0_i32_268 = arith.constant 0 : i32
    %c1_i32_269 = arith.constant 1 : i32
    %c0_i32_270 = arith.constant 0 : i32
    %c496_i32_271 = arith.constant 496 : i32
    %c0_i32_272 = arith.constant 0 : i32
    %394 = tpu.memref_slice %arg4[%c496_i32_271, %c0_i32_272] : memref<832x128xbf16, #tpu.memory_space<any>> -> memref<80x128xbf16, #tpu.memory_space<any>>
    %c0_i32_273 = arith.constant 0 : i32
    %c0_i32_274 = arith.constant 0 : i32
    %395 = tpu.memref_slice %arg9[%c0_i32_268, %c0_i32_273, %c0_i32_274] : memref<2x160x128xbf16, #tpu.memory_space<vmem>> -> memref<1x80x128xbf16, #tpu.memory_space<vmem>>
    %396 = tpu.memref_squeeze %395 : memref<1x80x128xbf16, #tpu.memory_space<vmem>> -> memref<80x128xbf16, #tpu.memory_space<vmem>>
    %397 = tpu.memref_slice %arg11[%c1_i32_269, %c0_i32_270] : memref<2x2x!tpu.dma_semaphore, #tpu.memory_space<semaphore_mem>> -> memref<1x1x!tpu.dma_semaphore, #tpu.memory_space<semaphore_mem>>
    %398 = tpu.memref_squeeze %397 : memref<1x1x!tpu.dma_semaphore, #tpu.memory_space<semaphore_mem>> -> memref<!tpu.dma_semaphore, #tpu.memory_space<semaphore_mem>>
    tpu.wait_dma2 semaphore(%398 : memref<!tpu.dma_semaphore, #tpu.memory_space<semaphore_mem>>) src(%394 : memref<80x128xbf16, #tpu.memory_space<any>>) dst(%396 : memref<80x128xbf16, #tpu.memory_space<vmem>>)
    %c0_275 = arith.constant 0 : index
    %c0_276 = arith.constant 0 : index
    %c0_277 = arith.constant 0 : index
    %399 = vector.load %arg9[%c0_275, %c0_276, %c0_277] : memref<2x160x128xbf16, #tpu.memory_space<vmem>>, vector<1x80x64xbf16>
    %400 = vector.shape_cast %399 : vector<1x80x64xbf16> to vector<80x64xbf16>
    %c8_278 = arith.constant 8 : index
    %c0_279 = arith.constant 0 : index
    %401 = vector.load %arg5[%c8_278, %c0_279] : memref<14x256xf32, #tpu.memory_space<vmem>>, vector<1x64xf32>
    %402 = arith.truncf %388 : vector<1x80xf32> to vector<1x80xbf16>
    %cst_280 = arith.constant dense<0.000000e+00> : vector<1x64xf32>
    %403 = tpu.matmul %402, %400, %cst_280 {dimension_numbers = #tpu.dot_dimension_numbers<[1], [0], [0], [1], [0, 0, 1, 1], [], []>} : vector<1x80xbf16>, vector<80x64xbf16>, vector<1x64xf32> -> vector<1x64xf32>
    %404 = arith.addf %403, %401 : vector<1x64xf32>
    %cst_281 = arith.constant 0.000000e+00 : f32
    %405 = vector.broadcast %cst_281 : f32 to vector<1x64xf32>
    %406 = arith.maximumf %404, %405 : vector<1x64xf32>
    %cst_282 = arith.constant dense<0.000000e+00> : vector<1xf32>
    %407 = vector.multi_reduction <add>, %406, %cst_282 [1] : vector<1x64xf32> to vector<1xf32>
    %408 = vector.shape_cast %407 : vector<1xf32> to vector<1x1xf32>
    %cst_283 = arith.constant 6.400000e+01 : f32
    %409 = vector.broadcast %cst_283 : f32 to vector<1x1xf32>
    %410 = arith.divf %408, %409 : vector<1x1xf32>
    %411 = vector.broadcast %410 : vector<1x1xf32> to vector<1x64xf32>
    %412 = arith.subf %406, %411 : vector<1x64xf32>
    %413 = arith.mulf %412, %412 : vector<1x64xf32>
    %cst_284 = arith.constant dense<0.000000e+00> : vector<1xf32>
    %414 = vector.multi_reduction <add>, %413, %cst_284 [1] : vector<1x64xf32> to vector<1xf32>
    %415 = vector.shape_cast %414 : vector<1xf32> to vector<1x1xf32>
    %cst_285 = arith.constant 6.400000e+01 : f32
    %416 = vector.broadcast %cst_285 : f32 to vector<1x1xf32>
    %417 = arith.divf %415, %416 : vector<1x1xf32>
    %cst_286 = arith.constant 9.99999974E-6 : f32
    %418 = vector.broadcast %cst_286 : f32 to vector<1x1xf32>
    %419 = arith.addf %417, %418 : vector<1x1xf32>
    %420 = math.rsqrt %419 : vector<1x1xf32>
    %421 = vector.broadcast %420 : vector<1x1xf32> to vector<1x64xf32>
    %422 = arith.mulf %412, %421 : vector<1x64xf32>
    %c0_i32_287 = arith.constant 0 : i32
    %c1_i32_288 = arith.constant 1 : i32
    %c0_i32_289 = arith.constant 0 : i32
    %c640_i32 = arith.constant 640 : i32
    %c0_i32_290 = arith.constant 0 : i32
    %423 = tpu.memref_slice %arg4[%c640_i32, %c0_i32_290] : memref<832x128xbf16, #tpu.memory_space<any>> -> memref<64x128xbf16, #tpu.memory_space<any>>
    %c0_i32_291 = arith.constant 0 : i32
    %c0_i32_292 = arith.constant 0 : i32
    %424 = tpu.memref_slice %arg9[%c0_i32_287, %c0_i32_291, %c0_i32_292] : memref<2x160x128xbf16, #tpu.memory_space<vmem>> -> memref<1x64x128xbf16, #tpu.memory_space<vmem>>
    %425 = tpu.memref_squeeze %424 : memref<1x64x128xbf16, #tpu.memory_space<vmem>> -> memref<64x128xbf16, #tpu.memory_space<vmem>>
    %426 = tpu.memref_slice %arg11[%c1_i32_288, %c0_i32_289] : memref<2x2x!tpu.dma_semaphore, #tpu.memory_space<semaphore_mem>> -> memref<1x1x!tpu.dma_semaphore, #tpu.memory_space<semaphore_mem>>
    %427 = tpu.memref_squeeze %426 : memref<1x1x!tpu.dma_semaphore, #tpu.memory_space<semaphore_mem>> -> memref<!tpu.dma_semaphore, #tpu.memory_space<semaphore_mem>>
    tpu.enqueue_dma source(%423 : memref<64x128xbf16, #tpu.memory_space<any>>) target(%425 : memref<64x128xbf16, #tpu.memory_space<vmem>>) target_semaphore(%427 : memref<!tpu.dma_semaphore, #tpu.memory_space<semaphore_mem>>)
    %c1_i32_293 = arith.constant 1 : i32
    %c1_i32_294 = arith.constant 1 : i32
    %c1_i32_295 = arith.constant 1 : i32
    %c576_i32_296 = arith.constant 576 : i32
    %c0_i32_297 = arith.constant 0 : i32
    %428 = tpu.memref_slice %arg4[%c576_i32_296, %c0_i32_297] : memref<832x128xbf16, #tpu.memory_space<any>> -> memref<64x128xbf16, #tpu.memory_space<any>>
    %c0_i32_298 = arith.constant 0 : i32
    %c0_i32_299 = arith.constant 0 : i32
    %429 = tpu.memref_slice %arg9[%c1_i32_293, %c0_i32_298, %c0_i32_299] : memref<2x160x128xbf16, #tpu.memory_space<vmem>> -> memref<1x64x128xbf16, #tpu.memory_space<vmem>>
    %430 = tpu.memref_squeeze %429 : memref<1x64x128xbf16, #tpu.memory_space<vmem>> -> memref<64x128xbf16, #tpu.memory_space<vmem>>
    %431 = tpu.memref_slice %arg11[%c1_i32_294, %c1_i32_295] : memref<2x2x!tpu.dma_semaphore, #tpu.memory_space<semaphore_mem>> -> memref<1x1x!tpu.dma_semaphore, #tpu.memory_space<semaphore_mem>>
    %432 = tpu.memref_squeeze %431 : memref<1x1x!tpu.dma_semaphore, #tpu.memory_space<semaphore_mem>> -> memref<!tpu.dma_semaphore, #tpu.memory_space<semaphore_mem>>
    tpu.wait_dma2 semaphore(%432 : memref<!tpu.dma_semaphore, #tpu.memory_space<semaphore_mem>>) src(%428 : memref<64x128xbf16, #tpu.memory_space<any>>) dst(%430 : memref<64x128xbf16, #tpu.memory_space<vmem>>)
    %c1_300 = arith.constant 1 : index
    %c0_301 = arith.constant 0 : index
    %c0_302 = arith.constant 0 : index
    %433 = vector.load %arg9[%c1_300, %c0_301, %c0_302] : memref<2x160x128xbf16, #tpu.memory_space<vmem>>, vector<1x64x56xbf16>
    %434 = vector.shape_cast %433 : vector<1x64x56xbf16> to vector<64x56xbf16>
    %c9_303 = arith.constant 9 : index
    %c0_304 = arith.constant 0 : index
    %435 = vector.load %arg5[%c9_303, %c0_304] : memref<14x256xf32, #tpu.memory_space<vmem>>, vector<1x56xf32>
    %436 = arith.truncf %422 : vector<1x64xf32> to vector<1x64xbf16>
    %cst_305 = arith.constant dense<0.000000e+00> : vector<1x56xf32>
    %437 = tpu.matmul %436, %434, %cst_305 {dimension_numbers = #tpu.dot_dimension_numbers<[1], [0], [0], [1], [0, 0, 1, 1], [], []>} : vector<1x64xbf16>, vector<64x56xbf16>, vector<1x56xf32> -> vector<1x56xf32>
    %438 = arith.addf %437, %435 : vector<1x56xf32>
    %cst_306 = arith.constant 0.000000e+00 : f32
    %439 = vector.broadcast %cst_306 : f32 to vector<1x56xf32>
    %440 = arith.maximumf %438, %439 : vector<1x56xf32>
    %cst_307 = arith.constant dense<0.000000e+00> : vector<1xf32>
    %441 = vector.multi_reduction <add>, %440, %cst_307 [1] : vector<1x56xf32> to vector<1xf32>
    %442 = vector.shape_cast %441 : vector<1xf32> to vector<1x1xf32>
    %cst_308 = arith.constant 5.600000e+01 : f32
    %443 = vector.broadcast %cst_308 : f32 to vector<1x1xf32>
    %444 = arith.divf %442, %443 : vector<1x1xf32>
    %445 = vector.broadcast %444 : vector<1x1xf32> to vector<1x56xf32>
    %446 = arith.subf %440, %445 : vector<1x56xf32>
    %447 = arith.mulf %446, %446 : vector<1x56xf32>
    %cst_309 = arith.constant dense<0.000000e+00> : vector<1xf32>
    %448 = vector.multi_reduction <add>, %447, %cst_309 [1] : vector<1x56xf32> to vector<1xf32>
    %449 = vector.shape_cast %448 : vector<1xf32> to vector<1x1xf32>
    %cst_310 = arith.constant 5.600000e+01 : f32
    %450 = vector.broadcast %cst_310 : f32 to vector<1x1xf32>
    %451 = arith.divf %449, %450 : vector<1x1xf32>
    %cst_311 = arith.constant 9.99999974E-6 : f32
    %452 = vector.broadcast %cst_311 : f32 to vector<1x1xf32>
    %453 = arith.addf %451, %452 : vector<1x1xf32>
    %454 = math.rsqrt %453 : vector<1x1xf32>
    %455 = vector.broadcast %454 : vector<1x1xf32> to vector<1x56xf32>
    %456 = arith.mulf %446, %455 : vector<1x56xf32>
    %c1_i32_312 = arith.constant 1 : i32
    %c1_i32_313 = arith.constant 1 : i32
    %c1_i32_314 = arith.constant 1 : i32
    %c704_i32 = arith.constant 704 : i32
    %c0_i32_315 = arith.constant 0 : i32
    %457 = tpu.memref_slice %arg4[%c704_i32, %c0_i32_315] : memref<832x128xbf16, #tpu.memory_space<any>> -> memref<48x128xbf16, #tpu.memory_space<any>>
    %c0_i32_316 = arith.constant 0 : i32
    %c0_i32_317 = arith.constant 0 : i32
    %458 = tpu.memref_slice %arg9[%c1_i32_312, %c0_i32_316, %c0_i32_317] : memref<2x160x128xbf16, #tpu.memory_space<vmem>> -> memref<1x48x128xbf16, #tpu.memory_space<vmem>>
    %459 = tpu.memref_squeeze %458 : memref<1x48x128xbf16, #tpu.memory_space<vmem>> -> memref<48x128xbf16, #tpu.memory_space<vmem>>
    %460 = tpu.memref_slice %arg11[%c1_i32_313, %c1_i32_314] : memref<2x2x!tpu.dma_semaphore, #tpu.memory_space<semaphore_mem>> -> memref<1x1x!tpu.dma_semaphore, #tpu.memory_space<semaphore_mem>>
    %461 = tpu.memref_squeeze %460 : memref<1x1x!tpu.dma_semaphore, #tpu.memory_space<semaphore_mem>> -> memref<!tpu.dma_semaphore, #tpu.memory_space<semaphore_mem>>
    tpu.enqueue_dma source(%457 : memref<48x128xbf16, #tpu.memory_space<any>>) target(%459 : memref<48x128xbf16, #tpu.memory_space<vmem>>) target_semaphore(%461 : memref<!tpu.dma_semaphore, #tpu.memory_space<semaphore_mem>>)
    %c0_i32_318 = arith.constant 0 : i32
    %c1_i32_319 = arith.constant 1 : i32
    %c0_i32_320 = arith.constant 0 : i32
    %c640_i32_321 = arith.constant 640 : i32
    %c0_i32_322 = arith.constant 0 : i32
    %462 = tpu.memref_slice %arg4[%c640_i32_321, %c0_i32_322] : memref<832x128xbf16, #tpu.memory_space<any>> -> memref<64x128xbf16, #tpu.memory_space<any>>
    %c0_i32_323 = arith.constant 0 : i32
    %c0_i32_324 = arith.constant 0 : i32
    %463 = tpu.memref_slice %arg9[%c0_i32_318, %c0_i32_323, %c0_i32_324] : memref<2x160x128xbf16, #tpu.memory_space<vmem>> -> memref<1x64x128xbf16, #tpu.memory_space<vmem>>
    %464 = tpu.memref_squeeze %463 : memref<1x64x128xbf16, #tpu.memory_space<vmem>> -> memref<64x128xbf16, #tpu.memory_space<vmem>>
    %465 = tpu.memref_slice %arg11[%c1_i32_319, %c0_i32_320] : memref<2x2x!tpu.dma_semaphore, #tpu.memory_space<semaphore_mem>> -> memref<1x1x!tpu.dma_semaphore, #tpu.memory_space<semaphore_mem>>
    %466 = tpu.memref_squeeze %465 : memref<1x1x!tpu.dma_semaphore, #tpu.memory_space<semaphore_mem>> -> memref<!tpu.dma_semaphore, #tpu.memory_space<semaphore_mem>>
    tpu.wait_dma2 semaphore(%466 : memref<!tpu.dma_semaphore, #tpu.memory_space<semaphore_mem>>) src(%462 : memref<64x128xbf16, #tpu.memory_space<any>>) dst(%464 : memref<64x128xbf16, #tpu.memory_space<vmem>>)
    %c0_325 = arith.constant 0 : index
    %c0_326 = arith.constant 0 : index
    %c0_327 = arith.constant 0 : index
    %467 = vector.load %arg9[%c0_325, %c0_326, %c0_327] : memref<2x160x128xbf16, #tpu.memory_space<vmem>>, vector<1x56x48xbf16>
    %468 = vector.shape_cast %467 : vector<1x56x48xbf16> to vector<56x48xbf16>
    %c10_328 = arith.constant 10 : index
    %c0_329 = arith.constant 0 : index
    %469 = vector.load %arg5[%c10_328, %c0_329] : memref<14x256xf32, #tpu.memory_space<vmem>>, vector<1x48xf32>
    %470 = arith.truncf %456 : vector<1x56xf32> to vector<1x56xbf16>
    %cst_330 = arith.constant dense<0.000000e+00> : vector<1x48xf32>
    %471 = tpu.matmul %470, %468, %cst_330 {dimension_numbers = #tpu.dot_dimension_numbers<[1], [0], [0], [1], [0, 0, 1, 1], [], []>} : vector<1x56xbf16>, vector<56x48xbf16>, vector<1x48xf32> -> vector<1x48xf32>
    %472 = arith.addf %471, %469 : vector<1x48xf32>
    %cst_331 = arith.constant 0.000000e+00 : f32
    %473 = vector.broadcast %cst_331 : f32 to vector<1x48xf32>
    %474 = arith.maximumf %472, %473 : vector<1x48xf32>
    %cst_332 = arith.constant dense<0.000000e+00> : vector<1xf32>
    %475 = vector.multi_reduction <add>, %474, %cst_332 [1] : vector<1x48xf32> to vector<1xf32>
    %476 = vector.shape_cast %475 : vector<1xf32> to vector<1x1xf32>
    %cst_333 = arith.constant 4.800000e+01 : f32
    %477 = vector.broadcast %cst_333 : f32 to vector<1x1xf32>
    %478 = arith.divf %476, %477 : vector<1x1xf32>
    %479 = vector.broadcast %478 : vector<1x1xf32> to vector<1x48xf32>
    %480 = arith.subf %474, %479 : vector<1x48xf32>
    %481 = arith.mulf %480, %480 : vector<1x48xf32>
    %cst_334 = arith.constant dense<0.000000e+00> : vector<1xf32>
    %482 = vector.multi_reduction <add>, %481, %cst_334 [1] : vector<1x48xf32> to vector<1xf32>
    %483 = vector.shape_cast %482 : vector<1xf32> to vector<1x1xf32>
    %cst_335 = arith.constant 4.800000e+01 : f32
    %484 = vector.broadcast %cst_335 : f32 to vector<1x1xf32>
    %485 = arith.divf %483, %484 : vector<1x1xf32>
    %cst_336 = arith.constant 9.99999974E-6 : f32
    %486 = vector.broadcast %cst_336 : f32 to vector<1x1xf32>
    %487 = arith.addf %485, %486 : vector<1x1xf32>
    %488 = math.rsqrt %487 : vector<1x1xf32>
    %489 = vector.broadcast %488 : vector<1x1xf32> to vector<1x48xf32>
    %490 = arith.mulf %480, %489 : vector<1x48xf32>
    %c0_i32_337 = arith.constant 0 : i32
    %c1_i32_338 = arith.constant 1 : i32
    %c0_i32_339 = arith.constant 0 : i32
    %c752_i32 = arith.constant 752 : i32
    %c0_i32_340 = arith.constant 0 : i32
    %491 = tpu.memref_slice %arg4[%c752_i32, %c0_i32_340] : memref<832x128xbf16, #tpu.memory_space<any>> -> memref<48x128xbf16, #tpu.memory_space<any>>
    %c0_i32_341 = arith.constant 0 : i32
    %c0_i32_342 = arith.constant 0 : i32
    %492 = tpu.memref_slice %arg9[%c0_i32_337, %c0_i32_341, %c0_i32_342] : memref<2x160x128xbf16, #tpu.memory_space<vmem>> -> memref<1x48x128xbf16, #tpu.memory_space<vmem>>
    %493 = tpu.memref_squeeze %492 : memref<1x48x128xbf16, #tpu.memory_space<vmem>> -> memref<48x128xbf16, #tpu.memory_space<vmem>>
    %494 = tpu.memref_slice %arg11[%c1_i32_338, %c0_i32_339] : memref<2x2x!tpu.dma_semaphore, #tpu.memory_space<semaphore_mem>> -> memref<1x1x!tpu.dma_semaphore, #tpu.memory_space<semaphore_mem>>
    %495 = tpu.memref_squeeze %494 : memref<1x1x!tpu.dma_semaphore, #tpu.memory_space<semaphore_mem>> -> memref<!tpu.dma_semaphore, #tpu.memory_space<semaphore_mem>>
    tpu.enqueue_dma source(%491 : memref<48x128xbf16, #tpu.memory_space<any>>) target(%493 : memref<48x128xbf16, #tpu.memory_space<vmem>>) target_semaphore(%495 : memref<!tpu.dma_semaphore, #tpu.memory_space<semaphore_mem>>)
    %c1_i32_343 = arith.constant 1 : i32
    %c1_i32_344 = arith.constant 1 : i32
    %c1_i32_345 = arith.constant 1 : i32
    %c704_i32_346 = arith.constant 704 : i32
    %c0_i32_347 = arith.constant 0 : i32
    %496 = tpu.memref_slice %arg4[%c704_i32_346, %c0_i32_347] : memref<832x128xbf16, #tpu.memory_space<any>> -> memref<48x128xbf16, #tpu.memory_space<any>>
    %c0_i32_348 = arith.constant 0 : i32
    %c0_i32_349 = arith.constant 0 : i32
    %497 = tpu.memref_slice %arg9[%c1_i32_343, %c0_i32_348, %c0_i32_349] : memref<2x160x128xbf16, #tpu.memory_space<vmem>> -> memref<1x48x128xbf16, #tpu.memory_space<vmem>>
    %498 = tpu.memref_squeeze %497 : memref<1x48x128xbf16, #tpu.memory_space<vmem>> -> memref<48x128xbf16, #tpu.memory_space<vmem>>
    %499 = tpu.memref_slice %arg11[%c1_i32_344, %c1_i32_345] : memref<2x2x!tpu.dma_semaphore, #tpu.memory_space<semaphore_mem>> -> memref<1x1x!tpu.dma_semaphore, #tpu.memory_space<semaphore_mem>>
    %500 = tpu.memref_squeeze %499 : memref<1x1x!tpu.dma_semaphore, #tpu.memory_space<semaphore_mem>> -> memref<!tpu.dma_semaphore, #tpu.memory_space<semaphore_mem>>
    tpu.wait_dma2 semaphore(%500 : memref<!tpu.dma_semaphore, #tpu.memory_space<semaphore_mem>>) src(%496 : memref<48x128xbf16, #tpu.memory_space<any>>) dst(%498 : memref<48x128xbf16, #tpu.memory_space<vmem>>)
    %c1_350 = arith.constant 1 : index
    %c0_351 = arith.constant 0 : index
    %c0_352 = arith.constant 0 : index
    %501 = vector.load %arg9[%c1_350, %c0_351, %c0_352] : memref<2x160x128xbf16, #tpu.memory_space<vmem>>, vector<1x48x40xbf16>
    %502 = vector.shape_cast %501 : vector<1x48x40xbf16> to vector<48x40xbf16>
    %c11_353 = arith.constant 11 : index
    %c0_354 = arith.constant 0 : index
    %503 = vector.load %arg5[%c11_353, %c0_354] : memref<14x256xf32, #tpu.memory_space<vmem>>, vector<1x40xf32>
    %504 = arith.truncf %490 : vector<1x48xf32> to vector<1x48xbf16>
    %cst_355 = arith.constant dense<0.000000e+00> : vector<1x40xf32>
    %505 = tpu.matmul %504, %502, %cst_355 {dimension_numbers = #tpu.dot_dimension_numbers<[1], [0], [0], [1], [0, 0, 1, 1], [], []>} : vector<1x48xbf16>, vector<48x40xbf16>, vector<1x40xf32> -> vector<1x40xf32>
    %506 = arith.addf %505, %503 : vector<1x40xf32>
    %cst_356 = arith.constant 0.000000e+00 : f32
    %507 = vector.broadcast %cst_356 : f32 to vector<1x40xf32>
    %508 = arith.maximumf %506, %507 : vector<1x40xf32>
    %cst_357 = arith.constant dense<0.000000e+00> : vector<1xf32>
    %509 = vector.multi_reduction <add>, %508, %cst_357 [1] : vector<1x40xf32> to vector<1xf32>
    %510 = vector.shape_cast %509 : vector<1xf32> to vector<1x1xf32>
    %cst_358 = arith.constant 4.000000e+01 : f32
    %511 = vector.broadcast %cst_358 : f32 to vector<1x1xf32>
    %512 = arith.divf %510, %511 : vector<1x1xf32>
    %513 = vector.broadcast %512 : vector<1x1xf32> to vector<1x40xf32>
    %514 = arith.subf %508, %513 : vector<1x40xf32>
    %515 = arith.mulf %514, %514 : vector<1x40xf32>
    %cst_359 = arith.constant dense<0.000000e+00> : vector<1xf32>
    %516 = vector.multi_reduction <add>, %515, %cst_359 [1] : vector<1x40xf32> to vector<1xf32>
    %517 = vector.shape_cast %516 : vector<1xf32> to vector<1x1xf32>
    %cst_360 = arith.constant 4.000000e+01 : f32
    %518 = vector.broadcast %cst_360 : f32 to vector<1x1xf32>
    %519 = arith.divf %517, %518 : vector<1x1xf32>
    %cst_361 = arith.constant 9.99999974E-6 : f32
    %520 = vector.broadcast %cst_361 : f32 to vector<1x1xf32>
    %521 = arith.addf %519, %520 : vector<1x1xf32>
    %522 = math.rsqrt %521 : vector<1x1xf32>
    %523 = vector.broadcast %522 : vector<1x1xf32> to vector<1x40xf32>
    %524 = arith.mulf %514, %523 : vector<1x40xf32>
    %c1_i32_362 = arith.constant 1 : i32
    %c1_i32_363 = arith.constant 1 : i32
    %c1_i32_364 = arith.constant 1 : i32
    %c800_i32 = arith.constant 800 : i32
    %c0_i32_365 = arith.constant 0 : i32
    %525 = tpu.memref_slice %arg4[%c800_i32, %c0_i32_365] : memref<832x128xbf16, #tpu.memory_space<any>> -> memref<32x128xbf16, #tpu.memory_space<any>>
    %c0_i32_366 = arith.constant 0 : i32
    %c0_i32_367 = arith.constant 0 : i32
    %526 = tpu.memref_slice %arg9[%c1_i32_362, %c0_i32_366, %c0_i32_367] : memref<2x160x128xbf16, #tpu.memory_space<vmem>> -> memref<1x32x128xbf16, #tpu.memory_space<vmem>>
    %527 = tpu.memref_squeeze %526 : memref<1x32x128xbf16, #tpu.memory_space<vmem>> -> memref<32x128xbf16, #tpu.memory_space<vmem>>
    %528 = tpu.memref_slice %arg11[%c1_i32_363, %c1_i32_364] : memref<2x2x!tpu.dma_semaphore, #tpu.memory_space<semaphore_mem>> -> memref<1x1x!tpu.dma_semaphore, #tpu.memory_space<semaphore_mem>>
    %529 = tpu.memref_squeeze %528 : memref<1x1x!tpu.dma_semaphore, #tpu.memory_space<semaphore_mem>> -> memref<!tpu.dma_semaphore, #tpu.memory_space<semaphore_mem>>
    tpu.enqueue_dma source(%525 : memref<32x128xbf16, #tpu.memory_space<any>>) target(%527 : memref<32x128xbf16, #tpu.memory_space<vmem>>) target_semaphore(%529 : memref<!tpu.dma_semaphore, #tpu.memory_space<semaphore_mem>>)
    %c0_i32_368 = arith.constant 0 : i32
    %c1_i32_369 = arith.constant 1 : i32
    %c0_i32_370 = arith.constant 0 : i32
    %c752_i32_371 = arith.constant 752 : i32
    %c0_i32_372 = arith.constant 0 : i32
    %530 = tpu.memref_slice %arg4[%c752_i32_371, %c0_i32_372] : memref<832x128xbf16, #tpu.memory_space<any>> -> memref<48x128xbf16, #tpu.memory_space<any>>
    %c0_i32_373 = arith.constant 0 : i32
    %c0_i32_374 = arith.constant 0 : i32
    %531 = tpu.memref_slice %arg9[%c0_i32_368, %c0_i32_373, %c0_i32_374] : memref<2x160x128xbf16, #tpu.memory_space<vmem>> -> memref<1x48x128xbf16, #tpu.memory_space<vmem>>
    %532 = tpu.memref_squeeze %531 : memref<1x48x128xbf16, #tpu.memory_space<vmem>> -> memref<48x128xbf16, #tpu.memory_space<vmem>>
    %533 = tpu.memref_slice %arg11[%c1_i32_369, %c0_i32_370] : memref<2x2x!tpu.dma_semaphore, #tpu.memory_space<semaphore_mem>> -> memref<1x1x!tpu.dma_semaphore, #tpu.memory_space<semaphore_mem>>
    %534 = tpu.memref_squeeze %533 : memref<1x1x!tpu.dma_semaphore, #tpu.memory_space<semaphore_mem>> -> memref<!tpu.dma_semaphore, #tpu.memory_space<semaphore_mem>>
    tpu.wait_dma2 semaphore(%534 : memref<!tpu.dma_semaphore, #tpu.memory_space<semaphore_mem>>) src(%530 : memref<48x128xbf16, #tpu.memory_space<any>>) dst(%532 : memref<48x128xbf16, #tpu.memory_space<vmem>>)
    %c0_375 = arith.constant 0 : index
    %c0_376 = arith.constant 0 : index
    %c0_377 = arith.constant 0 : index
    %535 = vector.load %arg9[%c0_375, %c0_376, %c0_377] : memref<2x160x128xbf16, #tpu.memory_space<vmem>>, vector<1x40x32xbf16>
    %536 = vector.shape_cast %535 : vector<1x40x32xbf16> to vector<40x32xbf16>
    %c12_378 = arith.constant 12 : index
    %c0_379 = arith.constant 0 : index
    %537 = vector.load %arg5[%c12_378, %c0_379] : memref<14x256xf32, #tpu.memory_space<vmem>>, vector<1x32xf32>
    %538 = arith.truncf %524 : vector<1x40xf32> to vector<1x40xbf16>
    %cst_380 = arith.constant dense<0.000000e+00> : vector<1x32xf32>
    %539 = tpu.matmul %538, %536, %cst_380 {dimension_numbers = #tpu.dot_dimension_numbers<[1], [0], [0], [1], [0, 0, 1, 1], [], []>} : vector<1x40xbf16>, vector<40x32xbf16>, vector<1x32xf32> -> vector<1x32xf32>
    %540 = arith.addf %539, %537 : vector<1x32xf32>
    %cst_381 = arith.constant 0.000000e+00 : f32
    %541 = vector.broadcast %cst_381 : f32 to vector<1x32xf32>
    %542 = arith.maximumf %540, %541 : vector<1x32xf32>
    %cst_382 = arith.constant dense<0.000000e+00> : vector<1xf32>
    %543 = vector.multi_reduction <add>, %542, %cst_382 [1] : vector<1x32xf32> to vector<1xf32>
    %544 = vector.shape_cast %543 : vector<1xf32> to vector<1x1xf32>
    %cst_383 = arith.constant 3.200000e+01 : f32
    %545 = vector.broadcast %cst_383 : f32 to vector<1x1xf32>
    %546 = arith.divf %544, %545 : vector<1x1xf32>
    %547 = vector.broadcast %546 : vector<1x1xf32> to vector<1x32xf32>
    %548 = arith.subf %542, %547 : vector<1x32xf32>
    %549 = arith.mulf %548, %548 : vector<1x32xf32>
    %cst_384 = arith.constant dense<0.000000e+00> : vector<1xf32>
    %550 = vector.multi_reduction <add>, %549, %cst_384 [1] : vector<1x32xf32> to vector<1xf32>
    %551 = vector.shape_cast %550 : vector<1xf32> to vector<1x1xf32>
    %cst_385 = arith.constant 3.200000e+01 : f32
    %552 = vector.broadcast %cst_385 : f32 to vector<1x1xf32>
    %553 = arith.divf %551, %552 : vector<1x1xf32>
    %cst_386 = arith.constant 9.99999974E-6 : f32
    %554 = vector.broadcast %cst_386 : f32 to vector<1x1xf32>
    %555 = arith.addf %553, %554 : vector<1x1xf32>
    %556 = math.rsqrt %555 : vector<1x1xf32>
    %557 = vector.broadcast %556 : vector<1x1xf32> to vector<1x32xf32>
    %558 = arith.mulf %548, %557 : vector<1x32xf32>
    %c1_i32_387 = arith.constant 1 : i32
    %c1_i32_388 = arith.constant 1 : i32
    %c1_i32_389 = arith.constant 1 : i32
    %c800_i32_390 = arith.constant 800 : i32
    %c0_i32_391 = arith.constant 0 : i32
    %559 = tpu.memref_slice %arg4[%c800_i32_390, %c0_i32_391] : memref<832x128xbf16, #tpu.memory_space<any>> -> memref<32x128xbf16, #tpu.memory_space<any>>
    %c0_i32_392 = arith.constant 0 : i32
    %c0_i32_393 = arith.constant 0 : i32
    %560 = tpu.memref_slice %arg9[%c1_i32_387, %c0_i32_392, %c0_i32_393] : memref<2x160x128xbf16, #tpu.memory_space<vmem>> -> memref<1x32x128xbf16, #tpu.memory_space<vmem>>
    %561 = tpu.memref_squeeze %560 : memref<1x32x128xbf16, #tpu.memory_space<vmem>> -> memref<32x128xbf16, #tpu.memory_space<vmem>>
    %562 = tpu.memref_slice %arg11[%c1_i32_388, %c1_i32_389] : memref<2x2x!tpu.dma_semaphore, #tpu.memory_space<semaphore_mem>> -> memref<1x1x!tpu.dma_semaphore, #tpu.memory_space<semaphore_mem>>
    %563 = tpu.memref_squeeze %562 : memref<1x1x!tpu.dma_semaphore, #tpu.memory_space<semaphore_mem>> -> memref<!tpu.dma_semaphore, #tpu.memory_space<semaphore_mem>>
    tpu.wait_dma2 semaphore(%563 : memref<!tpu.dma_semaphore, #tpu.memory_space<semaphore_mem>>) src(%559 : memref<32x128xbf16, #tpu.memory_space<any>>) dst(%561 : memref<32x128xbf16, #tpu.memory_space<vmem>>)
    %c1_394 = arith.constant 1 : index
    %c0_395 = arith.constant 0 : index
    %c0_396 = arith.constant 0 : index
    %564 = vector.load %arg9[%c1_394, %c0_395, %c0_396] : memref<2x160x128xbf16, #tpu.memory_space<vmem>>, vector<1x32x48xbf16>
    %565 = vector.shape_cast %564 : vector<1x32x48xbf16> to vector<32x48xbf16>
    %c13_397 = arith.constant 13 : index
    %c0_398 = arith.constant 0 : index
    %566 = vector.load %arg5[%c13_397, %c0_398] : memref<14x256xf32, #tpu.memory_space<vmem>>, vector<1x48xf32>
    %567 = arith.truncf %558 : vector<1x32xf32> to vector<1x32xbf16>
    %cst_399 = arith.constant dense<0.000000e+00> : vector<1x48xf32>
    %568 = tpu.matmul %567, %565, %cst_399 {dimension_numbers = #tpu.dot_dimension_numbers<[1], [0], [0], [1], [0, 0, 1, 1], [], []>} : vector<1x32xbf16>, vector<32x48xbf16>, vector<1x48xf32> -> vector<1x48xf32>
    %569 = arith.addf %568, %566 : vector<1x48xf32>
    %570 = vector.extract_strided_slice %569 {offsets = [0, 0], sizes = [1, 45], strides = [1, 1]} : vector<1x48xf32> to vector<1x45xf32>
    %c0_400 = arith.constant 0 : index
    %c0_401 = arith.constant 0 : index
    %571 = vector.load %arg6[%c0_400, %c0_401] : memref<1x45xf32, #tpu.memory_space<vmem>>, vector<1x45xf32>
    tpu.vector_store %arg6[%c0_400, %c0_401], %570 {strides = array<i32>} : memref<1x45xf32, #tpu.memory_space<vmem>>, vector<1x45xf32>,
    %c0_402 = arith.constant 0 : index
    %c0_403 = arith.constant 0 : index
    %572 = vector.load %arg10[%c0_402, %c0_403] : memref<48x48xf32, #tpu.memory_space<vmem>>, vector<48x48xf32>
    %cst_404 = arith.constant dense<0.000000e+00> : vector<1x48xf32>
    %573 = tpu.matmul %569, %572, %cst_404 {dimension_numbers = #tpu.dot_dimension_numbers<[1], [0], [0], [1], [0, 0, 1, 1], [], []>, precision = #tpu.contract_precision<fp32>} : vector<1x48xf32>, vector<48x48xf32>, vector<1x48xf32> -> vector<1x48xf32>
    %c0_405 = arith.constant 0 : index
    %c0_406 = arith.constant 0 : index
    %574 = vector.load %arg7[%c0_405, %c0_406] : memref<1x48xf32, #tpu.memory_space<vmem>>, vector<1x48xf32>
    tpu.vector_store %arg7[%c0_405, %c0_406], %573 {strides = array<i32>} : memref<1x48xf32, #tpu.memory_space<vmem>>, vector<1x48xf32>,
    return
  }
}

</mosaic_0001>

<llo_original>
// kernel: forward.1
$region0: #{forward.1}
  #allocation0 [shape = 'u32[]', space=smem, size = 0x4, offset = 0x4, fixed_abs, tag = 'smem constant byte address 0x4 - core index']
  #allocation1 [shape = 'u32[144,128]{1,0:T(1,128)}', space=vmem, size = 0x12000, scoped, tag = 'internal scratch']
  #allocation2 [shape = 'bf16[2,256,256]{2,1,0:T(8,128)(2,1)}', space=vmem, size = 0x40000, scoped, tag = 'scratch operand']
  #allocation3 [shape = 'bf16[2,160,128]{2,1,0:T(8,128)(2,1)}', space=vmem, size = 0x14000, scoped, tag = 'scratch operand']
  #allocation4 [shape = 'f32[48,48]{1,0:T(8,128)}', space=vmem, size = 0x6000, scoped, tag = 'scratch operand']
  #allocation5 [shape = 's32[4]{0}', space=sflag, size = 0x10, scoped, tag = 'scratch operand']
  #allocation12 [shape = 's32[]', space=sflag, size = 0x4, offset = 0, fixed_abs, tag = 'sflag constant byte address 0x0 - dummy sync flag']
  #allocation13 [shape = 's32[]', space=sflag, size = 0x4, offset = 0, fixed_abs, tag = 'sflag constant byte address 0x0 - dummy sync flag']
  #allocation14 [shape = 'u32[]', space=smem, size = 0x4, offset = 0x44, fixed_abs, tag = 'smem constant byte address 0x44 - assertion arg 0']
  #allocation15 [shape = 'u32[]', space=smem, size = 0x4, offset = 0x48, fixed_abs, tag = 'smem constant byte address 0x48 - assertion arg 1']
  #allocation16 [shape = 's32[]', space=sflag, size = 0x4, offset = 0, fixed_abs, tag = 'sflag constant byte address 0x0 - dummy sync flag']
  #allocation17 [shape = 's32[]', space=sflag, size = 0x4, offset = 0, fixed_abs, tag = 'sflag constant byte address 0x0 - dummy sync flag']
  #allocation18 [shape = 's32[]', space=sflag, size = 0x4, offset = 0, fixed_abs, tag = 'sflag constant byte address 0x0 - dummy sync flag']
  #allocation19 [shape = 's32[]', space=sflag, size = 0x4, offset = 0, fixed_abs, tag = 'sflag constant byte address 0x0 - dummy sync flag']
  #allocation20 [shape = 's32[]', space=sflag, size = 0x4, offset = 0, fixed_abs, tag = 'sflag constant byte address 0x0 - dummy sync flag']
  #allocation21 [shape = 's32[]', space=sflag, size = 0x4, offset = 0, fixed_abs, tag = 'sflag constant byte address 0x0 - dummy sync flag']
  #allocation22 [shape = 's32[]', space=sflag, size = 0x4, offset = 0, fixed_abs, tag = 'sflag constant byte address 0x0 - dummy sync flag']
  #allocation23 [shape = 's32[]', space=sflag, size = 0x4, offset = 0, fixed_abs, tag = 'sflag constant byte address 0x0 - dummy sync flag']
  #allocation24 [shape = 's32[]', space=sflag, size = 0x4, offset = 0, fixed_abs, tag = 'sflag constant byte address 0x0 - dummy sync flag']
  #allocation25 [shape = 's32[]', space=sflag, size = 0x4, offset = 0, fixed_abs, tag = 'sflag constant byte address 0x0 - dummy sync flag']
  #allocation26 [shape = 's32[]', space=sflag, size = 0x4, offset = 0, fixed_abs, tag = 'sflag constant byte address 0x0 - dummy sync flag']
  #allocation27 [shape = 's32[]', space=sflag, size = 0x4, offset = 0, fixed_abs, tag = 'sflag constant byte address 0x0 - dummy sync flag']
  #allocation28 [shape = 's32[]', space=sflag, size = 0x4, offset = 0, fixed_abs, tag = 'sflag constant byte address 0x0 - dummy sync flag']
  #allocation29 [shape = 's32[]', space=sflag, size = 0x4, offset = 0, fixed_abs, tag = 'sflag constant byte address 0x0 - dummy sync flag']
  #allocation30 [shape = 's32[]', space=sflag, size = 0x4, offset = 0, fixed_abs, tag = 'sflag constant byte address 0x0 - dummy sync flag']
  #allocation31 [shape = 's32[]', space=sflag, size = 0x4, offset = 0, fixed_abs, tag = 'sflag constant byte address 0x0 - dummy sync flag']
  #allocation32 [shape = 's32[]', space=sflag, size = 0x4, offset = 0, fixed_abs, tag = 'sflag constant byte address 0x0 - dummy sync flag']
  #allocation33 [shape = 's32[]', space=sflag, size = 0x4, offset = 0, fixed_abs, tag = 'sflag constant byte address 0x0 - dummy sync flag']
  #allocation34 [shape = 's32[]', space=sflag, size = 0x4, offset = 0, fixed_abs, tag = 'sflag constant byte address 0x0 - dummy sync flag']
  #allocation35 [shape = 's32[]', space=sflag, size = 0x4, offset = 0, fixed_abs, tag = 'sflag constant byte address 0x0 - dummy sync flag']
  #allocation36 [shape = 's32[]', space=sflag, size = 0x4, offset = 0, fixed_abs, tag = 'sflag constant byte address 0x0 - dummy sync flag']
  #allocation37 [shape = 's32[]', space=sflag, size = 0x4, offset = 0, fixed_abs, tag = 'sflag constant byte address 0x0 - dummy sync flag']
  #allocation38 [shape = 's32[]', space=sflag, size = 0x4, offset = 0, fixed_abs, tag = 'sflag constant byte address 0x0 - dummy sync flag']
  #allocation39 [shape = 's32[]', space=sflag, size = 0x4, offset = 0, fixed_abs, tag = 'sflag constant byte address 0x0 - dummy sync flag']
  #allocation40 [shape = 's32[]', space=sflag, size = 0x4, offset = 0, fixed_abs, tag = 'sflag constant byte address 0x0 - dummy sync flag']
  #allocation41 [shape = 's32[]', space=sflag, size = 0x4, offset = 0, fixed_abs, tag = 'sflag constant byte address 0x0 - dummy sync flag']
  %s0 = inlined_call_operand.vmem [shape: f32[1,48], index: 0, kind: input, shape index: {}]
  %s1 = inlined_call_operand.vmem [shape: f32[1,48], index: 1, kind: input, shape index: {}]
  %s2 = inlined_call_operand.vmem [shape: f32[1,96], index: 2, kind: input, shape index: {}]
  %s3 = inlined_call_operand.hbm [shape: bf16[768,256], index: 3, kind: input, shape index: {}]
  %s4 = inlined_call_operand.hbm [shape: bf16[832,128], index: 4, kind: input, shape index: {}]
  %s5 = inlined_call_operand.hbm [shape: f32[14,256], index: 5, kind: input, shape index: {}]
  %s6 = inlined_call_operand.hbm [shape: f32[1,45], index: 6, kind: output, shape index: {0}]
  %s7 = inlined_call_operand.hbm [shape: f32[1,48], index: 7, kind: output, shape index: {1}]
  %8 = xla_tuple %s6, %s7
  %s9 = sld [smem:[#allocation0]]
  $region94: #{forward.1} parent=0
    _
  %s11 = ssub.s32 1, %s9
  %s12 = scalar_select 0, %s11, %s9
  $region1: #{forward.1} parent=0
    #allocation6 [shape = 'u8[16384]{0}', space=vmem, size = 0x4000, scoped, tag = 'input window, operand 5, single buffered']
    #allocation7 [shape = 's32[1]{0}', space=sflag, size = 0x4, scoped, tag = 'scoped memory for forward.1']
    #allocation8 [shape = 's32[1]{0}', space=sflag, size = 0x4, scoped, tag = 'scoped memory for forward.1']
    #allocation9 [shape = 'u8[512]{0}', space=vmem, size = 0x400, scoped, tag = 'output window, operand 0, single buffered']
    #allocation10 [shape = 'u8[512]{0}', space=vmem, size = 0x400, scoped, tag = 'output window, operand 1, single buffered']
    #allocation11 [shape = 's32[1]{0}', space=sflag, size = 0x4, scoped, tag = 'scoped memory for forward.1']
    %13 = vsyncpa [#allocation7], 0
    %14 = vsyncpa [#allocation8], 0
    %15 = vsyncpa [#allocation11], 0
    // Predicated region
    $region2: #{forward.1} parent=1 // pred_check
      _
    $region3: #{forward.1} parent=1 // pred_check_branch
      %17 = sbr.rel (0) target = $region5
    $region4: #{forward.1} parent=1 // pred_region
      _
    $region5: #{forward.1} parent=1 // pred_fallthru
      _
    // Predicated region
    $region6: #{forward.1} parent=1 // pred_check
      _
    $region7: #{forward.1} parent=1 // pred_check_branch
      %19 = sbr.rel (0) target = $region9
    $region8: #{forward.1} parent=1 // pred_region
      _
    $region9: #{forward.1} parent=1 // pred_fallthru
      _
    // Predicated region
    $region10: #{forward.1} parent=1 // pred_check
      _
    $region11: #{forward.1} parent=1 // pred_check_branch
      %21 = sbr.rel (0) target = $region13
    $region12: #{forward.1} parent=1 // pred_region
      _
    $region13: #{forward.1} parent=1 // pred_fallthru
      _
    // Predicated region
    $region14: #{forward.1} parent=1 // pred_check
      _
    $region15: #{forward.1} parent=1 // pred_check_branch
      %23 = sbr.rel (0) target = $region17
    $region16: #{forward.1} parent=1 // pred_region
      %s25 = ssub.s32 512, 512
      %26 = vsyncadd [#allocation7], %s25
      %s27 = sshll.u32 [#allocation6], 4
      %s28 = int_to_ptr.vmem [resolvable:$true] %s27
      %33 = dma.hbm_to_vmem [thread:$0]  %s5, 512, %s28, [#allocation7], 256, 256, 16
    $region17: #{forward.1} parent=1 // pred_fallthru
      _
    // Predicated region
    $region18: #{forward.1} parent=1 // pred_check
      _
    $region19: #{forward.1} parent=1 // pred_check_branch
      %35 = sbr.rel (0) target = $region21
    $region20: #{forward.1} parent=1 // pred_region
      %36 = dma.done [#allocation7], 512
    $region21: #{forward.1} parent=1 // pred_fallthru
      _
    // Predicated region
    $region22: #{forward.1} parent=1 // pred_check
      _
    $region23: #{forward.1} parent=1 // pred_check_branch
      %39 = sbr.rel target = $region25
    $region24: #{forward.1} parent=1 // pred_region
      %40 = sst [smem:[#allocation14]] [#allocation13]
      %41 = sst [smem:[#allocation15]] [#allocation12]
    $region25: #{forward.1} parent=1 // pred_fallthru
      _
    %43 = shalt.err (0)
    %s45 = sshll.u32 [#allocation2], 4
    %s46 = int_to_ptr.vmem [resolvable:$true] %s45
    %48 = dma.hbm_to_vmem [thread:$0]  %s3, 1536, %s46, [#allocation5]
    %v49 = vld [vmem:[%s0] sm:$0x1]
    %v50 = vld [vmem:[%s1] sm:$0x1]
    %vm51 = vcmask 392192
    %52 = vst.msk [vmem:[#allocation4] sm:$0xff] %vm51, 0.0
    %53 = vst.msk [vmem:[#allocation4 + $0x8] sm:$0xff] %vm51, 0.0
    %54 = vst.msk [vmem:[#allocation4 + $0x10] sm:$0xff] %vm51, 0.0
    %55 = vst.msk [vmem:[#allocation4 + $0x18] sm:$0xff] %vm51, 0.0
    %56 = vst.msk [vmem:[#allocation4 + $0x20] sm:$0xff] %vm51, 0.0
    %57 = vst.msk [vmem:[#allocation4 + $0x28] sm:$0xff] %vm51, 0.0
    %v58 = vmul.f32 %v49, %v49
    %v59 = vmul.f32 %v50, %v50
    %v60 = vmul.f32 %v58, %v49
    %v61 = vmul.f32 %v59, %v50
    %v62 = vmul.f32 %v60, %v49
    %v63 = vmul.f32 %v61, %v50
    %v64 = vmul.f32 %v62, %v49
    %v65 = vmul.f32 %v63, %v50
    %v66 = vmul.f32 %v64, %v49
    %v67 = vmul.f32 %v65, %v50
    %v68 = vmul.f32 %v66, %v49
    %v69 = vmul.f32 %v67, %v50
    %v70 = vmul.f32 %v68, %v49
    %v71 = vmul.f32 %v69, %v50
    %vm72 = vcmask 385024
    %73 = vst.msk [vmem:[#allocation4] sm:$0x1] %vm72, %v50
    %74 = vst.msk [vmem:[#allocation4 + $0x1] sm:$0x1] %vm72, %v49
    %75 = vst.msk [vmem:[#allocation4 + $0x2] sm:$0x1] %vm72, %v59
    %v76 = vmul.f32 %v49, %v50
    %77 = vst.msk [vmem:[#allocation4 + $0x3] sm:$0x1] %vm72, %v76
    %78 = vst.msk [vmem:[#allocation4 + $0x4] sm:$0x1] %vm72, %v58
    %79 = vst.msk [vmem:[#allocation4 + $0x5] sm:$0x1] %vm72, %v61
    %v80 = vmul.f32 %v49, %v59
    %81 = vst.msk [vmem:[#allocation4 + $0x6] sm:$0x1] %vm72, %v80
    %v82 = vmul.f32 %v58, %v50
    %83 = vst.msk [vmem:[#allocation4 + $0x7] sm:$0x1] %vm72, %v82
    %84 = vst.msk [vmem:[#allocation4 + $0x8] sm:$0x1] %vm72, %v60
    %85 = vst.msk [vmem:[#allocation4 + $0x9] sm:$0x1] %vm72, %v63
    %v86 = vmul.f32 %v49, %v61
    %87 = vst.msk [vmem:[#allocation4 + $0xa] sm:$0x1] %vm72, %v86
    %v88 = vmul.f32 %v58, %v59
    %89 = vst.msk [vmem:[#allocation4 + $0xb] sm:$0x1] %vm72, %v88
    %v90 = vmul.f32 %v60, %v50
    %91 = vst.msk [vmem:[#allocation4 + $0xc] sm:$0x1] %vm72, %v90
    %92 = vst.msk [vmem:[#allocation4 + $0xd] sm:$0x1] %vm72, %v62
    %93 = vst.msk [vmem:[#allocation4 + $0xe] sm:$0x1] %vm72, %v65
    %v94 = vmul.f32 %v49, %v63
    %95 = vst.msk [vmem:[#allocation4 + $0xf] sm:$0x1] %vm72, %v94
    %v96 = vmul.f32 %v58, %v61
    %97 = vst.msk [vmem:[#allocation4 + $0x10] sm:$0x1] %vm72, %v96
    %v98 = vmul.f32 %v60, %v59
    %99 = vst.msk [vmem:[#allocation4 + $0x11] sm:$0x1] %vm72, %v98
    %v100 = vmul.f32 %v62, %v50
    %101 = vst.msk [vmem:[#allocation4 + $0x12] sm:$0x1] %vm72, %v100
    %102 = vst.msk [vmem:[#allocation4 + $0x13] sm:$0x1] %vm72, %v64
    %103 = vst.msk [vmem:[#allocation4 + $0x14] sm:$0x1] %vm72, %v67
    %v104 = vmul.f32 %v49, %v65
    %105 = vst.msk [vmem:[#allocation4 + $0x15] sm:$0x1] %vm72, %v104
    %v106 = vmul.f32 %v58, %v63
    %107 = vst.msk [vmem:[#allocation4 + $0x16] sm:$0x1] %vm72, %v106
    %v108 = vmul.f32 %v60, %v61
    %109 = vst.msk [vmem:[#allocation4 + $0x17] sm:$0x1] %vm72, %v108
    %v110 = vmul.f32 %v62, %v59
    %111 = vst.msk [vmem:[#allocation4 + $0x18] sm:$0x1] %vm72, %v110
    %v112 = vmul.f32 %v64, %v50
    %113 = vst.msk [vmem:[#allocation4 + $0x19] sm:$0x1] %vm72, %v112
    %114 = vst.msk [vmem:[#allocation4 + $0x1a] sm:$0x1] %vm72, %v66
    %115 = vst.msk [vmem:[#allocation4 + $0x1b] sm:$0x1] %vm72, %v69
    %v116 = vmul.f32 %v49, %v67
    %117 = vst.msk [vmem:[#allocation4 + $0x1c] sm:$0x1] %vm72, %v116
    %v118 = vmul.f32 %v58, %v65
    %119 = vst.msk [vmem:[#allocation4 + $0x1d] sm:$0x1] %vm72, %v118
    %v120 = vmul.f32 %v60, %v63
    %121 = vst.msk [vmem:[#allocation4 + $0x1e] sm:$0x1] %vm72, %v120
    %v122 = vmul.f32 %v62, %v61
    %123 = vst.msk [vmem:[#allocation4 + $0x1f] sm:$0x1] %vm72, %v122
    %v124 = vmul.f32 %v64, %v59
    %125 = vst.msk [vmem:[#allocation4 + $0x20] sm:$0x1] %vm72, %v124
    %v126 = vmul.f32 %v66, %v50
    %127 = vst.msk [vmem:[#allocation4 + $0x21] sm:$0x1] %vm72, %v126
    %128 = vst.msk [vmem:[#allocation4 + $0x22] sm:$0x1] %vm72, %v68
    %129 = vst.msk [vmem:[#allocation4 + $0x23] sm:$0x1] %vm72, %v71
    %v130 = vmul.f32 %v49, %v69
    %131 = vst.msk [vmem:[#allocation4 + $0x24] sm:$0x1] %vm72, %v130
    %v132 = vmul.f32 %v58, %v67
    %133 = vst.msk [vmem:[#allocation4 + $0x25] sm:$0x1] %vm72, %v132
    %v134 = vmul.f32 %v60, %v65
    %135 = vst.msk [vmem:[#allocation4 + $0x26] sm:$0x1] %vm72, %v134
    %v136 = vmul.f32 %v62, %v63
    %137 = vst.msk [vmem:[#allocation4 + $0x27] sm:$0x1] %vm72, %v136
    %v138 = vmul.f32 %v64, %v61
    %139 = vst.msk [vmem:[#allocation4 + $0x28] sm:$0x1] %vm72, %v138
    %v140 = vmul.f32 %v66, %v59
    %141 = vst.msk [vmem:[#allocation4 + $0x29] sm:$0x1] %vm72, %v140
    %v142 = vmul.f32 %v68, %v50
    %143 = vst.msk [vmem:[#allocation4 + $0x2a] sm:$0x1] %vm72, %v142
    %144 = vst.msk [vmem:[#allocation4 + $0x2b] sm:$0x1] %vm72, %v70
    %145 = vst.msk [vmem:[#allocation4 + $0x2c] sm:$0x1] %vm72, 1.0
    %v146 = vld [vmem:[%s2] sm:$0x1]
    %s147 = scalar_lea.hbm %s3, 1536
    %s148 = scalar_lea.vmem [#allocation2], 256
    %s149 = scalar_lea.sflag [#allocation5], 1
    // Predicated region
    $region26: #{forward.1} parent=1 // pred_check
      _
    $region27: #{forward.1} parent=1 // pred_check_branch
      %151 = sbr.rel target = $region29
    $region28: #{forward.1} parent=1 // pred_region
      %152 = sst [smem:[#allocation14]] [#allocation17]
      %153 = sst [smem:[#allocation15]] [#allocation16]
    $region29: #{forward.1} parent=1 // pred_fallthru
      _
    %155 = shalt.err (0)
    %s157 = sshll.u32 %s148, 4
    %s158 = int_to_ptr.vmem [resolvable:$true] %s157
    %160 = dma.hbm_to_vmem [thread:$0]  %s147, 4096, %s158, %s149
    %s161 = smul.u32 4, 12
    %s162 = smul.u32 %s161, 2
    %s163 = sshll.u32 %s162, 4
    %164 = dma.done [#allocation5], %s163
    %v165 = vld [vmem:[#allocation2] sm:$0xff]
    %v166 = vld [vmem:[#allocation2 + $0x8] sm:$0xff]
    %v167 = vld [vmem:[#allocation2 + $0x10] sm:$0xff]
    %v168 = vld [vmem:[#allocation2 + $0x18] sm:$0xff]
    %v169 = vld [vmem:[#allocation2 + $0x20] sm:$0xff]
    %v170 = vld [vmem:[#allocation2 + $0x28] sm:$0xff]
    %v171 = vld [vmem:[#allocation2 + $0x30] sm:$0xff]
    %v172 = vld [vmem:[#allocation2 + $0x38] sm:$0xff]
    %v173 = vld [vmem:[#allocation2 + $0x40] sm:$0xff]
    %v174 = vld [vmem:[#allocation2 + $0x48] sm:$0xff]
    %v175 = vld [vmem:[#allocation2 + $0x50] sm:$0xff]
    %v176 = vld [vmem:[#allocation2 + $0x58] sm:$0xff]
    %v177 = vld [vmem:[#allocation6] ss:$8 sm:$0x3]
    %v178 = vpack.c.bf16 %v146, %v146
    %v191 = vunpack.c.l.b16 %v165
    %v192 = vunpack.c.h.b16 %v165
    %v193 = vunpack.c.l.b16 %v166
    %v194 = vunpack.c.h.b16 %v166
    %v195 = vunpack.c.l.b16 %v167
    %v196 = vunpack.c.h.b16 %v167
    %v197 = vunpack.c.l.b16 %v168
    %v198 = vunpack.c.h.b16 %v168
    %v199 = vunpack.c.l.b16 %v169
    %v200 = vunpack.c.h.b16 %v169
    %v201 = vunpack.c.l.b16 %v170
    %v202 = vunpack.c.h.b16 %v170
    %v203 = vunpack.c.l.b16 %v171
    %v204 = vunpack.c.h.b16 %v171
    %v205 = vunpack.c.l.b16 %v172
    %v206 = vunpack.c.h.b16 %v172
    %v207 = vunpack.c.l.b16 %v173
    %v208 = vunpack.c.h.b16 %v173
    %v209 = vunpack.c.l.b16 %v174
    %v210 = vunpack.c.h.b16 %v174
    %v211 = vunpack.c.l.b16 %v175
    %v212 = vunpack.c.h.b16 %v175
    %v213 = vunpack.c.l.b16 %v176
    %v214 = vunpack.c.h.b16 %v176
    %v215 = vpack.c.b16 %v193, %v191
    %v216 = vpack.c.b16 %v194, %v192
    %v217 = vpack.c.b16 %v197, %v195
    %v218 = vpack.c.b16 %v198, %v196
    %v219 = vpack.c.b16 %v201, %v199
    %v220 = vpack.c.b16 %v202, %v200
    %v221 = vpack.c.b16 %v205, %v203
    %v222 = vpack.c.b16 %v206, %v204
    %v223 = vpack.c.b16 %v209, %v207
    %v224 = vpack.c.b16 %v210, %v208
    %v225 = vpack.c.b16 %v213, %v211
    %v226 = vpack.c.b16 %v214, %v212
    %v240 = vlaneseq
    %v241 = vshrl.u32 %v240, 7
    %v242 = vsub.s32 0, %v241
    %v243 = vrot.slane %v177, %v242
    %v244 = vlaneseq
    %v245 = vshrl.u32 %v244, 7
    %v246 = vsub.s32 1, %v245
    %v247 = vrot.slane %v177, %v246
    %vm250 = vcmask 785408
    %v252 = vsel %vm250, %v178, 0
    %254 = vmatprep.subr.bf16.mxu0 0
    %255 = vmatpush1.bf16.msra.mxu0 0
    %256 = vmatprep.subr.bf16.mxu0 0
    %257 = vmatpush1.bf16.msra.mxu0 0
    %258 = vmatprep.subr.bf16.mxu0 %v226
    %259 = vmatpush1.bf16.msra.mxu0 %v225
    %260 = vmatprep.subr.bf16.mxu0 %v224
    %261 = vmatpush1.bf16.msra.mxu0 %v223
    %262 = vmatprep.subr.bf16.mxu0 %v222
    %263 = vmatpush1.bf16.msra.mxu0 %v221
    %264 = vmatprep.subr.bf16.mxu0 %v220
    %265 = vmatpush1.bf16.msra.mxu0 %v219
    %266 = vmatprep.subr.bf16.mxu0 %v218
    %267 = vmatpush1.bf16.msra.mxu0 %v217
    %268 = vmatprep.subr.bf16.mxu0 %v216
    %269 = vmatpush1.bf16.msra.mxu0 %v215
    %270 = vmatprep.subr.bf16.mxu0 0
    %271 = vmatpush2.bf16.msra.mxu0 0
    %272 = vmatprep.subr.bf16.mxu0 0
    %273 = vmatpush2.bf16.msra.mxu0 0
    %274 = vmatprep.subr.bf16.mxu0 0
    %275 = vmatpush2.bf16.msra.mxu0 0
    %276 = vmatprep.subr.bf16.mxu0 0
    %277 = vmatpush2.bf16.msra.mxu0 0
    %278 = vmatprep.subr.bf16.mxu0 0
    %279 = vmatpush2.bf16.msra.mxu0 0
    %280 = vmatprep.subr.bf16.mxu0 0
    %281 = vmatpush2.bf16.msra.mxu0 0
    %282 = vmatprep.subr.bf16.mxu0 0
    %283 = vmatpush2.bf16.msra.mxu0 0
    %284 = vmatprep.subr.bf16.mxu0 0
    %285 = vmatpush2.bf16.msra.mxu0 0
    %286 = vmatprep.mubr.bf16.mxu0 0
    %287 = vmatmul.mubr.bf16.gmra.mxu0 %v252
    %v288 = vpop.f32.mrf.mxu0
    %v289 = vadd.f32 %v243, %v288
    %v290 = vpop.f32.mrf.mxu0
    %v291 = vadd.f32 %v247, %v290
    %v292 = vpop.f32.mrf.mxu0
    %v293 = vpop.f32.mrf.mxu0
    %294 = vdwg.mxu0
    %v295 = vmax.f32 %v289, 0.0
    %v296 = vmax.f32 %v291, 0.0
    %vm297 = vcmask 1040384
    %v298 = vsel %vm297, %v295, 0.0
    %v299 = vsel %vm297, %v296, 0.0
    %v300 = vadd.f32 %v298, %v299
    %301 = vadd.xlane.f32.xlu0 %v300
    %v302 = vpop.xlane.xlu0 %301
    %v303 = vrcp.pop 256.0
    %v304 = vmul.f32 %v302, %v303
    %v305 = vsub.f32 %v295, %v304
    %v306 = vsub.f32 %v296, %v304
    %v307 = vmul.f32 %v305, %v305
    %v308 = vmul.f32 %v306, %v306
    %v309 = vsel %vm297, %v307, 0.0
    %v310 = vsel %vm297, %v308, 0.0
    %v311 = vadd.f32 %v309, %v310
    %312 = vadd.xlane.f32.xlu0 %v311
    %v313 = vpop.xlane.xlu0 %312
    %v314 = vmul.f32 %v313, %v303
    %v315 = vadd.f32 %v314, 1e-05
    %v316 = vrsqrt.pop %v315
    %v317 = vmul.f32 %v305, %v316
    %v318 = vmul.f32 %v306, %v316
    %s319 = scalar_lea.hbm %s3, 5632
    // Predicated region
    $region30: #{forward.1} parent=1 // pred_check
      _
    $region31: #{forward.1} parent=1 // pred_check_branch
      %321 = sbr.rel target = $region33
    $region32: #{forward.1} parent=1 // pred_region
      %322 = sst [smem:[#allocation14]] [#allocation19]
      %323 = sst [smem:[#allocation15]] [#allocation18]
    $region33: #{forward.1} parent=1 // pred_fallthru
      _
    %325 = shalt.err (0)
    %s327 = sshll.u32 [#allocation2], 4
    %s328 = int_to_ptr.vmem [resolvable:$true] %s327
    %330 = dma.hbm_to_vmem [thread:$0]  %s319, 3584, %s328, [#allocation5]
    %s331 = smul.u32 4, 32
    %s332 = smul.u32 %s331, 2
    %s333 = sshll.u32 %s332, 4
    %334 = dma.done %s149, %s333
    %v335 = vld [vmem:[%s148] sm:$0xff]
    %v336 = vld [vmem:[%s148 + $0x8] sm:$0xff]
    %v337 = vld [vmem:[%s148 + $0x10] sm:$0xff]
    %v338 = vld [vmem:[%s148 + $0x18] sm:$0xff]
    %v339 = vld [vmem:[%s148 + $0x20] sm:$0xff]
    %v340 = vld [vmem:[%s148 + $0x28] sm:$0xff]
    %v341 = vld [vmem:[%s148 + $0x30] sm:$0xff]
    %v342 = vld [vmem:[%s148 + $0x38] sm:$0xff]
    %v343 = vld [vmem:[%s148 + $0x40] sm:$0xff]
    %v344 = vld [vmem:[%s148 + $0x48] sm:$0xff]
    %v345 = vld [vmem:[%s148 + $0x50] sm:$0xff]
    %v346 = vld [vmem:[%s148 + $0x58] sm:$0xff]
    %v347 = vld [vmem:[%s148 + $0x60] sm:$0xff]
    %v348 = vld [vmem:[%s148 + $0x68] sm:$0xff]
    %v349 = vld [vmem:[%s148 + $0x70] sm:$0xff]
    %v350 = vld [vmem:[%s148 + $0x78] sm:$0xff]
    %v351 = vld [vmem:[%s148 + $0x80] sm:$0xff]
    %v352 = vld [vmem:[%s148 + $0x88] sm:$0xff]
    %v353 = vld [vmem:[%s148 + $0x90] sm:$0xff]
    %v354 = vld [vmem:[%s148 + $0x98] sm:$0xff]
    %v355 = vld [vmem:[%s148 + $0xa0] sm:$0xff]
    %v356 = vld [vmem:[%s148 + $0xa8] sm:$0xff]
    %v357 = vld [vmem:[%s148 + $0xb0] sm:$0xff]
    %v358 = vld [vmem:[%s148 + $0xb8] sm:$0xff]
    %v359 = vld [vmem:[%s148 + $0xc0] sm:$0xff]
    %v360 = vld [vmem:[%s148 + $0xc8] sm:$0xff]
    %v361 = vld [vmem:[%s148 + $0xd0] sm:$0xff]
    %v362 = vld [vmem:[%s148 + $0xd8] sm:$0xff]
    %v363 = vld [vmem:[%s148 + $0xe0] sm:$0xff]
    %v364 = vld [vmem:[%s148 + $0xe8] sm:$0xff]
    %v365 = vld [vmem:[%s148 + $0xf0] sm:$0xff]
    %v366 = vld [vmem:[%s148 + $0xf8] sm:$0xff]
    %s367 = scalar_lea.vmem [#allocation6], 1
    %v368 = vld [vmem:[%s367] ss:$8 sm:$0x3]
    %v369 = vpack.c.bf16 %v317, %v317
    %v370 = vpack.c.bf16 %v318, %v318
    %v403 = vunpack.c.l.b16 %v335
    %v404 = vunpack.c.h.b16 %v335
    %v405 = vunpack.c.l.b16 %v336
    %v406 = vunpack.c.h.b16 %v336
    %v407 = vunpack.c.l.b16 %v337
    %v408 = vunpack.c.h.b16 %v337
    %v409 = vunpack.c.l.b16 %v338
    %v410 = vunpack.c.h.b16 %v338
    %v411 = vunpack.c.l.b16 %v339
    %v412 = vunpack.c.h.b16 %v339
    %v413 = vunpack.c.l.b16 %v340
    %v414 = vunpack.c.h.b16 %v340
    %v415 = vunpack.c.l.b16 %v341
    %v416 = vunpack.c.h.b16 %v341
    %v417 = vunpack.c.l.b16 %v342
    %v418 = vunpack.c.h.b16 %v342
    %v419 = vunpack.c.l.b16 %v343
    %v420 = vunpack.c.h.b16 %v343
    %v421 = vunpack.c.l.b16 %v344
    %v422 = vunpack.c.h.b16 %v344
    %v423 = vunpack.c.l.b16 %v345
    %v424 = vunpack.c.h.b16 %v345
    %v425 = vunpack.c.l.b16 %v346
    %v426 = vunpack.c.h.b16 %v346
    %v427 = vunpack.c.l.b16 %v347
    %v428 = vunpack.c.h.b16 %v347
    %v429 = vunpack.c.l.b16 %v348
    %v430 = vunpack.c.h.b16 %v348
    %v431 = vunpack.c.l.b16 %v349
    %v432 = vunpack.c.h.b16 %v349
    %v433 = vunpack.c.l.b16 %v350
    %v434 = vunpack.c.h.b16 %v350
    %v435 = vunpack.c.l.b16 %v351
    %v436 = vunpack.c.h.b16 %v351
    %v437 = vunpack.c.l.b16 %v352
    %v438 = vunpack.c.h.b16 %v352
    %v439 = vunpack.c.l.b16 %v353
    %v440 = vunpack.c.h.b16 %v353
    %v441 = vunpack.c.l.b16 %v354
    %v442 = vunpack.c.h.b16 %v354
    %v443 = vunpack.c.l.b16 %v355
    %v444 = vunpack.c.h.b16 %v355
    %v445 = vunpack.c.l.b16 %v356
    %v446 = vunpack.c.h.b16 %v356
    %v447 = vunpack.c.l.b16 %v357
    %v448 = vunpack.c.h.b16 %v357
    %v449 = vunpack.c.l.b16 %v358
    %v450 = vunpack.c.h.b16 %v358
    %v451 = vunpack.c.l.b16 %v359
    %v452 = vunpack.c.h.b16 %v359
    %v453 = vunpack.c.l.b16 %v360
    %v454 = vunpack.c.h.b16 %v360
    %v455 = vunpack.c.l.b16 %v361
    %v456 = vunpack.c.h.b16 %v361
    %v457 = vunpack.c.l.b16 %v362
    %v458 = vunpack.c.h.b16 %v362
    %v459 = vunpack.c.l.b16 %v363
    %v460 = vunpack.c.h.b16 %v363
    %v461 = vunpack.c.l.b16 %v364
    %v462 = vunpack.c.h.b16 %v364
    %v463 = vunpack.c.l.b16 %v365
    %v464 = vunpack.c.h.b16 %v365
    %v465 = vunpack.c.l.b16 %v366
    %v466 = vunpack.c.h.b16 %v366
    %v467 = vpack.c.b16 %v405, %v403
    %v468 = vpack.c.b16 %v406, %v404
    %v469 = vpack.c.b16 %v409, %v407
    %v470 = vpack.c.b16 %v410, %v408
    %v471 = vpack.c.b16 %v413, %v411
    %v472 = vpack.c.b16 %v414, %v412
    %v473 = vpack.c.b16 %v417, %v415
    %v474 = vpack.c.b16 %v418, %v416
    %v475 = vpack.c.b16 %v421, %v419
    %v476 = vpack.c.b16 %v422, %v420
    %v477 = vpack.c.b16 %v425, %v423
    %v478 = vpack.c.b16 %v426, %v424
    %v479 = vpack.c.b16 %v429, %v427
    %v480 = vpack.c.b16 %v430, %v428
    %v481 = vpack.c.b16 %v433, %v431
    %v482 = vpack.c.b16 %v434, %v432
    %v483 = vpack.c.b16 %v437, %v435
    %v484 = vpack.c.b16 %v438, %v436
    %v485 = vpack.c.b16 %v441, %v439
    %v486 = vpack.c.b16 %v442, %v440
    %v487 = vpack.c.b16 %v445, %v443
    %v488 = vpack.c.b16 %v446, %v444
    %v489 = vpack.c.b16 %v449, %v447
    %v490 = vpack.c.b16 %v450, %v448
    %v491 = vpack.c.b16 %v453, %v451
    %v492 = vpack.c.b16 %v454, %v452
    %v493 = vpack.c.b16 %v457, %v455
    %v494 = vpack.c.b16 %v458, %v456
    %v495 = vpack.c.b16 %v461, %v459
    %v496 = vpack.c.b16 %v462, %v460
    %v497 = vpack.c.b16 %v465, %v463
    %v498 = vpack.c.b16 %v466, %v464
    %v532 = vlaneseq
    %v533 = vshrl.u32 %v532, 7
    %v534 = vsub.s32 0, %v533
    %v535 = vrot.slane %v368, %v534
    %v536 = vlaneseq
    %v537 = vshrl.u32 %v536, 7
    %v538 = vsub.s32 1, %v537
    %v539 = vrot.slane %v368, %v538
    %542 = vmatprep.subr.bf16.mxu0 %v482
    %543 = vmatpush1.bf16.msra.mxu0 %v481
    %544 = vmatprep.subr.bf16.mxu0 %v480
    %545 = vmatpush1.bf16.msra.mxu0 %v479
    %546 = vmatprep.subr.bf16.mxu0 %v478
    %547 = vmatpush1.bf16.msra.mxu0 %v477
    %548 = vmatprep.subr.bf16.mxu0 %v476
    %549 = vmatpush1.bf16.msra.mxu0 %v475
    %550 = vmatprep.subr.bf16.mxu0 %v474
    %551 = vmatpush1.bf16.msra.mxu0 %v473
    %552 = vmatprep.subr.bf16.mxu0 %v472
    %553 = vmatpush1.bf16.msra.mxu0 %v471
    %554 = vmatprep.subr.bf16.mxu0 %v470
    %555 = vmatpush1.bf16.msra.mxu0 %v469
    %556 = vmatprep.subr.bf16.mxu0 %v468
    %557 = vmatpush1.bf16.msra.mxu0 %v467
    %558 = vmatprep.subr.bf16.mxu0 %v498
    %559 = vmatpush2.bf16.msra.mxu0 %v497
    %560 = vmatprep.subr.bf16.mxu0 %v496
    %561 = vmatpush2.bf16.msra.mxu0 %v495
    %562 = vmatprep.subr.bf16.mxu0 %v494
    %563 = vmatpush2.bf16.msra.mxu0 %v493
    %564 = vmatprep.subr.bf16.mxu0 %v492
    %565 = vmatpush2.bf16.msra.mxu0 %v491
    %566 = vmatprep.subr.bf16.mxu0 %v490
    %567 = vmatpush2.bf16.msra.mxu0 %v489
    %568 = vmatprep.subr.bf16.mxu0 %v488
    %569 = vmatpush2.bf16.msra.mxu0 %v487
    %570 = vmatprep.subr.bf16.mxu0 %v486
    %571 = vmatpush2.bf16.msra.mxu0 %v485
    %572 = vmatprep.subr.bf16.mxu0 %v484
    %573 = vmatpush2.bf16.msra.mxu0 %v483
    %574 = vmatprep.mubr.bf16.mxu0 %v370
    %575 = vmatmul.mubr.bf16.gmra.mxu0 %v369
    %v576 = vpop.f32.mrf.mxu0
    %v577 = vadd.f32 %v535, %v576
    %v578 = vpop.f32.mrf.mxu0
    %v579 = vadd.f32 %v539, %v578
    %v580 = vpop.f32.mrf.mxu0
    %v581 = vpop.f32.mrf.mxu0
    %582 = vdwg.mxu0
    %v583 = vmax.f32 %v577, 0.0
    %v584 = vmax.f32 %v579, 0.0
    %v585 = vsel %vm297, %v583, 0.0
    %vm586 = vcmask 778240
    %v587 = vsel %vm586, %v584, 0.0
    %v588 = vadd.f32 %v585, %v587
    %589 = vadd.xlane.f32.xlu0 %v588
    %v590 = vpop.xlane.xlu0 %589
    %v591 = vrcp.pop 224.0
    %v592 = vmul.f32 %v590, %v591
    %v593 = vsub.f32 %v583, %v592
    %v594 = vsub.f32 %v584, %v592
    %v595 = vmul.f32 %v593, %v593
    %v596 = vmul.f32 %v594, %v594
    %v597 = vsel %vm297, %v595, 0.0
    %v598 = vsel %vm586, %v596, 0.0
    %v599 = vadd.f32 %v597, %v598
    %600 = vadd.xlane.f32.xlu0 %v599
    %v601 = vpop.xlane.xlu0 %600
    %v602 = vmul.f32 %v601, %v591
    %v603 = vadd.f32 %v602, 1e-05
    %v604 = vrsqrt.pop %v603
    %v605 = vmul.f32 %v593, %v604
    %v606 = vmul.f32 %v594, %v604
    %s607 = scalar_lea.hbm %s3, 9216
    // Predicated region
    $region34: #{forward.1} parent=1 // pred_check
      _
    $region35: #{forward.1} parent=1 // pred_check_branch
      %609 = sbr.rel target = $region37
    $region36: #{forward.1} parent=1 // pred_region
      %610 = sst [smem:[#allocation14]] [#allocation21]
      %611 = sst [smem:[#allocation15]] [#allocation20]
    $region37: #{forward.1} parent=1 // pred_fallthru
      _
    %613 = shalt.err (0)
    %s615 = sshll.u32 %s148, 4
    %s616 = int_to_ptr.vmem [resolvable:$true] %s615
    %618 = dma.hbm_to_vmem [thread:$0]  %s607, 3072, %s616, %s149
    %s619 = smul.u32 4, 28
    %s620 = smul.u32 %s619, 2
    %s621 = sshll.u32 %s620, 4
    %622 = dma.done [#allocation5], %s621
    %v623 = vld [vmem:[#allocation2] sm:$0xff]
    %v624 = vld [vmem:[#allocation2 + $0x8] sm:$0xff]
    %v625 = vld [vmem:[#allocation2 + $0x10] sm:$0xff]
    %v626 = vld [vmem:[#allocation2 + $0x18] sm:$0xff]
    %v627 = vld [vmem:[#allocation2 + $0x20] sm:$0xff]
    %v628 = vld [vmem:[#allocation2 + $0x28] sm:$0xff]
    %v629 = vld [vmem:[#allocation2 + $0x30] sm:$0xff]
    %v630 = vld [vmem:[#allocation2 + $0x38] sm:$0xff]
    %v631 = vld [vmem:[#allocation2 + $0x40] sm:$0xff]
    %v632 = vld [vmem:[#allocation2 + $0x48] sm:$0xff]
    %v633 = vld [vmem:[#allocation2 + $0x50] sm:$0xff]
    %v634 = vld [vmem:[#allocation2 + $0x58] sm:$0xff]
    %v635 = vld [vmem:[#allocation2 + $0x60] sm:$0xff]
    %v636 = vld [vmem:[#allocation2 + $0x68] sm:$0xff]
    %v637 = vld [vmem:[#allocation2 + $0x70] sm:$0xff]
    %v638 = vld [vmem:[#allocation2 + $0x78] sm:$0xff]
    %v639 = vld [vmem:[#allocation2 + $0x80] sm:$0xff]
    %v640 = vld [vmem:[#allocation2 + $0x88] sm:$0xff]
    %v641 = vld [vmem:[#allocation2 + $0x90] sm:$0xff]
    %v642 = vld [vmem:[#allocation2 + $0x98] sm:$0xff]
    %v643 = vld [vmem:[#allocation2 + $0xa0] sm:$0xff]
    %v644 = vld [vmem:[#allocation2 + $0xa8] sm:$0xff]
    %v645 = vld [vmem:[#allocation2 + $0xb0] sm:$0xff]
    %v646 = vld [vmem:[#allocation2 + $0xb8] sm:$0xff]
    %v647 = vld [vmem:[#allocation2 + $0xc0] sm:$0xff]
    %v648 = vld [vmem:[#allocation2 + $0xc8] sm:$0xff]
    %v649 = vld [vmem:[#allocation2 + $0xd0] sm:$0xff]
    %v650 = vld [vmem:[#allocation2 + $0xd8] sm:$0xff]
    %s651 = scalar_lea.vmem [#allocation6], 2
    %v652 = vld [vmem:[%s651] ss:$8 sm:$0x3]
    %v653 = vpack.c.bf16 %v605, %v605
    %v654 = vpack.c.bf16 %v606, %v606
    %v683 = vunpack.c.l.b16 %v623
    %v684 = vunpack.c.h.b16 %v623
    %v685 = vunpack.c.l.b16 %v624
    %v686 = vunpack.c.h.b16 %v624
    %v687 = vunpack.c.l.b16 %v625
    %v688 = vunpack.c.h.b16 %v625
    %v689 = vunpack.c.l.b16 %v626
    %v690 = vunpack.c.h.b16 %v626
    %v691 = vunpack.c.l.b16 %v627
    %v692 = vunpack.c.h.b16 %v627
    %v693 = vunpack.c.l.b16 %v628
    %v694 = vunpack.c.h.b16 %v628
    %v695 = vunpack.c.l.b16 %v629
    %v696 = vunpack.c.h.b16 %v629
    %v697 = vunpack.c.l.b16 %v630
    %v698 = vunpack.c.h.b16 %v630
    %v699 = vunpack.c.l.b16 %v631
    %v700 = vunpack.c.h.b16 %v631
    %v701 = vunpack.c.l.b16 %v632
    %v702 = vunpack.c.h.b16 %v632
    %v703 = vunpack.c.l.b16 %v633
    %v704 = vunpack.c.h.b16 %v633
    %v705 = vunpack.c.l.b16 %v634
    %v706 = vunpack.c.h.b16 %v634
    %v707 = vunpack.c.l.b16 %v635
    %v708 = vunpack.c.h.b16 %v635
    %v709 = vunpack.c.l.b16 %v636
    %v710 = vunpack.c.h.b16 %v636
    %v711 = vunpack.c.l.b16 %v637
    %v712 = vunpack.c.h.b16 %v637
    %v713 = vunpack.c.l.b16 %v638
    %v714 = vunpack.c.h.b16 %v638
    %v715 = vunpack.c.l.b16 %v639
    %v716 = vunpack.c.h.b16 %v639
    %v717 = vunpack.c.l.b16 %v640
    %v718 = vunpack.c.h.b16 %v640
    %v719 = vunpack.c.l.b16 %v641
    %v720 = vunpack.c.h.b16 %v641
    %v721 = vunpack.c.l.b16 %v642
    %v722 = vunpack.c.h.b16 %v642
    %v723 = vunpack.c.l.b16 %v643
    %v724 = vunpack.c.h.b16 %v643
    %v725 = vunpack.c.l.b16 %v644
    %v726 = vunpack.c.h.b16 %v644
    %v727 = vunpack.c.l.b16 %v645
    %v728 = vunpack.c.h.b16 %v645
    %v729 = vunpack.c.l.b16 %v646
    %v730 = vunpack.c.h.b16 %v646
    %v731 = vunpack.c.l.b16 %v647
    %v732 = vunpack.c.h.b16 %v647
    %v733 = vunpack.c.l.b16 %v648
    %v734 = vunpack.c.h.b16 %v648
    %v735 = vunpack.c.l.b16 %v649
    %v736 = vunpack.c.h.b16 %v649
    %v737 = vunpack.c.l.b16 %v650
    %v738 = vunpack.c.h.b16 %v650
    %v739 = vpack.c.b16 %v685, %v683
    %v740 = vpack.c.b16 %v686, %v684
    %v741 = vpack.c.b16 %v689, %v687
    %v742 = vpack.c.b16 %v690, %v688
    %v743 = vpack.c.b16 %v693, %v691
    %v744 = vpack.c.b16 %v694, %v692
    %v745 = vpack.c.b16 %v697, %v695
    %v746 = vpack.c.b16 %v698, %v696
    %v747 = vpack.c.b16 %v701, %v699
    %v748 = vpack.c.b16 %v702, %v700
    %v749 = vpack.c.b16 %v705, %v703
    %v750 = vpack.c.b16 %v706, %v704
    %v751 = vpack.c.b16 %v709, %v707
    %v752 = vpack.c.b16 %v710, %v708
    %v753 = vpack.c.b16 %v713, %v711
    %v754 = vpack.c.b16 %v714, %v712
    %v755 = vpack.c.b16 %v717, %v715
    %v756 = vpack.c.b16 %v718, %v716
    %v757 = vpack.c.b16 %v721, %v719
    %v758 = vpack.c.b16 %v722, %v720
    %v759 = vpack.c.b16 %v725, %v723
    %v760 = vpack.c.b16 %v726, %v724
    %v761 = vpack.c.b16 %v729, %v727
    %v762 = vpack.c.b16 %v730, %v728
    %v763 = vpack.c.b16 %v733, %v731
    %v764 = vpack.c.b16 %v734, %v732
    %v765 = vpack.c.b16 %v737, %v735
    %v766 = vpack.c.b16 %v738, %v736
    %v796 = vlaneseq
    %v797 = vshrl.u32 %v796, 7
    %v798 = vsub.s32 0, %v797
    %v799 = vrot.slane %v652, %v798
    %v800 = vlaneseq
    %v801 = vshrl.u32 %v800, 7
    %v802 = vsub.s32 1, %v801
    %v803 = vrot.slane %v652, %v802
    %v807 = vsel %vm250, %v654, 0
    %809 = vmatprep.subr.bf16.mxu0 %v754
    %810 = vmatpush1.bf16.msra.mxu0 %v753
    %811 = vmatprep.subr.bf16.mxu0 %v752
    %812 = vmatpush1.bf16.msra.mxu0 %v751
    %813 = vmatprep.subr.bf16.mxu0 %v750
    %814 = vmatpush1.bf16.msra.mxu0 %v749
    %815 = vmatprep.subr.bf16.mxu0 %v748
    %816 = vmatpush1.bf16.msra.mxu0 %v747
    %817 = vmatprep.subr.bf16.mxu0 %v746
    %818 = vmatpush1.bf16.msra.mxu0 %v745
    %819 = vmatprep.subr.bf16.mxu0 %v744
    %820 = vmatpush1.bf16.msra.mxu0 %v743
    %821 = vmatprep.subr.bf16.mxu0 %v742
    %822 = vmatpush1.bf16.msra.mxu0 %v741
    %823 = vmatprep.subr.bf16.mxu0 %v740
    %824 = vmatpush1.bf16.msra.mxu0 %v739
    %825 = vmatprep.subr.bf16.mxu0 0
    %826 = vmatpush2.bf16.msra.mxu0 0
    %827 = vmatprep.subr.bf16.mxu0 0
    %828 = vmatpush2.bf16.msra.mxu0 0
    %829 = vmatprep.subr.bf16.mxu0 %v766
    %830 = vmatpush2.bf16.msra.mxu0 %v765
    %831 = vmatprep.subr.bf16.mxu0 %v764
    %832 = vmatpush2.bf16.msra.mxu0 %v763
    %833 = vmatprep.subr.bf16.mxu0 %v762
    %834 = vmatpush2.bf16.msra.mxu0 %v761
    %835 = vmatprep.subr.bf16.mxu0 %v760
    %836 = vmatpush2.bf16.msra.mxu0 %v759
    %837 = vmatprep.subr.bf16.mxu0 %v758
    %838 = vmatpush2.bf16.msra.mxu0 %v757
    %839 = vmatprep.subr.bf16.mxu0 %v756
    %840 = vmatpush2.bf16.msra.mxu0 %v755
    %841 = vmatprep.mubr.bf16.mxu0 %v807
    %842 = vmatmul.mubr.bf16.gmra.mxu0 %v653
    %v843 = vpop.f32.mrf.mxu0
    %v844 = vadd.f32 %v799, %v843
    %v845 = vpop.f32.mrf.mxu0
    %v846 = vadd.f32 %v803, %v845
    %v847 = vpop.f32.mrf.mxu0
    %v848 = vpop.f32.mrf.mxu0
    %849 = vdwg.mxu0
    %v850 = vmax.f32 %v844, 0.0
    %v851 = vmax.f32 %v846, 0.0
    %v852 = vsel %vm297, %v850, 0.0
    %vm853 = vcmask 516096
    %v854 = vsel %vm853, %v851, 0.0
    %v855 = vadd.f32 %v852, %v854
    %856 = vadd.xlane.f32.xlu0 %v855
    %v857 = vpop.xlane.xlu0 %856
    %v858 = vrcp.pop 192.0
    %v859 = vmul.f32 %v857, %v858
    %v860 = vsub.f32 %v850, %v859
    %v861 = vsub.f32 %v851, %v859
    %v862 = vmul.f32 %v860, %v860
    %v863 = vmul.f32 %v861, %v861
    %v864 = vsel %vm297, %v862, 0.0
    %v865 = vsel %vm853, %v863, 0.0
    %v866 = vadd.f32 %v864, %v865
    %867 = vadd.xlane.f32.xlu0 %v866
    %v868 = vpop.xlane.xlu0 %867
    %v869 = vmul.f32 %v868, %v858
    %v870 = vadd.f32 %v869, 1e-05
    %v871 = vrsqrt.pop %v870
    %v872 = vmul.f32 %v860, %v871
    %v873 = vmul.f32 %v861, %v871
    %s874 = scalar_lea.sflag [#allocation5], 2
    // Predicated region
    $region38: #{forward.1} parent=1 // pred_check
      _
    $region39: #{forward.1} parent=1 // pred_check_branch
      %876 = sbr.rel target = $region41
    $region40: #{forward.1} parent=1 // pred_region
      %877 = sst [smem:[#allocation14]] [#allocation23]
      %878 = sst [smem:[#allocation15]] [#allocation22]
    $region41: #{forward.1} parent=1 // pred_fallthru
      _
    %880 = shalt.err (0)
    %s882 = sshll.u32 [#allocation3], 4
    %s883 = int_to_ptr.vmem [resolvable:$true] %s882
    %885 = dma.hbm_to_vmem [thread:$0]  %s4, 1280, %s883, %s874
    %s886 = smul.u32 4, 24
    %s887 = smul.u32 %s886, 2
    %s888 = sshll.u32 %s887, 4
    %889 = dma.done %s149, %s888
    %v890 = vld [vmem:[%s148] sm:$0xff]
    %v891 = vld [vmem:[%s148 + $0x8] sm:$0xff]
    %v892 = vld [vmem:[%s148 + $0x10] sm:$0xff]
    %v893 = vld [vmem:[%s148 + $0x18] sm:$0xff]
    %v894 = vld [vmem:[%s148 + $0x20] sm:$0xff]
    %v895 = vld [vmem:[%s148 + $0x28] sm:$0xff]
    %v896 = vld [vmem:[%s148 + $0x30] sm:$0xff]
    %v897 = vld [vmem:[%s148 + $0x38] sm:$0xff]
    %v898 = vld [vmem:[%s148 + $0x40] sm:$0xff]
    %v899 = vld [vmem:[%s148 + $0x48] sm:$0xff]
    %v900 = vld [vmem:[%s148 + $0x50] sm:$0xff]
    %v901 = vld [vmem:[%s148 + $0x58] sm:$0xff]
    %v902 = vld [vmem:[%s148 + $0x60] sm:$0xff]
    %v903 = vld [vmem:[%s148 + $0x68] sm:$0xff]
    %v904 = vld [vmem:[%s148 + $0x70] sm:$0xff]
    %v905 = vld [vmem:[%s148 + $0x78] sm:$0xff]
    %v906 = vld [vmem:[%s148 + $0x80] sm:$0xff]
    %v907 = vld [vmem:[%s148 + $0x88] sm:$0xff]
    %v908 = vld [vmem:[%s148 + $0x90] sm:$0xff]
    %v909 = vld [vmem:[%s148 + $0x98] sm:$0xff]
    %v910 = vld [vmem:[%s148 + $0xa0] sm:$0xff]
    %v911 = vld [vmem:[%s148 + $0xa8] sm:$0xff]
    %v912 = vld [vmem:[%s148 + $0xb0] sm:$0xff]
    %v913 = vld [vmem:[%s148 + $0xb8] sm:$0xff]
    %s914 = scalar_lea.vmem [#allocation6], 3
    %v915 = vld [vmem:[%s914] ss:$8 sm:$0x3]
    %v916 = vpack.c.bf16 %v872, %v872
    %v917 = vpack.c.bf16 %v873, %v873
    %v942 = vunpack.c.l.b16 %v890
    %v943 = vunpack.c.h.b16 %v890
    %v944 = vunpack.c.l.b16 %v891
    %v945 = vunpack.c.h.b16 %v891
    %v946 = vunpack.c.l.b16 %v892
    %v947 = vunpack.c.h.b16 %v892
    %v948 = vunpack.c.l.b16 %v893
    %v949 = vunpack.c.h.b16 %v893
    %v950 = vunpack.c.l.b16 %v894
    %v951 = vunpack.c.h.b16 %v894
    %v952 = vunpack.c.l.b16 %v895
    %v953 = vunpack.c.h.b16 %v895
    %v954 = vunpack.c.l.b16 %v896
    %v955 = vunpack.c.h.b16 %v896
    %v956 = vunpack.c.l.b16 %v897
    %v957 = vunpack.c.h.b16 %v897
    %v958 = vunpack.c.l.b16 %v898
    %v959 = vunpack.c.h.b16 %v898
    %v960 = vunpack.c.l.b16 %v899
    %v961 = vunpack.c.h.b16 %v899
    %v962 = vunpack.c.l.b16 %v900
    %v963 = vunpack.c.h.b16 %v900
    %v964 = vunpack.c.l.b16 %v901
    %v965 = vunpack.c.h.b16 %v901
    %v966 = vunpack.c.l.b16 %v902
    %v967 = vunpack.c.h.b16 %v902
    %v968 = vunpack.c.l.b16 %v903
    %v969 = vunpack.c.h.b16 %v903
    %v970 = vunpack.c.l.b16 %v904
    %v971 = vunpack.c.h.b16 %v904
    %v972 = vunpack.c.l.b16 %v905
    %v973 = vunpack.c.h.b16 %v905
    %v974 = vunpack.c.l.b16 %v906
    %v975 = vunpack.c.h.b16 %v906
    %v976 = vunpack.c.l.b16 %v907
    %v977 = vunpack.c.h.b16 %v907
    %v978 = vunpack.c.l.b16 %v908
    %v979 = vunpack.c.h.b16 %v908
    %v980 = vunpack.c.l.b16 %v909
    %v981 = vunpack.c.h.b16 %v909
    %v982 = vunpack.c.l.b16 %v910
    %v983 = vunpack.c.h.b16 %v910
    %v984 = vunpack.c.l.b16 %v911
    %v985 = vunpack.c.h.b16 %v911
    %v986 = vunpack.c.l.b16 %v912
    %v987 = vunpack.c.h.b16 %v912
    %v988 = vunpack.c.l.b16 %v913
    %v989 = vunpack.c.h.b16 %v913
    %v990 = vpack.c.b16 %v944, %v942
    %v991 = vpack.c.b16 %v945, %v943
    %v992 = vpack.c.b16 %v948, %v946
    %v993 = vpack.c.b16 %v949, %v947
    %v994 = vpack.c.b16 %v952, %v950
    %v995 = vpack.c.b16 %v953, %v951
    %v996 = vpack.c.b16 %v956, %v954
    %v997 = vpack.c.b16 %v957, %v955
    %v998 = vpack.c.b16 %v960, %v958
    %v999 = vpack.c.b16 %v961, %v959
    %v1000 = vpack.c.b16 %v964, %v962
    %v1001 = vpack.c.b16 %v965, %v963
    %v1002 = vpack.c.b16 %v968, %v966
    %v1003 = vpack.c.b16 %v969, %v967
    %v1004 = vpack.c.b16 %v972, %v970
    %v1005 = vpack.c.b16 %v973, %v971
    %v1006 = vpack.c.b16 %v976, %v974
    %v1007 = vpack.c.b16 %v977, %v975
    %v1008 = vpack.c.b16 %v980, %v978
    %v1009 = vpack.c.b16 %v981, %v979
    %v1010 = vpack.c.b16 %v984, %v982
    %v1011 = vpack.c.b16 %v985, %v983
    %v1012 = vpack.c.b16 %v988, %v986
    %v1013 = vpack.c.b16 %v989, %v987
    %v1039 = vlaneseq
    %v1040 = vshrl.u32 %v1039, 7
    %v1041 = vsub.s32 0, %v1040
    %v1042 = vrot.slane %v915, %v1041
    %v1043 = vlaneseq
    %v1044 = vshrl.u32 %v1043, 7
    %v1045 = vsub.s32 1, %v1044
    %v1046 = vrot.slane %v915, %v1045
    %vm1049 = vcmask 523264
    %v1051 = vsel %vm1049, %v917, 0
    %1053 = vmatprep.subr.bf16.mxu0 %v1005
    %1054 = vmatpush1.bf16.msra.mxu0 %v1004
    %1055 = vmatprep.subr.bf16.mxu0 %v1003
    %1056 = vmatpush1.bf16.msra.mxu0 %v1002
    %1057 = vmatprep.subr.bf16.mxu0 %v1001
    %1058 = vmatpush1.bf16.msra.mxu0 %v1000
    %1059 = vmatprep.subr.bf16.mxu0 %v999
    %1060 = vmatpush1.bf16.msra.mxu0 %v998
    %1061 = vmatprep.subr.bf16.mxu0 %v997
    %1062 = vmatpush1.bf16.msra.mxu0 %v996
    %1063 = vmatprep.subr.bf16.mxu0 %v995
    %1064 = vmatpush1.bf16.msra.mxu0 %v994
    %1065 = vmatprep.subr.bf16.mxu0 %v993
    %1066 = vmatpush1.bf16.msra.mxu0 %v992
    %1067 = vmatprep.subr.bf16.mxu0 %v991
    %1068 = vmatpush1.bf16.msra.mxu0 %v990
    %1069 = vmatprep.subr.bf16.mxu0 0
    %1070 = vmatpush2.bf16.msra.mxu0 0
    %1071 = vmatprep.subr.bf16.mxu0 0
    %1072 = vmatpush2.bf16.msra.mxu0 0
    %1073 = vmatprep.subr.bf16.mxu0 0
    %1074 = vmatpush2.bf16.msra.mxu0 0
    %1075 = vmatprep.subr.bf16.mxu0 0
    %1076 = vmatpush2.bf16.msra.mxu0 0
    %1077 = vmatprep.subr.bf16.mxu0 %v1013
    %1078 = vmatpush2.bf16.msra.mxu0 %v1012
    %1079 = vmatprep.subr.bf16.mxu0 %v1011
    %1080 = vmatpush2.bf16.msra.mxu0 %v1010
    %1081 = vmatprep.subr.bf16.mxu0 %v1009
    %1082 = vmatpush2.bf16.msra.mxu0 %v1008
    %1083 = vmatprep.subr.bf16.mxu0 %v1007
    %1084 = vmatpush2.bf16.msra.mxu0 %v1006
    %1085 = vmatprep.mubr.bf16.mxu0 %v1051
    %1086 = vmatmul.mubr.bf16.gmra.mxu0 %v916
    %v1087 = vpop.f32.mrf.mxu0
    %v1088 = vadd.f32 %v1042, %v1087
    %v1089 = vpop.f32.mrf.mxu0
    %v1090 = vadd.f32 %v1046, %v1089
    %v1091 = vpop.f32.mrf.mxu0
    %v1092 = vpop.f32.mrf.mxu0
    %1093 = vdwg.mxu0
    %v1094 = vmax.f32 %v1088, 0.0
    %v1095 = vmax.f32 %v1090, 0.0
    %v1096 = vsel %vm297, %v1094, 0.0
    %vm1097 = vcmask 253952
    %v1098 = vsel %vm1097, %v1095, 0.0
    %v1099 = vadd.f32 %v1096, %v1098
    %1100 = vadd.xlane.f32.xlu0 %v1099
    %v1101 = vpop.xlane.xlu0 %1100
    %v1102 = vrcp.pop 160.0
    %v1103 = vmul.f32 %v1101, %v1102
    %v1104 = vsub.f32 %v1094, %v1103
    %v1105 = vsub.f32 %v1095, %v1103
    %v1106 = vmul.f32 %v1104, %v1104
    %v1107 = vmul.f32 %v1105, %v1105
    %v1108 = vsel %vm297, %v1106, 0.0
    %v1109 = vsel %vm1097, %v1107, 0.0
    %v1110 = vadd.f32 %v1108, %v1109
    %1111 = vadd.xlane.f32.xlu0 %v1110
    %v1112 = vpop.xlane.xlu0 %1111
    %v1113 = vmul.f32 %v1112, %v1102
    %v1114 = vadd.f32 %v1113, 1e-05
    %v1115 = vrsqrt.pop %v1114
    %v1116 = vmul.f32 %v1104, %v1115
    %v1117 = vmul.f32 %v1105, %v1115
    %s1118 = scalar_lea.hbm %s4, 1280
    %s1119 = scalar_lea.vmem [#allocation3], 80
    %s1120 = scalar_lea.sflag [#allocation5], 3
    // Predicated region
    $region42: #{forward.1} parent=1 // pred_check
      _
    $region43: #{forward.1} parent=1 // pred_check_branch
      %1122 = sbr.rel target = $region45
    $region44: #{forward.1} parent=1 // pred_region
      %1123 = sst [smem:[#allocation14]] [#allocation25]
      %1124 = sst [smem:[#allocation15]] [#allocation24]
    $region45: #{forward.1} parent=1 // pred_fallthru
      _
    %1126 = shalt.err (0)
    %s1128 = sshll.u32 %s1119, 4
    %s1129 = int_to_ptr.vmem [resolvable:$true] %s1128
    %1131 = dma.hbm_to_vmem [thread:$0]  %s1118, 1024, %s1129, %s1120
    %s1132 = smul.u32 4, 20
    %s1133 = smul.u32 %s1132, 1
    %s1134 = sshll.u32 %s1133, 4
    %1135 = dma.done %s874, %s1134
    %v1136 = vld [vmem:[#allocation3] sm:$0xf]
    %v1137 = vld [vmem:[#allocation3 + $0x4] sm:$0xf]
    %v1138 = vld [vmem:[#allocation3 + $0x8] sm:$0xf]
    %v1139 = vld [vmem:[#allocation3 + $0xc] sm:$0xf]
    %v1140 = vld [vmem:[#allocation3 + $0x10] sm:$0xf]
    %v1141 = vld [vmem:[#allocation3 + $0x14] sm:$0xf]
    %v1142 = vld [vmem:[#allocation3 + $0x18] sm:$0xf]
    %v1143 = vld [vmem:[#allocation3 + $0x1c] sm:$0xf]
    %v1144 = vld [vmem:[#allocation3 + $0x20] sm:$0xf]
    %v1145 = vld [vmem:[#allocation3 + $0x24] sm:$0xf]
    %v1146 = vld [vmem:[#allocation3 + $0x28] sm:$0xf]
    %v1147 = vld [vmem:[#allocation3 + $0x2c] sm:$0xf]
    %v1148 = vld [vmem:[#allocation3 + $0x30] sm:$0xf]
    %v1149 = vld [vmem:[#allocation3 + $0x34] sm:$0xf]
    %v1150 = vld [vmem:[#allocation3 + $0x38] sm:$0xf]
    %v1151 = vld [vmem:[#allocation3 + $0x3c] sm:$0xf]
    %v1152 = vld [vmem:[#allocation3 + $0x40] sm:$0xf]
    %v1153 = vld [vmem:[#allocation3 + $0x44] sm:$0xf]
    %v1154 = vld [vmem:[#allocation3 + $0x48] sm:$0xf]
    %v1155 = vld [vmem:[#allocation3 + $0x4c] sm:$0xf]
    %v1156 = vld [vmem:[#allocation6 + $0x4] ss:$0 sm:$0xff]
    %v1157 = vpack.c.bf16 %v1116, %v1116
    %v1158 = vpack.c.bf16 %v1117, %v1117
    %v1179 = vunpack.c.l.b16 %v1136
    %v1180 = vunpack.c.l.b16 %v1137
    %v1181 = vunpack.c.l.b16 %v1138
    %v1182 = vunpack.c.l.b16 %v1139
    %v1183 = vunpack.c.l.b16 %v1140
    %v1184 = vunpack.c.l.b16 %v1141
    %v1185 = vunpack.c.l.b16 %v1142
    %v1186 = vunpack.c.l.b16 %v1143
    %v1187 = vunpack.c.l.b16 %v1144
    %v1188 = vunpack.c.l.b16 %v1145
    %v1189 = vunpack.c.l.b16 %v1146
    %v1190 = vunpack.c.l.b16 %v1147
    %v1191 = vunpack.c.l.b16 %v1148
    %v1192 = vunpack.c.l.b16 %v1149
    %v1193 = vunpack.c.l.b16 %v1150
    %v1194 = vunpack.c.l.b16 %v1151
    %v1195 = vunpack.c.l.b16 %v1152
    %v1196 = vunpack.c.l.b16 %v1153
    %v1197 = vunpack.c.l.b16 %v1154
    %v1198 = vunpack.c.l.b16 %v1155
    %v1199 = vpack.c.b16 %v1180, %v1179
    %v1200 = vpack.c.b16 %v1182, %v1181
    %v1201 = vpack.c.b16 %v1184, %v1183
    %v1202 = vpack.c.b16 %v1186, %v1185
    %v1203 = vpack.c.b16 %v1188, %v1187
    %v1204 = vpack.c.b16 %v1190, %v1189
    %v1205 = vpack.c.b16 %v1192, %v1191
    %v1206 = vpack.c.b16 %v1194, %v1193
    %v1207 = vpack.c.b16 %v1196, %v1195
    %v1208 = vpack.c.b16 %v1198, %v1197
    %vm1219 = vcmask 261120
    %v1221 = vsel %vm1219, %v1158, 0
    %1223 = vmatprep.subr.bf16.mxu0 0
    %1224 = vmatpush1.bf16.msra.mxu0 %v1206
    %1225 = vmatprep.subr.bf16.mxu0 0
    %1226 = vmatpush1.bf16.msra.mxu0 %v1205
    %1227 = vmatprep.subr.bf16.mxu0 0
    %1228 = vmatpush1.bf16.msra.mxu0 %v1204
    %1229 = vmatprep.subr.bf16.mxu0 0
    %1230 = vmatpush1.bf16.msra.mxu0 %v1203
    %1231 = vmatprep.subr.bf16.mxu0 0
    %1232 = vmatpush1.bf16.msra.mxu0 %v1202
    %1233 = vmatprep.subr.bf16.mxu0 0
    %1234 = vmatpush1.bf16.msra.mxu0 %v1201
    %1235 = vmatprep.subr.bf16.mxu0 0
    %1236 = vmatpush1.bf16.msra.mxu0 %v1200
    %1237 = vmatprep.subr.bf16.mxu0 0
    %1238 = vmatpush1.bf16.msra.mxu0 %v1199
    %1239 = vmatprep.subr.bf16.mxu0 0
    %1240 = vmatpush2.bf16.msra.mxu0 0
    %1241 = vmatprep.subr.bf16.mxu0 0
    %1242 = vmatpush2.bf16.msra.mxu0 0
    %1243 = vmatprep.subr.bf16.mxu0 0
    %1244 = vmatpush2.bf16.msra.mxu0 0
    %1245 = vmatprep.subr.bf16.mxu0 0
    %1246 = vmatpush2.bf16.msra.mxu0 0
    %1247 = vmatprep.subr.bf16.mxu0 0
    %1248 = vmatpush2.bf16.msra.mxu0 0
    %1249 = vmatprep.subr.bf16.mxu0 0
    %1250 = vmatpush2.bf16.msra.mxu0 0
    %1251 = vmatprep.subr.bf16.mxu0 0
    %1252 = vmatpush2.bf16.msra.mxu0 %v1208
    %1253 = vmatprep.subr.bf16.mxu0 0
    %1254 = vmatpush2.bf16.msra.mxu0 %v1207
    %1255 = vmatprep.mubr.bf16.mxu0 %v1221
    %1256 = vmatmul.mubr.bf16.gmra.mxu0 %v1157
    %v1257 = vpop.f32.mrf.mxu0
    %v1258 = vadd.f32 %v1156, %v1257
    %v1259 = vpop.f32.mrf.mxu0
    %v1260 = vpop.f32.mrf.mxu0
    %v1261 = vpop.f32.mrf.mxu0
    %1262 = vdwg.mxu0
    %v1263 = vmax.f32 %v1258, 0.0
    %v1264 = vsel %vm297, %v1263, 0.0
    %1265 = vadd.xlane.f32.xlu0 %v1264
    %v1266 = vpop.xlane.xlu0 %1265
    %v1267 = vrcp.pop 128.0
    %v1268 = vmul.f32 %v1266, %v1267
    %v1269 = vsub.f32 %v1263, %v1268
    %v1270 = vmul.f32 %v1269, %v1269
    %v1271 = vsel %vm297, %v1270, 0.0
    %1272 = vadd.xlane.f32.xlu0 %v1271
    %v1273 = vpop.xlane.xlu0 %1272
    %v1274 = vmul.f32 %v1273, %v1267
    %v1275 = vadd.f32 %v1274, 1e-05
    %v1276 = vrsqrt.pop %v1275
    %v1277 = vmul.f32 %v1269, %v1276
    %s1278 = scalar_lea.hbm %s4, 2304
    // Predicated region
    $region46: #{forward.1} parent=1 // pred_check
      _
    $region47: #{forward.1} parent=1 // pred_check_branch
      %1280 = sbr.rel target = $region49
    $region48: #{forward.1} parent=1 // pred_region
      %1281 = sst [smem:[#allocation14]] [#allocation27]
      %1282 = sst [smem:[#allocation15]] [#allocation26]
    $region49: #{forward.1} parent=1 // pred_fallthru
      _
    %1284 = shalt.err (0)
    %s1286 = sshll.u32 [#allocation3], 4
    %s1287 = int_to_ptr.vmem [resolvable:$true] %s1286
    %1289 = dma.hbm_to_vmem [thread:$0]  %s1278, 896, %s1287, %s874
    %s1290 = smul.u32 4, 16
    %s1291 = smul.u32 %s1290, 1
    %s1292 = sshll.u32 %s1291, 4
    %1293 = dma.done %s1120, %s1292
    %v1294 = vld [vmem:[%s1119] sm:$0xf]
    %v1295 = vld [vmem:[%s1119 + $0x4] sm:$0xf]
    %v1296 = vld [vmem:[%s1119 + $0x8] sm:$0xf]
    %v1297 = vld [vmem:[%s1119 + $0xc] sm:$0xf]
    %v1298 = vld [vmem:[%s1119 + $0x10] sm:$0xf]
    %v1299 = vld [vmem:[%s1119 + $0x14] sm:$0xf]
    %v1300 = vld [vmem:[%s1119 + $0x18] sm:$0xf]
    %v1301 = vld [vmem:[%s1119 + $0x1c] sm:$0xf]
    %v1302 = vld [vmem:[%s1119 + $0x20] sm:$0xf]
    %v1303 = vld [vmem:[%s1119 + $0x24] sm:$0xf]
    %v1304 = vld [vmem:[%s1119 + $0x28] sm:$0xf]
    %v1305 = vld [vmem:[%s1119 + $0x2c] sm:$0xf]
    %v1306 = vld [vmem:[%s1119 + $0x30] sm:$0xf]
    %v1307 = vld [vmem:[%s1119 + $0x34] sm:$0xf]
    %v1308 = vld [vmem:[%s1119 + $0x38] sm:$0xf]
    %v1309 = vld [vmem:[%s1119 + $0x3c] sm:$0xf]
    %v1310 = vld [vmem:[#allocation6 + $0x5] ss:$0 sm:$0xff]
    %v1311 = vpack.c.bf16 %v1277, %v1277
    %v1328 = vunpack.c.l.b16 %v1294
    %v1329 = vunpack.c.l.b16 %v1295
    %v1330 = vunpack.c.l.b16 %v1296
    %v1331 = vunpack.c.l.b16 %v1297
    %v1332 = vunpack.c.l.b16 %v1298
    %v1333 = vunpack.c.l.b16 %v1299
    %v1334 = vunpack.c.l.b16 %v1300
    %v1335 = vunpack.c.l.b16 %v1301
    %v1336 = vunpack.c.l.b16 %v1302
    %v1337 = vunpack.c.l.b16 %v1303
    %v1338 = vunpack.c.l.b16 %v1304
    %v1339 = vunpack.c.l.b16 %v1305
    %v1340 = vunpack.c.l.b16 %v1306
    %v1341 = vunpack.c.l.b16 %v1307
    %v1342 = vunpack.c.l.b16 %v1308
    %v1343 = vunpack.c.l.b16 %v1309
    %v1344 = vpack.c.b16 %v1329, %v1328
    %v1345 = vpack.c.b16 %v1331, %v1330
    %v1346 = vpack.c.b16 %v1333, %v1332
    %v1347 = vpack.c.b16 %v1335, %v1334
    %v1348 = vpack.c.b16 %v1337, %v1336
    %v1349 = vpack.c.b16 %v1339, %v1338
    %v1350 = vpack.c.b16 %v1341, %v1340
    %v1351 = vpack.c.b16 %v1343, %v1342
    %1360 = vmatprep.subr.bf16.mxu0 0
    %1361 = vmatpush1.bf16.msra.mxu0 %v1351
    %1362 = vmatprep.subr.bf16.mxu0 0
    %1363 = vmatpush1.bf16.msra.mxu0 %v1350
    %1364 = vmatprep.subr.bf16.mxu0 0
    %1365 = vmatpush1.bf16.msra.mxu0 %v1349
    %1366 = vmatprep.subr.bf16.mxu0 0
    %1367 = vmatpush1.bf16.msra.mxu0 %v1348
    %1368 = vmatprep.subr.bf16.mxu0 0
    %1369 = vmatpush1.bf16.msra.mxu0 %v1347
    %1370 = vmatprep.subr.bf16.mxu0 0
    %1371 = vmatpush1.bf16.msra.mxu0 %v1346
    %1372 = vmatprep.subr.bf16.mxu0 0
    %1373 = vmatpush1.bf16.msra.mxu0 %v1345
    %1374 = vmatprep.subr.bf16.mxu0 0
    %1375 = vmatpush1.bf16.msra.mxu0 %v1344
    %1376 = vmatprep.subr.bf16.mxu0 0
    %1377 = vmatpush2.bf16.msra.mxu0 0
    %1378 = vmatprep.subr.bf16.mxu0 0
    %1379 = vmatpush2.bf16.msra.mxu0 0
    %1380 = vmatprep.subr.bf16.mxu0 0
    %1381 = vmatpush2.bf16.msra.mxu0 0
    %1382 = vmatprep.subr.bf16.mxu0 0
    %1383 = vmatpush2.bf16.msra.mxu0 0
    %1384 = vmatprep.subr.bf16.mxu0 0
    %1385 = vmatpush2.bf16.msra.mxu0 0
    %1386 = vmatprep.subr.bf16.mxu0 0
    %1387 = vmatpush2.bf16.msra.mxu0 0
    %1388 = vmatprep.subr.bf16.mxu0 0
    %1389 = vmatpush2.bf16.msra.mxu0 0
    %1390 = vmatprep.subr.bf16.mxu0 0
    %1391 = vmatpush2.bf16.msra.mxu0 0
    %1392 = vmatprep.mubr.bf16.mxu0 0
    %1393 = vmatmul.mubr.bf16.gmra.mxu0 %v1311
    %v1394 = vpop.f32.mrf.mxu0
    %v1395 = vadd.f32 %v1310, %v1394
    %v1396 = vpop.f32.mrf.mxu0
    %v1397 = vpop.f32.mrf.mxu0
    %v1398 = vpop.f32.mrf.mxu0
    %1399 = vdwg.mxu0
    %v1400 = vmax.f32 %v1395, 0.0
    %vm1401 = vcmask 909312
    %v1402 = vsel %vm1401, %v1400, 0.0
    %1403 = vadd.xlane.f32.xlu0 %v1402
    %v1404 = vpop.xlane.xlu0 %1403
    %v1405 = vrcp.pop 112.0
    %v1406 = vmul.f32 %v1404, %v1405
    %v1407 = vsub.f32 %v1400, %v1406
    %v1408 = vmul.f32 %v1407, %v1407
    %v1409 = vsel %vm1401, %v1408, 0.0
    %1410 = vadd.xlane.f32.xlu0 %v1409
    %v1411 = vpop.xlane.xlu0 %1410
    %v1412 = vmul.f32 %v1411, %v1405
    %v1413 = vadd.f32 %v1412, 1e-05
    %v1414 = vrsqrt.pop %v1413
    %v1415 = vmul.f32 %v1407, %v1414
    %s1416 = scalar_lea.hbm %s4, 3200
    // Predicated region
    $region50: #{forward.1} parent=1 // pred_check
      _
    $region51: #{forward.1} parent=1 // pred_check_branch
      %1418 = sbr.rel target = $region53
    $region52: #{forward.1} parent=1 // pred_region
      %1419 = sst [smem:[#allocation14]] [#allocation29]
      %1420 = sst [smem:[#allocation15]] [#allocation28]
    $region53: #{forward.1} parent=1 // pred_fallthru
      _
    %1422 = shalt.err (0)
    %s1424 = sshll.u32 %s1119, 4
    %s1425 = int_to_ptr.vmem [resolvable:$true] %s1424
    %1427 = dma.hbm_to_vmem [thread:$0]  %s1416, 768, %s1425, %s1120
    %s1428 = smul.u32 4, 14
    %s1429 = smul.u32 %s1428, 1
    %s1430 = sshll.u32 %s1429, 4
    %1431 = dma.done %s874, %s1430
    %v1432 = vld [vmem:[#allocation3] sm:$0xf]
    %v1433 = vld [vmem:[#allocation3 + $0x4] sm:$0xf]
    %v1434 = vld [vmem:[#allocation3 + $0x8] sm:$0xf]
    %v1435 = vld [vmem:[#allocation3 + $0xc] sm:$0xf]
    %v1436 = vld [vmem:[#allocation3 + $0x10] sm:$0xf]
    %v1437 = vld [vmem:[#allocation3 + $0x14] sm:$0xf]
    %v1438 = vld [vmem:[#allocation3 + $0x18] sm:$0xf]
    %v1439 = vld [vmem:[#allocation3 + $0x1c] sm:$0xf]
    %v1440 = vld [vmem:[#allocation3 + $0x20] sm:$0xf]
    %v1441 = vld [vmem:[#allocation3 + $0x24] sm:$0xf]
    %v1442 = vld [vmem:[#allocation3 + $0x28] sm:$0xf]
    %v1443 = vld [vmem:[#allocation3 + $0x2c] sm:$0xf]
    %v1444 = vld [vmem:[#allocation3 + $0x30] sm:$0xf]
    %v1445 = vld [vmem:[#allocation3 + $0x34] sm:$0xf]
    %v1446 = vld [vmem:[#allocation6 + $0x6] ss:$0 sm:$0xff]
    %v1447 = vpack.c.bf16 %v1415, %v1415
    %v1462 = vunpack.c.l.b16 %v1432
    %v1463 = vunpack.c.l.b16 %v1433
    %v1464 = vunpack.c.l.b16 %v1434
    %v1465 = vunpack.c.l.b16 %v1435
    %v1466 = vunpack.c.l.b16 %v1436
    %v1467 = vunpack.c.l.b16 %v1437
    %v1468 = vunpack.c.l.b16 %v1438
    %v1469 = vunpack.c.l.b16 %v1439
    %v1470 = vunpack.c.l.b16 %v1440
    %v1471 = vunpack.c.l.b16 %v1441
    %v1472 = vunpack.c.l.b16 %v1442
    %v1473 = vunpack.c.l.b16 %v1443
    %v1474 = vunpack.c.l.b16 %v1444
    %v1475 = vunpack.c.l.b16 %v1445
    %v1476 = vpack.c.b16 %v1463, %v1462
    %v1477 = vpack.c.b16 %v1465, %v1464
    %v1478 = vpack.c.b16 %v1467, %v1466
    %v1479 = vpack.c.b16 %v1469, %v1468
    %v1480 = vpack.c.b16 %v1471, %v1470
    %v1481 = vpack.c.b16 %v1473, %v1472
    %v1482 = vpack.c.b16 %v1475, %v1474
    %vm1490 = vcmask 916480
    %v1492 = vsel %vm1490, %v1447, 0
    %1494 = vmatprep.subr.bf16.mxu0 0
    %1495 = vmatpush1.bf16.msra.mxu0 0
    %1496 = vmatprep.subr.bf16.mxu0 0
    %1497 = vmatpush1.bf16.msra.mxu0 %v1482
    %1498 = vmatprep.subr.bf16.mxu0 0
    %1499 = vmatpush1.bf16.msra.mxu0 %v1481
    %1500 = vmatprep.subr.bf16.mxu0 0
    %1501 = vmatpush1.bf16.msra.mxu0 %v1480
    %1502 = vmatprep.subr.bf16.mxu0 0
    %1503 = vmatpush1.bf16.msra.mxu0 %v1479
    %1504 = vmatprep.subr.bf16.mxu0 0
    %1505 = vmatpush1.bf16.msra.mxu0 %v1478
    %1506 = vmatprep.subr.bf16.mxu0 0
    %1507 = vmatpush1.bf16.msra.mxu0 %v1477
    %1508 = vmatprep.subr.bf16.mxu0 0
    %1509 = vmatpush1.bf16.msra.mxu0 %v1476
    %1510 = vmatprep.subr.bf16.mxu0 0
    %1511 = vmatpush2.bf16.msra.mxu0 0
    %1512 = vmatprep.subr.bf16.mxu0 0
    %1513 = vmatpush2.bf16.msra.mxu0 0
    %1514 = vmatprep.subr.bf16.mxu0 0
    %1515 = vmatpush2.bf16.msra.mxu0 0
    %1516 = vmatprep.subr.bf16.mxu0 0
    %1517 = vmatpush2.bf16.msra.mxu0 0
    %1518 = vmatprep.subr.bf16.mxu0 0
    %1519 = vmatpush2.bf16.msra.mxu0 0
    %1520 = vmatprep.subr.bf16.mxu0 0
    %1521 = vmatpush2.bf16.msra.mxu0 0
    %1522 = vmatprep.subr.bf16.mxu0 0
    %1523 = vmatpush2.bf16.msra.mxu0 0
    %1524 = vmatprep.subr.bf16.mxu0 0
    %1525 = vmatpush2.bf16.msra.mxu0 0
    %1526 = vmatprep.mubr.bf16.mxu0 0
    %1527 = vmatmul.mubr.bf16.gmra.mxu0 %v1492
    %v1528 = vpop.f32.mrf.mxu0
    %v1529 = vadd.f32 %v1446, %v1528
    %v1530 = vpop.f32.mrf.mxu0
    %v1531 = vpop.f32.mrf.mxu0
    %v1532 = vpop.f32.mrf.mxu0
    %1533 = vdwg.mxu0
    %v1534 = vmax.f32 %v1529, 0.0
    %v1535 = vsel %vm586, %v1534, 0.0
    %1536 = vadd.xlane.f32.xlu0 %v1535
    %v1537 = vpop.xlane.xlu0 %1536
    %v1538 = vrcp.pop 96.0
    %v1539 = vmul.f32 %v1537, %v1538
    %v1540 = vsub.f32 %v1534, %v1539
    %v1541 = vmul.f32 %v1540, %v1540
    %v1542 = vsel %vm586, %v1541, 0.0
    %1543 = vadd.xlane.f32.xlu0 %v1542
    %v1544 = vpop.xlane.xlu0 %1543
    %v1545 = vmul.f32 %v1544, %v1538
    %v1546 = vadd.f32 %v1545, 1e-05
    %v1547 = vrsqrt.pop %v1546
    %v1548 = vmul.f32 %v1540, %v1547
    %s1549 = scalar_lea.hbm %s4, 3968
    // Predicated region
    $region54: #{forward.1} parent=1 // pred_check
      _
    $region55: #{forward.1} parent=1 // pred_check_branch
      %1551 = sbr.rel target = $region57
    $region56: #{forward.1} parent=1 // pred_region
      %1552 = sst [smem:[#allocation14]] [#allocation31]
      %1553 = sst [smem:[#allocation15]] [#allocation30]
    $region57: #{forward.1} parent=1 // pred_fallthru
      _
    %1555 = shalt.err (0)
    %s1557 = sshll.u32 [#allocation3], 4
    %s1558 = int_to_ptr.vmem [resolvable:$true] %s1557
    %1560 = dma.hbm_to_vmem [thread:$0]  %s1549, 640, %s1558, %s874
    %s1561 = smul.u32 %s161, 1
    %s1562 = sshll.u32 %s1561, 4
    %1563 = dma.done %s1120, %s1562
    %v1564 = vld [vmem:[%s1119] sm:$0xf]
    %v1565 = vld [vmem:[%s1119 + $0x4] sm:$0xf]
    %v1566 = vld [vmem:[%s1119 + $0x8] sm:$0xf]
    %v1567 = vld [vmem:[%s1119 + $0xc] sm:$0xf]
    %v1568 = vld [vmem:[%s1119 + $0x10] sm:$0xf]
    %v1569 = vld [vmem:[%s1119 + $0x14] sm:$0xf]
    %v1570 = vld [vmem:[%s1119 + $0x18] sm:$0xf]
    %v1571 = vld [vmem:[%s1119 + $0x1c] sm:$0xf]
    %v1572 = vld [vmem:[%s1119 + $0x20] sm:$0xf]
    %v1573 = vld [vmem:[%s1119 + $0x24] sm:$0xf]
    %v1574 = vld [vmem:[%s1119 + $0x28] sm:$0xf]
    %v1575 = vld [vmem:[%s1119 + $0x2c] sm:$0xf]
    %v1576 = vld [vmem:[#allocation6 + $0x7] ss:$0 sm:$0xff]
    %v1577 = vpack.c.bf16 %v1548, %v1548
    %v1590 = vunpack.c.l.b16 %v1564
    %v1591 = vunpack.c.l.b16 %v1565
    %v1592 = vunpack.c.l.b16 %v1566
    %v1593 = vunpack.c.l.b16 %v1567
    %v1594 = vunpack.c.l.b16 %v1568
    %v1595 = vunpack.c.l.b16 %v1569
    %v1596 = vunpack.c.l.b16 %v1570
    %v1597 = vunpack.c.l.b16 %v1571
    %v1598 = vunpack.c.l.b16 %v1572
    %v1599 = vunpack.c.l.b16 %v1573
    %v1600 = vunpack.c.l.b16 %v1574
    %v1601 = vunpack.c.l.b16 %v1575
    %v1602 = vpack.c.b16 %v1591, %v1590
    %v1603 = vpack.c.b16 %v1593, %v1592
    %v1604 = vpack.c.b16 %v1595, %v1594
    %v1605 = vpack.c.b16 %v1597, %v1596
    %v1606 = vpack.c.b16 %v1599, %v1598
    %v1607 = vpack.c.b16 %v1601, %v1600
    %v1615 = vsel %vm250, %v1577, 0
    %1617 = vmatprep.subr.bf16.mxu0 0
    %1618 = vmatpush1.bf16.msra.mxu0 0
    %1619 = vmatprep.subr.bf16.mxu0 0
    %1620 = vmatpush1.bf16.msra.mxu0 0
    %1621 = vmatprep.subr.bf16.mxu0 0
    %1622 = vmatpush1.bf16.msra.mxu0 %v1607
    %1623 = vmatprep.subr.bf16.mxu0 0
    %1624 = vmatpush1.bf16.msra.mxu0 %v1606
    %1625 = vmatprep.subr.bf16.mxu0 0
    %1626 = vmatpush1.bf16.msra.mxu0 %v1605
    %1627 = vmatprep.subr.bf16.mxu0 0
    %1628 = vmatpush1.bf16.msra.mxu0 %v1604
    %1629 = vmatprep.subr.bf16.mxu0 0
    %1630 = vmatpush1.bf16.msra.mxu0 %v1603
    %1631 = vmatprep.subr.bf16.mxu0 0
    %1632 = vmatpush1.bf16.msra.mxu0 %v1602
    %1633 = vmatprep.subr.bf16.mxu0 0
    %1634 = vmatpush2.bf16.msra.mxu0 0
    %1635 = vmatprep.subr.bf16.mxu0 0
    %1636 = vmatpush2.bf16.msra.mxu0 0
    %1637 = vmatprep.subr.bf16.mxu0 0
    %1638 = vmatpush2.bf16.msra.mxu0 0
    %1639 = vmatprep.subr.bf16.mxu0 0
    %1640 = vmatpush2.bf16.msra.mxu0 0
    %1641 = vmatprep.subr.bf16.mxu0 0
    %1642 = vmatpush2.bf16.msra.mxu0 0
    %1643 = vmatprep.subr.bf16.mxu0 0
    %1644 = vmatpush2.bf16.msra.mxu0 0
    %1645 = vmatprep.subr.bf16.mxu0 0
    %1646 = vmatpush2.bf16.msra.mxu0 0
    %1647 = vmatprep.subr.bf16.mxu0 0
    %1648 = vmatpush2.bf16.msra.mxu0 0
    %1649 = vmatprep.mubr.bf16.mxu0 0
    %1650 = vmatmul.mubr.bf16.gmra.mxu0 %v1615
    %v1651 = vpop.f32.mrf.mxu0
    %v1652 = vadd.f32 %v1576, %v1651
    %v1653 = vpop.f32.mrf.mxu0
    %v1654 = vpop.f32.mrf.mxu0
    %v1655 = vpop.f32.mrf.mxu0
    %1656 = vdwg.mxu0
    %v1657 = vmax.f32 %v1652, 0.0
    %vm1658 = vcmask 647168
    %v1659 = vsel %vm1658, %v1657, 0.0
    %1660 = vadd.xlane.f32.xlu0 %v1659
    %v1661 = vpop.xlane.xlu0 %1660
    %v1662 = vrcp.pop 80.0
    %v1663 = vmul.f32 %v1661, %v1662
    %v1664 = vsub.f32 %v1657, %v1663
    %v1665 = vmul.f32 %v1664, %v1664
    %v1666 = vsel %vm1658, %v1665, 0.0
    %1667 = vadd.xlane.f32.xlu0 %v1666
    %v1668 = vpop.xlane.xlu0 %1667
    %v1669 = vmul.f32 %v1668, %v1662
    %v1670 = vadd.f32 %v1669, 1e-05
    %v1671 = vrsqrt.pop %v1670
    %v1672 = vmul.f32 %v1664, %v1671
    %s1673 = scalar_lea.hbm %s4, 4608
    // Predicated region
    $region58: #{forward.1} parent=1 // pred_check
      _
    $region59: #{forward.1} parent=1 // pred_check_branch
      %1675 = sbr.rel target = $region61
    $region60: #{forward.1} parent=1 // pred_region
      %1676 = sst [smem:[#allocation14]] [#allocation33]
      %1677 = sst [smem:[#allocation15]] [#allocation32]
    $region61: #{forward.1} parent=1 // pred_fallthru
      _
    %1679 = shalt.err (0)
    %s1681 = sshll.u32 %s1119, 4
    %s1682 = int_to_ptr.vmem [resolvable:$true] %s1681
    %1684 = dma.hbm_to_vmem [thread:$0]  %s1673, 512, %s1682, %s1120
    %s1685 = smul.u32 4, 10
    %s1686 = smul.u32 %s1685, 1
    %s1687 = sshll.u32 %s1686, 4
    %1688 = dma.done %s874, %s1687
    %v1689 = vld [vmem:[#allocation3] sm:$0xf]
    %v1690 = vld [vmem:[#allocation3 + $0x4] sm:$0xf]
    %v1691 = vld [vmem:[#allocation3 + $0x8] sm:$0xf]
    %v1692 = vld [vmem:[#allocation3 + $0xc] sm:$0xf]
    %v1693 = vld [vmem:[#allocation3 + $0x10] sm:$0xf]
    %v1694 = vld [vmem:[#allocation3 + $0x14] sm:$0xf]
    %v1695 = vld [vmem:[#allocation3 + $0x18] sm:$0xf]
    %v1696 = vld [vmem:[#allocation3 + $0x1c] sm:$0xf]
    %v1697 = vld [vmem:[#allocation3 + $0x20] sm:$0xf]
    %v1698 = vld [vmem:[#allocation3 + $0x24] sm:$0xf]
    %v1699 = vld [vmem:[#allocation6 + $0x10] ss:$0 sm:$0xff]
    %v1700 = vpack.c.bf16 %v1672, %v1672
    %v1711 = vunpack.c.l.b16 %v1689
    %v1712 = vunpack.c.l.b16 %v1690
    %v1713 = vunpack.c.l.b16 %v1691
    %v1714 = vunpack.c.l.b16 %v1692
    %v1715 = vunpack.c.l.b16 %v1693
    %v1716 = vunpack.c.l.b16 %v1694
    %v1717 = vunpack.c.l.b16 %v1695
    %v1718 = vunpack.c.l.b16 %v1696
    %v1719 = vunpack.c.l.b16 %v1697
    %v1720 = vunpack.c.l.b16 %v1698
    %v1721 = vpack.c.b16 %v1712, %v1711
    %v1722 = vpack.c.b16 %v1714, %v1713
    %v1723 = vpack.c.b16 %v1716, %v1715
    %v1724 = vpack.c.b16 %v1718, %v1717
    %v1725 = vpack.c.b16 %v1720, %v1719
    %vm1731 = vcmask 654336
    %v1733 = vsel %vm1731, %v1700, 0
    %1735 = vmatprep.subr.bf16.mxu0 0
    %1736 = vmatpush1.bf16.msra.mxu0 0
    %1737 = vmatprep.subr.bf16.mxu0 0
    %1738 = vmatpush1.bf16.msra.mxu0 0
    %1739 = vmatprep.subr.bf16.mxu0 0
    %1740 = vmatpush1.bf16.msra.mxu0 0
    %1741 = vmatprep.subr.bf16.mxu0 0
    %1742 = vmatpush1.bf16.msra.mxu0 %v1725
    %1743 = vmatprep.subr.bf16.mxu0 0
    %1744 = vmatpush1.bf16.msra.mxu0 %v1724
    %1745 = vmatprep.subr.bf16.mxu0 0
    %1746 = vmatpush1.bf16.msra.mxu0 %v1723
    %1747 = vmatprep.subr.bf16.mxu0 0
    %1748 = vmatpush1.bf16.msra.mxu0 %v1722
    %1749 = vmatprep.subr.bf16.mxu0 0
    %1750 = vmatpush1.bf16.msra.mxu0 %v1721
    %1751 = vmatprep.subr.bf16.mxu0 0
    %1752 = vmatpush2.bf16.msra.mxu0 0
    %1753 = vmatprep.subr.bf16.mxu0 0
    %1754 = vmatpush2.bf16.msra.mxu0 0
    %1755 = vmatprep.subr.bf16.mxu0 0
    %1756 = vmatpush2.bf16.msra.mxu0 0
    %1757 = vmatprep.subr.bf16.mxu0 0
    %1758 = vmatpush2.bf16.msra.mxu0 0
    %1759 = vmatprep.subr.bf16.mxu0 0
    %1760 = vmatpush2.bf16.msra.mxu0 0
    %1761 = vmatprep.subr.bf16.mxu0 0
    %1762 = vmatpush2.bf16.msra.mxu0 0
    %1763 = vmatprep.subr.bf16.mxu0 0
    %1764 = vmatpush2.bf16.msra.mxu0 0
    %1765 = vmatprep.subr.bf16.mxu0 0
    %1766 = vmatpush2.bf16.msra.mxu0 0
    %1767 = vmatprep.mubr.bf16.mxu0 0
    %1768 = vmatmul.mubr.bf16.gmra.mxu0 %v1733
    %v1769 = vpop.f32.mrf.mxu0
    %v1770 = vadd.f32 %v1699, %v1769
    %v1771 = vpop.f32.mrf.mxu0
    %v1772 = vpop.f32.mrf.mxu0
    %v1773 = vpop.f32.mrf.mxu0
    %1774 = vdwg.mxu0
    %v1775 = vmax.f32 %v1770, 0.0
    %v1776 = vsel %vm853, %v1775, 0.0
    %1777 = vadd.xlane.f32.xlu0 %v1776
    %v1778 = vpop.xlane.xlu0 %1777
    %v1779 = vrcp.pop 64.0
    %v1780 = vmul.f32 %v1778, %v1779
    %v1781 = vsub.f32 %v1775, %v1780
    %v1782 = vmul.f32 %v1781, %v1781
    %v1783 = vsel %vm853, %v1782, 0.0
    %1784 = vadd.xlane.f32.xlu0 %v1783
    %v1785 = vpop.xlane.xlu0 %1784
    %v1786 = vmul.f32 %v1785, %v1779
    %v1787 = vadd.f32 %v1786, 1e-05
    %v1788 = vrsqrt.pop %v1787
    %v1789 = vmul.f32 %v1781, %v1788
    %s1790 = scalar_lea.hbm %s4, 5120
    // Predicated region
    $region62: #{forward.1} parent=1 // pred_check
      _
    $region63: #{forward.1} parent=1 // pred_check_branch
      %1792 = sbr.rel target = $region65
    $region64: #{forward.1} parent=1 // pred_region
      %1793 = sst [smem:[#allocation14]] [#allocation35]
      %1794 = sst [smem:[#allocation15]] [#allocation34]
    $region65: #{forward.1} parent=1 // pred_fallthru
      _
    %1796 = shalt.err (0)
    %s1798 = sshll.u32 [#allocation3], 4
    %s1799 = int_to_ptr.vmem [resolvable:$true] %s1798
    %1801 = dma.hbm_to_vmem [thread:$0]  %s1790, 512, %s1799, %s874
    %s1802 = smul.u32 4, 8
    %s1803 = smul.u32 %s1802, 1
    %s1804 = sshll.u32 %s1803, 4
    %1805 = dma.done %s1120, %s1804
    %v1806 = vld [vmem:[%s1119] sm:$0xf]
    %v1807 = vld [vmem:[%s1119 + $0x4] sm:$0xf]
    %v1808 = vld [vmem:[%s1119 + $0x8] sm:$0xf]
    %v1809 = vld [vmem:[%s1119 + $0xc] sm:$0xf]
    %v1810 = vld [vmem:[%s1119 + $0x10] sm:$0xf]
    %v1811 = vld [vmem:[%s1119 + $0x14] sm:$0xf]
    %v1812 = vld [vmem:[%s1119 + $0x18] sm:$0xf]
    %v1813 = vld [vmem:[%s1119 + $0x1c] sm:$0xf]
    %v1814 = vld [vmem:[#allocation6 + $0x11] ss:$0 sm:$0xff]
    %v1815 = vpack.c.bf16 %v1789, %v1789
    %v1824 = vunpack.c.l.b16 %v1806
    %v1825 = vunpack.c.l.b16 %v1807
    %v1826 = vunpack.c.l.b16 %v1808
    %v1827 = vunpack.c.l.b16 %v1809
    %v1828 = vunpack.c.l.b16 %v1810
    %v1829 = vunpack.c.l.b16 %v1811
    %v1830 = vunpack.c.l.b16 %v1812
    %v1831 = vunpack.c.l.b16 %v1813
    %v1832 = vpack.c.b16 %v1825, %v1824
    %v1833 = vpack.c.b16 %v1827, %v1826
    %v1834 = vpack.c.b16 %v1829, %v1828
    %v1835 = vpack.c.b16 %v1831, %v1830
    %v1841 = vsel %vm1049, %v1815, 0
    %1843 = vmatprep.subr.bf16.mxu0 0
    %1844 = vmatpush1.bf16.msra.mxu0 0
    %1845 = vmatprep.subr.bf16.mxu0 0
    %1846 = vmatpush1.bf16.msra.mxu0 0
    %1847 = vmatprep.subr.bf16.mxu0 0
    %1848 = vmatpush1.bf16.msra.mxu0 0
    %1849 = vmatprep.subr.bf16.mxu0 0
    %1850 = vmatpush1.bf16.msra.mxu0 0
    %1851 = vmatprep.subr.bf16.mxu0 0
    %1852 = vmatpush1.bf16.msra.mxu0 %v1835
    %1853 = vmatprep.subr.bf16.mxu0 0
    %1854 = vmatpush1.bf16.msra.mxu0 %v1834
    %1855 = vmatprep.subr.bf16.mxu0 0
    %1856 = vmatpush1.bf16.msra.mxu0 %v1833
    %1857 = vmatprep.subr.bf16.mxu0 0
    %1858 = vmatpush1.bf16.msra.mxu0 %v1832
    %1859 = vmatprep.subr.bf16.mxu0 0
    %1860 = vmatpush2.bf16.msra.mxu0 0
    %1861 = vmatprep.subr.bf16.mxu0 0
    %1862 = vmatpush2.bf16.msra.mxu0 0
    %1863 = vmatprep.subr.bf16.mxu0 0
    %1864 = vmatpush2.bf16.msra.mxu0 0
    %1865 = vmatprep.subr.bf16.mxu0 0
    %1866 = vmatpush2.bf16.msra.mxu0 0
    %1867 = vmatprep.subr.bf16.mxu0 0
    %1868 = vmatpush2.bf16.msra.mxu0 0
    %1869 = vmatprep.subr.bf16.mxu0 0
    %1870 = vmatpush2.bf16.msra.mxu0 0
    %1871 = vmatprep.subr.bf16.mxu0 0
    %1872 = vmatpush2.bf16.msra.mxu0 0
    %1873 = vmatprep.subr.bf16.mxu0 0
    %1874 = vmatpush2.bf16.msra.mxu0 0
    %1875 = vmatprep.mubr.bf16.mxu0 0
    %1876 = vmatmul.mubr.bf16.gmra.mxu0 %v1841
    %v1877 = vpop.f32.mrf.mxu0
    %v1878 = vadd.f32 %v1814, %v1877
    %v1879 = vpop.f32.mrf.mxu0
    %v1880 = vpop.f32.mrf.mxu0
    %v1881 = vpop.f32.mrf.mxu0
    %1882 = vdwg.mxu0
    %v1883 = vmax.f32 %v1878, 0.0
    %vm1884 = vcmask 450560
    %v1885 = vsel %vm1884, %v1883, 0.0
    %1886 = vadd.xlane.f32.xlu0 %v1885
    %v1887 = vpop.xlane.xlu0 %1886
    %v1888 = vrcp.pop 56.0
    %v1889 = vmul.f32 %v1887, %v1888
    %v1890 = vsub.f32 %v1883, %v1889
    %v1891 = vmul.f32 %v1890, %v1890
    %v1892 = vsel %vm1884, %v1891, 0.0
    %1893 = vadd.xlane.f32.xlu0 %v1892
    %v1894 = vpop.xlane.xlu0 %1893
    %v1895 = vmul.f32 %v1894, %v1888
    %v1896 = vadd.f32 %v1895, 1e-05
    %v1897 = vrsqrt.pop %v1896
    %v1898 = vmul.f32 %v1890, %v1897
    %s1899 = scalar_lea.hbm %s4, 5632
    // Predicated region
    $region66: #{forward.1} parent=1 // pred_check
      _
    $region67: #{forward.1} parent=1 // pred_check_branch
      %1901 = sbr.rel target = $region69
    $region68: #{forward.1} parent=1 // pred_region
      %1902 = sst [smem:[#allocation14]] [#allocation37]
      %1903 = sst [smem:[#allocation15]] [#allocation36]
    $region69: #{forward.1} parent=1 // pred_fallthru
      _
    %1905 = shalt.err (0)
    %s1907 = sshll.u32 %s1119, 4
    %s1908 = int_to_ptr.vmem [resolvable:$true] %s1907
    %1910 = dma.hbm_to_vmem [thread:$0]  %s1899, 384, %s1908, %s1120
    %s1911 = sshll.u32 %s1803, 4
    %1912 = dma.done %s874, %s1911
    %v1913 = vld [vmem:[#allocation3] sm:$0xf]
    %v1914 = vld [vmem:[#allocation3 + $0x4] sm:$0xf]
    %v1915 = vld [vmem:[#allocation3 + $0x8] sm:$0xf]
    %v1916 = vld [vmem:[#allocation3 + $0xc] sm:$0xf]
    %v1917 = vld [vmem:[#allocation3 + $0x10] sm:$0xf]
    %v1918 = vld [vmem:[#allocation3 + $0x14] sm:$0xf]
    %v1919 = vld [vmem:[#allocation3 + $0x18] sm:$0xf]
    %v1920 = vld [vmem:[#allocation6 + $0x12] ss:$0 sm:$0xff]
    %v1921 = vpack.c.bf16 %v1898, %v1898
    %v1929 = vunpack.c.l.b16 %v1913
    %v1930 = vunpack.c.l.b16 %v1914
    %v1931 = vunpack.c.l.b16 %v1915
    %v1932 = vunpack.c.l.b16 %v1916
    %v1933 = vunpack.c.l.b16 %v1917
    %v1934 = vunpack.c.l.b16 %v1918
    %v1935 = vunpack.c.l.b16 %v1919
    %v1936 = vpack.c.b16 %v1930, %v1929
    %v1937 = vpack.c.b16 %v1932, %v1931
    %v1938 = vpack.c.b16 %v1934, %v1933
    %v1939 = vpack.c.b16 %v1935, %v1935
    %vm1943 = vcmask 457728
    %v1945 = vsel %vm1943, %v1921, 0
    %vm1947 = vcmask 1043456
    %v1949 = vsel %vm1947, %v1939, 0
    %1951 = vmatprep.subr.bf16.mxu0 0
    %1952 = vmatpush1.bf16.msra.mxu0 0
    %1953 = vmatprep.subr.bf16.mxu0 0
    %1954 = vmatpush1.bf16.msra.mxu0 0
    %1955 = vmatprep.subr.bf16.mxu0 0
    %1956 = vmatpush1.bf16.msra.mxu0 0
    %1957 = vmatprep.subr.bf16.mxu0 0
    %1958 = vmatpush1.bf16.msra.mxu0 0
    %1959 = vmatprep.subr.bf16.mxu0 0
    %1960 = vmatpush1.bf16.msra.mxu0 %v1949
    %1961 = vmatprep.subr.bf16.mxu0 0
    %1962 = vmatpush1.bf16.msra.mxu0 %v1938
    %1963 = vmatprep.subr.bf16.mxu0 0
    %1964 = vmatpush1.bf16.msra.mxu0 %v1937
    %1965 = vmatprep.subr.bf16.mxu0 0
    %1966 = vmatpush1.bf16.msra.mxu0 %v1936
    %1967 = vmatprep.subr.bf16.mxu0 0
    %1968 = vmatpush2.bf16.msra.mxu0 0
    %1969 = vmatprep.subr.bf16.mxu0 0
    %1970 = vmatpush2.bf16.msra.mxu0 0
    %1971 = vmatprep.subr.bf16.mxu0 0
    %1972 = vmatpush2.bf16.msra.mxu0 0
    %1973 = vmatprep.subr.bf16.mxu0 0
    %1974 = vmatpush2.bf16.msra.mxu0 0
    %1975 = vmatprep.subr.bf16.mxu0 0
    %1976 = vmatpush2.bf16.msra.mxu0 0
    %1977 = vmatprep.subr.bf16.mxu0 0
    %1978 = vmatpush2.bf16.msra.mxu0 0
    %1979 = vmatprep.subr.bf16.mxu0 0
    %1980 = vmatpush2.bf16.msra.mxu0 0
    %1981 = vmatprep.subr.bf16.mxu0 0
    %1982 = vmatpush2.bf16.msra.mxu0 0
    %1983 = vmatprep.mubr.bf16.mxu0 0
    %1984 = vmatmul.mubr.bf16.gmra.mxu0 %v1945
    %v1985 = vpop.f32.mrf.mxu0
    %v1986 = vadd.f32 %v1920, %v1985
    %v1987 = vpop.f32.mrf.mxu0
    %v1988 = vpop.f32.mrf.mxu0
    %v1989 = vpop.f32.mrf.mxu0
    %1990 = vdwg.mxu0
    %v1991 = vmax.f32 %v1986, 0.0
    %v1992 = vsel %vm72, %v1991, 0.0
    %1993 = vadd.xlane.f32.xlu0 %v1992
    %v1994 = vpop.xlane.xlu0 %1993
    %v1995 = vrcp.pop 48.0
    %v1996 = vmul.f32 %v1994, %v1995
    %v1997 = vsub.f32 %v1991, %v1996
    %v1998 = vmul.f32 %v1997, %v1997
    %v1999 = vsel %vm72, %v1998, 0.0
    %2000 = vadd.xlane.f32.xlu0 %v1999
    %v2001 = vpop.xlane.xlu0 %2000
    %v2002 = vmul.f32 %v2001, %v1995
    %v2003 = vadd.f32 %v2002, 1e-05
    %v2004 = vrsqrt.pop %v2003
    %v2005 = vmul.f32 %v1997, %v2004
    %s2006 = scalar_lea.hbm %s4, 6016
    // Predicated region
    $region70: #{forward.1} parent=1 // pred_check
      _
    $region71: #{forward.1} parent=1 // pred_check_branch
      %2008 = sbr.rel target = $region73
    $region72: #{forward.1} parent=1 // pred_region
      %2009 = sst [smem:[#allocation14]] [#allocation39]
      %2010 = sst [smem:[#allocation15]] [#allocation38]
    $region73: #{forward.1} parent=1 // pred_fallthru
      _
    %2012 = shalt.err (0)
    %s2014 = sshll.u32 [#allocation3], 4
    %s2015 = int_to_ptr.vmem [resolvable:$true] %s2014
    %2017 = dma.hbm_to_vmem [thread:$0]  %s2006, 384, %s2015, %s874
    %s2018 = smul.u32 4, 6
    %s2019 = smul.u32 %s2018, 1
    %s2020 = sshll.u32 %s2019, 4
    %2021 = dma.done %s1120, %s2020
    %v2022 = vld [vmem:[%s1119] sm:$0xf]
    %v2023 = vld [vmem:[%s1119 + $0x4] sm:$0xf]
    %v2024 = vld [vmem:[%s1119 + $0x8] sm:$0xf]
    %v2025 = vld [vmem:[%s1119 + $0xc] sm:$0xf]
    %v2026 = vld [vmem:[%s1119 + $0x10] sm:$0xf]
    %v2027 = vld [vmem:[%s1119 + $0x14] sm:$0xf]
    %v2028 = vld [vmem:[#allocation6 + $0x13] ss:$0 sm:$0xff]
    %v2029 = vpack.c.bf16 %v2005, %v2005
    %v2036 = vunpack.c.l.b16 %v2022
    %v2037 = vunpack.c.l.b16 %v2023
    %v2038 = vunpack.c.l.b16 %v2024
    %v2039 = vunpack.c.l.b16 %v2025
    %v2040 = vunpack.c.l.b16 %v2026
    %v2041 = vunpack.c.l.b16 %v2027
    %v2042 = vpack.c.b16 %v2037, %v2036
    %v2043 = vpack.c.b16 %v2039, %v2038
    %v2044 = vpack.c.b16 %v2041, %v2040
    %v2049 = vsel %vm51, %v2029, 0
    %2051 = vmatprep.subr.bf16.mxu0 0
    %2052 = vmatpush1.bf16.msra.mxu0 0
    %2053 = vmatprep.subr.bf16.mxu0 0
    %2054 = vmatpush1.bf16.msra.mxu0 0
    %2055 = vmatprep.subr.bf16.mxu0 0
    %2056 = vmatpush1.bf16.msra.mxu0 0
    %2057 = vmatprep.subr.bf16.mxu0 0
    %2058 = vmatpush1.bf16.msra.mxu0 0
    %2059 = vmatprep.subr.bf16.mxu0 0
    %2060 = vmatpush1.bf16.msra.mxu0 0
    %2061 = vmatprep.subr.bf16.mxu0 0
    %2062 = vmatpush1.bf16.msra.mxu0 %v2044
    %2063 = vmatprep.subr.bf16.mxu0 0
    %2064 = vmatpush1.bf16.msra.mxu0 %v2043
    %2065 = vmatprep.subr.bf16.mxu0 0
    %2066 = vmatpush1.bf16.msra.mxu0 %v2042
    %2067 = vmatprep.subr.bf16.mxu0 0
    %2068 = vmatpush2.bf16.msra.mxu0 0
    %2069 = vmatprep.subr.bf16.mxu0 0
    %2070 = vmatpush2.bf16.msra.mxu0 0
    %2071 = vmatprep.subr.bf16.mxu0 0
    %2072 = vmatpush2.bf16.msra.mxu0 0
    %2073 = vmatprep.subr.bf16.mxu0 0
    %2074 = vmatpush2.bf16.msra.mxu0 0
    %2075 = vmatprep.subr.bf16.mxu0 0
    %2076 = vmatpush2.bf16.msra.mxu0 0
    %2077 = vmatprep.subr.bf16.mxu0 0
    %2078 = vmatpush2.bf16.msra.mxu0 0
    %2079 = vmatprep.subr.bf16.mxu0 0
    %2080 = vmatpush2.bf16.msra.mxu0 0
    %2081 = vmatprep.subr.bf16.mxu0 0
    %2082 = vmatpush2.bf16.msra.mxu0 0
    %2083 = vmatprep.mubr.bf16.mxu0 0
    %2084 = vmatmul.mubr.bf16.gmra.mxu0 %v2049
    %v2085 = vpop.f32.mrf.mxu0
    %v2086 = vadd.f32 %v2028, %v2085
    %v2087 = vpop.f32.mrf.mxu0
    %v2088 = vpop.f32.mrf.mxu0
    %v2089 = vpop.f32.mrf.mxu0
    %2090 = vdwg.mxu0
    %v2091 = vmax.f32 %v2086, 0.0
    %vm2092 = vcmask 319488
    %v2093 = vsel %vm2092, %v2091, 0.0
    %2094 = vadd.xlane.f32.xlu0 %v2093
    %v2095 = vpop.xlane.xlu0 %2094
    %v2096 = vrcp.pop 40.0
    %v2097 = vmul.f32 %v2095, %v2096
    %v2098 = vsub.f32 %v2091, %v2097
    %v2099 = vmul.f32 %v2098, %v2098
    %v2100 = vsel %vm2092, %v2099, 0.0
    %2101 = vadd.xlane.f32.xlu0 %v2100
    %v2102 = vpop.xlane.xlu0 %2101
    %v2103 = vmul.f32 %v2102, %v2096
    %v2104 = vadd.f32 %v2103, 1e-05
    %v2105 = vrsqrt.pop %v2104
    %v2106 = vmul.f32 %v2098, %v2105
    %s2107 = scalar_lea.hbm %s4, 6400
    // Predicated region
    $region74: #{forward.1} parent=1 // pred_check
      _
    $region75: #{forward.1} parent=1 // pred_check_branch
      %2109 = sbr.rel target = $region77
    $region76: #{forward.1} parent=1 // pred_region
      %2110 = sst [smem:[#allocation14]] [#allocation41]
      %2111 = sst [smem:[#allocation15]] [#allocation40]
    $region77: #{forward.1} parent=1 // pred_fallthru
      _
    %2113 = shalt.err (0)
    %s2115 = sshll.u32 %s1119, 4
    %s2116 = int_to_ptr.vmem [resolvable:$true] %s2115
    %2118 = dma.hbm_to_vmem [thread:$0]  %s2107, 256, %s2116, %s1120
    %s2119 = sshll.u32 %s2019, 4
    %2120 = dma.done %s874, %s2119
    %v2121 = vld [vmem:[#allocation3] sm:$0xf]
    %v2122 = vld [vmem:[#allocation3 + $0x4] sm:$0xf]
    %v2123 = vld [vmem:[#allocation3 + $0x8] sm:$0xf]
    %v2124 = vld [vmem:[#allocation3 + $0xc] sm:$0xf]
    %v2125 = vld [vmem:[#allocation3 + $0x10] sm:$0xf]
    %v2126 = vld [vmem:[#allocation6 + $0x14] ss:$0 sm:$0xff]
    %v2127 = vpack.c.bf16 %v2106, %v2106
    %v2133 = vunpack.c.l.b16 %v2121
    %v2134 = vunpack.c.l.b16 %v2122
    %v2135 = vunpack.c.l.b16 %v2123
    %v2136 = vunpack.c.l.b16 %v2124
    %v2137 = vunpack.c.l.b16 %v2125
    %v2138 = vpack.c.b16 %v2134, %v2133
    %v2139 = vpack.c.b16 %v2136, %v2135
    %v2140 = vpack.c.b16 %v2137, %v2137
    %vm2143 = vcmask 326656
    %v2145 = vsel %vm2143, %v2127, 0
    %v2148 = vsel %vm1947, %v2140, 0
    %2150 = vmatprep.subr.bf16.mxu0 0
    %2151 = vmatpush1.bf16.msra.mxu0 0
    %2152 = vmatprep.subr.bf16.mxu0 0
    %2153 = vmatpush1.bf16.msra.mxu0 0
    %2154 = vmatprep.subr.bf16.mxu0 0
    %2155 = vmatpush1.bf16.msra.mxu0 0
    %2156 = vmatprep.subr.bf16.mxu0 0
    %2157 = vmatpush1.bf16.msra.mxu0 0
    %2158 = vmatprep.subr.bf16.mxu0 0
    %2159 = vmatpush1.bf16.msra.mxu0 0
    %2160 = vmatprep.subr.bf16.mxu0 0
    %2161 = vmatpush1.bf16.msra.mxu0 %v2148
    %2162 = vmatprep.subr.bf16.mxu0 0
    %2163 = vmatpush1.bf16.msra.mxu0 %v2139
    %2164 = vmatprep.subr.bf16.mxu0 0
    %2165 = vmatpush1.bf16.msra.mxu0 %v2138
    %2166 = vmatprep.subr.bf16.mxu0 0
    %2167 = vmatpush2.bf16.msra.mxu0 0
    %2168 = vmatprep.subr.bf16.mxu0 0
    %2169 = vmatpush2.bf16.msra.mxu0 0
    %2170 = vmatprep.subr.bf16.mxu0 0
    %2171 = vmatpush2.bf16.msra.mxu0 0
    %2172 = vmatprep.subr.bf16.mxu0 0
    %2173 = vmatpush2.bf16.msra.mxu0 0
    %2174 = vmatprep.subr.bf16.mxu0 0
    %2175 = vmatpush2.bf16.msra.mxu0 0
    %2176 = vmatprep.subr.bf16.mxu0 0
    %2177 = vmatpush2.bf16.msra.mxu0 0
    %2178 = vmatprep.subr.bf16.mxu0 0
    %2179 = vmatpush2.bf16.msra.mxu0 0
    %2180 = vmatprep.subr.bf16.mxu0 0
    %2181 = vmatpush2.bf16.msra.mxu0 0
    %2182 = vmatprep.mubr.bf16.mxu0 0
    %2183 = vmatmul.mubr.bf16.gmra.mxu0 %v2145
    %v2184 = vpop.f32.mrf.mxu0
    %v2185 = vadd.f32 %v2126, %v2184
    %v2186 = vpop.f32.mrf.mxu0
    %v2187 = vpop.f32.mrf.mxu0
    %v2188 = vpop.f32.mrf.mxu0
    %2189 = vdwg.mxu0
    %v2190 = vmax.f32 %v2185, 0.0
    %v2191 = vsel %vm1097, %v2190, 0.0
    %2192 = vadd.xlane.f32.xlu0 %v2191
    %v2193 = vpop.xlane.xlu0 %2192
    %v2194 = vrcp.pop 32.0
    %v2195 = vmul.f32 %v2193, %v2194
    %v2196 = vsub.f32 %v2190, %v2195
    %v2197 = vmul.f32 %v2196, %v2196
    %v2198 = vsel %vm1097, %v2197, 0.0
    %2199 = vadd.xlane.f32.xlu0 %v2198
    %v2200 = vpop.xlane.xlu0 %2199
    %v2201 = vmul.f32 %v2200, %v2194
    %v2202 = vadd.f32 %v2201, 1e-05
    %v2203 = vrsqrt.pop %v2202
    %v2204 = vmul.f32 %v2196, %v2203
    %s2205 = smul.u32 4, 4
    %s2206 = smul.u32 %s2205, 1
    %s2207 = sshll.u32 %s2206, 4
    %2208 = dma.done %s1120, %s2207
    %v2209 = vld [vmem:[%s1119] sm:$0xf]
    %v2210 = vld [vmem:[%s1119 + $0x4] sm:$0xf]
    %v2211 = vld [vmem:[%s1119 + $0x8] sm:$0xf]
    %v2212 = vld [vmem:[%s1119 + $0xc] sm:$0xf]
    %v2213 = vld [vmem:[#allocation6 + $0x15] ss:$0 sm:$0xff]
    %v2214 = vpack.c.bf16 %v2204, %v2204
    %v2219 = vunpack.c.l.b16 %v2209
    %v2220 = vunpack.c.l.b16 %v2210
    %v2221 = vunpack.c.l.b16 %v2211
    %v2222 = vunpack.c.l.b16 %v2212
    %v2223 = vpack.c.b16 %v2220, %v2219
    %v2224 = vpack.c.b16 %v2222, %v2221
    %v2228 = vsel %vm1219, %v2214, 0
    %2230 = vmatprep.subr.bf16.mxu0 0
    %2231 = vmatpush1.bf16.msra.mxu0 0
    %2232 = vmatprep.subr.bf16.mxu0 0
    %2233 = vmatpush1.bf16.msra.mxu0 0
    %2234 = vmatprep.subr.bf16.mxu0 0
    %2235 = vmatpush1.bf16.msra.mxu0 0
    %2236 = vmatprep.subr.bf16.mxu0 0
    %2237 = vmatpush1.bf16.msra.mxu0 0
    %2238 = vmatprep.subr.bf16.mxu0 0
    %2239 = vmatpush1.bf16.msra.mxu0 0
    %2240 = vmatprep.subr.bf16.mxu0 0
    %2241 = vmatpush1.bf16.msra.mxu0 0
    %2242 = vmatprep.subr.bf16.mxu0 0
    %2243 = vmatpush1.bf16.msra.mxu0 %v2224
    %2244 = vmatprep.subr.bf16.mxu0 0
    %2245 = vmatpush1.bf16.msra.mxu0 %v2223
    %2246 = vmatprep.subr.bf16.mxu0 0
    %2247 = vmatpush2.bf16.msra.mxu0 0
    %2248 = vmatprep.subr.bf16.mxu0 0
    %2249 = vmatpush2.bf16.msra.mxu0 0
    %2250 = vmatprep.subr.bf16.mxu0 0
    %2251 = vmatpush2.bf16.msra.mxu0 0
    %2252 = vmatprep.subr.bf16.mxu0 0
    %2253 = vmatpush2.bf16.msra.mxu0 0
    %2254 = vmatprep.subr.bf16.mxu0 0
    %2255 = vmatpush2.bf16.msra.mxu0 0
    %2256 = vmatprep.subr.bf16.mxu0 0
    %2257 = vmatpush2.bf16.msra.mxu0 0
    %2258 = vmatprep.subr.bf16.mxu0 0
    %2259 = vmatpush2.bf16.msra.mxu0 0
    %2260 = vmatprep.subr.bf16.mxu0 0
    %2261 = vmatpush2.bf16.msra.mxu0 0
    %2262 = vmatprep.mubr.bf16.mxu0 0
    %2263 = vmatmul.mubr.bf16.gmra.mxu0 %v2228
    %v2264 = vpop.f32.mrf.mxu0
    %v2265 = vadd.f32 %v2213, %v2264
    %v2266 = vpop.f32.mrf.mxu0
    %v2267 = vpop.f32.mrf.mxu0
    %v2268 = vpop.f32.mrf.mxu0
    %2269 = vdwg.mxu0
    %vm2270 = vcmask 360448
    %2271 = vst.msk [vmem:[#allocation9] sm:$0x1] %vm2270, %v2265
    %v2272 = vld [vmem:[#allocation4] sm:$0xff]
    %v2273 = vld [vmem:[#allocation4 + $0x8] sm:$0xff]
    %v2274 = vld [vmem:[#allocation4 + $0x10] sm:$0xff]
    %v2275 = vld [vmem:[#allocation4 + $0x18] sm:$0xff]
    %v2276 = vld [vmem:[#allocation4 + $0x20] sm:$0xff]
    %v2277 = vld [vmem:[#allocation4 + $0x28] sm:$0xff]
    %v2279 = vsel %vm51, %v2265, 0
    %2281 = vmatprep.subr.mxu0 0.0
    %2282 = vmatpush1.msra.mxu0 0.0
    %2283 = vmatprep.subr.mxu0 0.0
    %2284 = vmatpush1.msra.mxu0 0.0
    %2285 = vmatprep.subr.mxu0 0.0
    %2286 = vmatpush1.msra.mxu0 0.0
    %2287 = vmatprep.subr.mxu0 0.0
    %2288 = vmatpush1.msra.mxu0 0.0
    %2289 = vmatprep.subr.mxu0 0.0
    %2290 = vmatpush1.msra.mxu0 0.0
    %2291 = vmatprep.subr.mxu0 0.0
    %2292 = vmatpush1.msra.mxu0 0.0
    %2293 = vmatprep.subr.mxu0 0.0
    %2294 = vmatpush1.msra.mxu0 0.0
    %2295 = vmatprep.subr.mxu0 0.0
    %2296 = vmatpush1.msra.mxu0 0.0
    %2297 = vmatprep.subr.mxu0 0.0
    %2298 = vmatpush1.msra.mxu0 0.0
    %2299 = vmatprep.subr.mxu0 0.0
    %2300 = vmatpush1.msra.mxu0 0.0
    %2301 = vmatprep.subr.mxu0 0.0
    %v2302 = vand.u32 %v2277, 4294901760
    %2303 = vmatpush1.msra.mxu0 %v2302
    %2304 = vmatprep.subr.mxu0 0.0
    %v2305 = vand.u32 %v2276, 4294901760
    %2306 = vmatpush1.msra.mxu0 %v2305
    %2307 = vmatprep.subr.mxu0 0.0
    %v2308 = vand.u32 %v2275, 4294901760
    %2309 = vmatpush1.msra.mxu0 %v2308
    %2310 = vmatprep.subr.mxu0 0.0
    %v2311 = vand.u32 %v2274, 4294901760
    %2312 = vmatpush1.msra.mxu0 %v2311
    %2313 = vmatprep.subr.mxu0 0.0
    %v2314 = vand.u32 %v2273, 4294901760
    %2315 = vmatpush1.msra.mxu0 %v2314
    %2316 = vmatprep.subr.mxu0 0.0
    %v2317 = vand.u32 %v2272, 4294901760
    %2318 = vmatpush1.msra.mxu0 %v2317
    %2319 = vmatprep.subr.mxu0 0.0
    %2320 = vmatpush2.msra.mxu0 0.0
    %2321 = vmatprep.subr.mxu0 0.0
    %2322 = vmatpush2.msra.mxu0 0.0
    %2323 = vmatprep.subr.mxu0 0.0
    %2324 = vmatpush2.msra.mxu0 0.0
    %2325 = vmatprep.subr.mxu0 0.0
    %2326 = vmatpush2.msra.mxu0 0.0
    %2327 = vmatprep.subr.mxu0 0.0
    %2328 = vmatpush2.msra.mxu0 0.0
    %2329 = vmatprep.subr.mxu0 0.0
    %2330 = vmatpush2.msra.mxu0 0.0
    %2331 = vmatprep.subr.mxu0 0.0
    %2332 = vmatpush2.msra.mxu0 0.0
    %2333 = vmatprep.subr.mxu0 0.0
    %2334 = vmatpush2.msra.mxu0 0.0
    %2335 = vmatprep.subr.mxu0 0.0
    %2336 = vmatpush2.msra.mxu0 0.0
    %2337 = vmatprep.subr.mxu0 0.0
    %2338 = vmatpush2.msra.mxu0 0.0
    %2339 = vmatprep.subr.mxu0 0.0
    %2340 = vmatpush2.msra.mxu0 0.0
    %2341 = vmatprep.subr.mxu0 0.0
    %2342 = vmatpush2.msra.mxu0 0.0
    %2343 = vmatprep.subr.mxu0 0.0
    %2344 = vmatpush2.msra.mxu0 0.0
    %2345 = vmatprep.subr.mxu0 0.0
    %2346 = vmatpush2.msra.mxu0 0.0
    %2347 = vmatprep.subr.mxu0 0.0
    %2348 = vmatpush2.msra.mxu0 0.0
    %2349 = vmatprep.subr.mxu0 0.0
    %2350 = vmatpush2.msra.mxu0 0.0
    %2351 = vmatprep.mubr.f32.mxu0 0.0
    %v2352 = vand.u32 %v2279, 4294901760
    %v2353 = vsub.f32 %v2279, %v2352
    %v2354 = vand.u32 %v2353, 4294901760
    %v2355 = vsub.f32 %v2353, %v2354
    %v2356 = vand.u32 %v2355, 4294901760
    %2357 = vmatmul.mubr.f32.gmra.mxu0 %v2356
    %v2358 = vpop.f32.mrf.mxu0
    %v2359 = vadd.f32 0.0, %v2358
    %v2360 = vpop.f32.mrf.mxu0
    %2361 = vdwg.mxu0
    %2362 = vmatprep.subr.mxu0 0.0
    %2363 = vmatpush1.msra.mxu0 0.0
    %2364 = vmatprep.subr.mxu0 0.0
    %2365 = vmatpush1.msra.mxu0 0.0
    %2366 = vmatprep.subr.mxu0 0.0
    %2367 = vmatpush1.msra.mxu0 0.0
    %2368 = vmatprep.subr.mxu0 0.0
    %2369 = vmatpush1.msra.mxu0 0.0
    %2370 = vmatprep.subr.mxu0 0.0
    %2371 = vmatpush1.msra.mxu0 0.0
    %2372 = vmatprep.subr.mxu0 0.0
    %2373 = vmatpush1.msra.mxu0 0.0
    %2374 = vmatprep.subr.mxu0 0.0
    %2375 = vmatpush1.msra.mxu0 0.0
    %2376 = vmatprep.subr.mxu0 0.0
    %2377 = vmatpush1.msra.mxu0 0.0
    %2378 = vmatprep.subr.mxu0 0.0
    %2379 = vmatpush1.msra.mxu0 0.0
    %2380 = vmatprep.subr.mxu0 0.0
    %2381 = vmatpush1.msra.mxu0 0.0
    %2382 = vmatprep.subr.mxu0 0.0
    %v2383 = vand.u32 %v2277, 4294901760
    %v2384 = vsub.f32 %v2277, %v2383
    %v2385 = vand.u32 %v2384, 4294901760
    %v2386 = vsub.f32 %v2384, %v2385
    %v2387 = vand.u32 %v2386, 4294901760
    %2388 = vmatpush1.msra.mxu0 %v2387
    %2389 = vmatprep.subr.mxu0 0.0
    %v2390 = vand.u32 %v2276, 4294901760
    %v2391 = vsub.f32 %v2276, %v2390
    %v2392 = vand.u32 %v2391, 4294901760
    %v2393 = vsub.f32 %v2391, %v2392
    %v2394 = vand.u32 %v2393, 4294901760
    %2395 = vmatpush1.msra.mxu0 %v2394
    %2396 = vmatprep.subr.mxu0 0.0
    %v2397 = vand.u32 %v2275, 4294901760
    %v2398 = vsub.f32 %v2275, %v2397
    %v2399 = vand.u32 %v2398, 4294901760
    %v2400 = vsub.f32 %v2398, %v2399
    %v2401 = vand.u32 %v2400, 4294901760
    %2402 = vmatpush1.msra.mxu0 %v2401
    %2403 = vmatprep.subr.mxu0 0.0
    %v2404 = vand.u32 %v2274, 4294901760
    %v2405 = vsub.f32 %v2274, %v2404
    %v2406 = vand.u32 %v2405, 4294901760
    %v2407 = vsub.f32 %v2405, %v2406
    %v2408 = vand.u32 %v2407, 4294901760
    %2409 = vmatpush1.msra.mxu0 %v2408
    %2410 = vmatprep.subr.mxu0 0.0
    %v2411 = vand.u32 %v2273, 4294901760
    %v2412 = vsub.f32 %v2273, %v2411
    %v2413 = vand.u32 %v2412, 4294901760
    %v2414 = vsub.f32 %v2412, %v2413
    %v2415 = vand.u32 %v2414, 4294901760
    %2416 = vmatpush1.msra.mxu0 %v2415
    %2417 = vmatprep.subr.mxu0 0.0
    %v2418 = vand.u32 %v2272, 4294901760
    %v2419 = vsub.f32 %v2272, %v2418
    %v2420 = vand.u32 %v2419, 4294901760
    %v2421 = vsub.f32 %v2419, %v2420
    %v2422 = vand.u32 %v2421, 4294901760
    %2423 = vmatpush1.msra.mxu0 %v2422
    %2424 = vmatprep.subr.mxu0 0.0
    %2425 = vmatpush2.msra.mxu0 0.0
    %2426 = vmatprep.subr.mxu0 0.0
    %2427 = vmatpush2.msra.mxu0 0.0
    %2428 = vmatprep.subr.mxu0 0.0
    %2429 = vmatpush2.msra.mxu0 0.0
    %2430 = vmatprep.subr.mxu0 0.0
    %2431 = vmatpush2.msra.mxu0 0.0
    %2432 = vmatprep.subr.mxu0 0.0
    %2433 = vmatpush2.msra.mxu0 0.0
    %2434 = vmatprep.subr.mxu0 0.0
    %2435 = vmatpush2.msra.mxu0 0.0
    %2436 = vmatprep.subr.mxu0 0.0
    %2437 = vmatpush2.msra.mxu0 0.0
    %2438 = vmatprep.subr.mxu0 0.0
    %2439 = vmatpush2.msra.mxu0 0.0
    %2440 = vmatprep.subr.mxu0 0.0
    %2441 = vmatpush2.msra.mxu0 0.0
    %2442 = vmatprep.subr.mxu0 0.0
    %2443 = vmatpush2.msra.mxu0 0.0
    %2444 = vmatprep.subr.mxu0 0.0
    %2445 = vmatpush2.msra.mxu0 0.0
    %2446 = vmatprep.subr.mxu0 0.0
    %2447 = vmatpush2.msra.mxu0 0.0
    %2448 = vmatprep.subr.mxu0 0.0
    %2449 = vmatpush2.msra.mxu0 0.0
    %2450 = vmatprep.subr.mxu0 0.0
    %2451 = vmatpush2.msra.mxu0 0.0
    %2452 = vmatprep.subr.mxu0 0.0
    %2453 = vmatpush2.msra.mxu0 0.0
    %2454 = vmatprep.subr.mxu0 0.0
    %2455 = vmatpush2.msra.mxu0 0.0
    %2456 = vmatprep.mubr.f32.mxu0 0.0
    %v2457 = vand.u32 %v2279, 4294901760
    %2458 = vmatmul.mubr.f32.gmra.mxu0 %v2457
    %v2459 = vpop.f32.mrf.mxu0
    %v2460 = vadd.f32 %v2359, %v2459
    %v2461 = vpop.f32.mrf.mxu0
    %2462 = vdwg.mxu0
    %2463 = vmatprep.subr.mxu0 0.0
    %2464 = vmatpush1.msra.mxu0 0.0
    %2465 = vmatprep.subr.mxu0 0.0
    %2466 = vmatpush1.msra.mxu0 0.0
    %2467 = vmatprep.subr.mxu0 0.0
    %2468 = vmatpush1.msra.mxu0 0.0
    %2469 = vmatprep.subr.mxu0 0.0
    %2470 = vmatpush1.msra.mxu0 0.0
    %2471 = vmatprep.subr.mxu0 0.0
    %2472 = vmatpush1.msra.mxu0 0.0
    %2473 = vmatprep.subr.mxu0 0.0
    %2474 = vmatpush1.msra.mxu0 0.0
    %2475 = vmatprep.subr.mxu0 0.0
    %2476 = vmatpush1.msra.mxu0 0.0
    %2477 = vmatprep.subr.mxu0 0.0
    %2478 = vmatpush1.msra.mxu0 0.0
    %2479 = vmatprep.subr.mxu0 0.0
    %2480 = vmatpush1.msra.mxu0 0.0
    %2481 = vmatprep.subr.mxu0 0.0
    %2482 = vmatpush1.msra.mxu0 0.0
    %2483 = vmatprep.subr.mxu0 0.0
    %v2484 = vand.u32 %v2277, 4294901760
    %v2485 = vsub.f32 %v2277, %v2484
    %2486 = vmatpush1.msra.mxu0 %v2485
    %2487 = vmatprep.subr.mxu0 0.0
    %v2488 = vand.u32 %v2276, 4294901760
    %v2489 = vsub.f32 %v2276, %v2488
    %2490 = vmatpush1.msra.mxu0 %v2489
    %2491 = vmatprep.subr.mxu0 0.0
    %v2492 = vand.u32 %v2275, 4294901760
    %v2493 = vsub.f32 %v2275, %v2492
    %2494 = vmatpush1.msra.mxu0 %v2493
    %2495 = vmatprep.subr.mxu0 0.0
    %v2496 = vand.u32 %v2274, 4294901760
    %v2497 = vsub.f32 %v2274, %v2496
    %2498 = vmatpush1.msra.mxu0 %v2497
    %2499 = vmatprep.subr.mxu0 0.0
    %v2500 = vand.u32 %v2273, 4294901760
    %v2501 = vsub.f32 %v2273, %v2500
    %2502 = vmatpush1.msra.mxu0 %v2501
    %2503 = vmatprep.subr.mxu0 0.0
    %v2504 = vand.u32 %v2272, 4294901760
    %v2505 = vsub.f32 %v2272, %v2504
    %2506 = vmatpush1.msra.mxu0 %v2505
    %2507 = vmatprep.subr.mxu0 0.0
    %2508 = vmatpush2.msra.mxu0 0.0
    %2509 = vmatprep.subr.mxu0 0.0
    %2510 = vmatpush2.msra.mxu0 0.0
    %2511 = vmatprep.subr.mxu0 0.0
    %2512 = vmatpush2.msra.mxu0 0.0
    %2513 = vmatprep.subr.mxu0 0.0
    %2514 = vmatpush2.msra.mxu0 0.0
    %2515 = vmatprep.subr.mxu0 0.0
    %2516 = vmatpush2.msra.mxu0 0.0
    %2517 = vmatprep.subr.mxu0 0.0
    %2518 = vmatpush2.msra.mxu0 0.0
    %2519 = vmatprep.subr.mxu0 0.0
    %2520 = vmatpush2.msra.mxu0 0.0
    %2521 = vmatprep.subr.mxu0 0.0
    %2522 = vmatpush2.msra.mxu0 0.0
    %2523 = vmatprep.subr.mxu0 0.0
    %2524 = vmatpush2.msra.mxu0 0.0
    %2525 = vmatprep.subr.mxu0 0.0
    %2526 = vmatpush2.msra.mxu0 0.0
    %2527 = vmatprep.subr.mxu0 0.0
    %2528 = vmatpush2.msra.mxu0 0.0
    %2529 = vmatprep.subr.mxu0 0.0
    %2530 = vmatpush2.msra.mxu0 0.0
    %2531 = vmatprep.subr.mxu0 0.0
    %2532 = vmatpush2.msra.mxu0 0.0
    %2533 = vmatprep.subr.mxu0 0.0
    %2534 = vmatpush2.msra.mxu0 0.0
    %2535 = vmatprep.subr.mxu0 0.0
    %2536 = vmatpush2.msra.mxu0 0.0
    %2537 = vmatprep.subr.mxu0 0.0
    %2538 = vmatpush2.msra.mxu0 0.0
    %2539 = vmatprep.mubr.f32.mxu0 0.0
    %v2540 = vand.u32 %v2279, 4294901760
    %v2541 = vsub.f32 %v2279, %v2540
    %2542 = vmatmul.mubr.f32.gmra.mxu0 %v2541
    %v2543 = vpop.f32.mrf.mxu0
    %v2544 = vadd.f32 %v2460, %v2543
    %v2545 = vpop.f32.mrf.mxu0
    %2546 = vdwg.mxu0
    %2547 = vmatprep.subr.mxu0 0.0
    %2548 = vmatpush1.msra.mxu0 0.0
    %2549 = vmatprep.subr.mxu0 0.0
    %2550 = vmatpush1.msra.mxu0 0.0
    %2551 = vmatprep.subr.mxu0 0.0
    %2552 = vmatpush1.msra.mxu0 0.0
    %2553 = vmatprep.subr.mxu0 0.0
    %2554 = vmatpush1.msra.mxu0 0.0
    %2555 = vmatprep.subr.mxu0 0.0
    %2556 = vmatpush1.msra.mxu0 0.0
    %2557 = vmatprep.subr.mxu0 0.0
    %2558 = vmatpush1.msra.mxu0 0.0
    %2559 = vmatprep.subr.mxu0 0.0
    %2560 = vmatpush1.msra.mxu0 0.0
    %2561 = vmatprep.subr.mxu0 0.0
    %2562 = vmatpush1.msra.mxu0 0.0
    %2563 = vmatprep.subr.mxu0 0.0
    %2564 = vmatpush1.msra.mxu0 0.0
    %2565 = vmatprep.subr.mxu0 0.0
    %2566 = vmatpush1.msra.mxu0 0.0
    %2567 = vmatprep.subr.mxu0 0.0
    %v2568 = vand.u32 %v2277, 4294901760
    %2569 = vmatpush1.msra.mxu0 %v2568
    %2570 = vmatprep.subr.mxu0 0.0
    %v2571 = vand.u32 %v2276, 4294901760
    %2572 = vmatpush1.msra.mxu0 %v2571
    %2573 = vmatprep.subr.mxu0 0.0
    %v2574 = vand.u32 %v2275, 4294901760
    %2575 = vmatpush1.msra.mxu0 %v2574
    %2576 = vmatprep.subr.mxu0 0.0
    %v2577 = vand.u32 %v2274, 4294901760
    %2578 = vmatpush1.msra.mxu0 %v2577
    %2579 = vmatprep.subr.mxu0 0.0
    %v2580 = vand.u32 %v2273, 4294901760
    %2581 = vmatpush1.msra.mxu0 %v2580
    %2582 = vmatprep.subr.mxu0 0.0
    %v2583 = vand.u32 %v2272, 4294901760
    %2584 = vmatpush1.msra.mxu0 %v2583
    %2585 = vmatprep.subr.mxu0 0.0
    %2586 = vmatpush2.msra.mxu0 0.0
    %2587 = vmatprep.subr.mxu0 0.0
    %2588 = vmatpush2.msra.mxu0 0.0
    %2589 = vmatprep.subr.mxu0 0.0
    %2590 = vmatpush2.msra.mxu0 0.0
    %2591 = vmatprep.subr.mxu0 0.0
    %2592 = vmatpush2.msra.mxu0 0.0
    %2593 = vmatprep.subr.mxu0 0.0
    %2594 = vmatpush2.msra.mxu0 0.0
    %2595 = vmatprep.subr.mxu0 0.0
    %2596 = vmatpush2.msra.mxu0 0.0
    %2597 = vmatprep.subr.mxu0 0.0
    %2598 = vmatpush2.msra.mxu0 0.0
    %2599 = vmatprep.subr.mxu0 0.0
    %2600 = vmatpush2.msra.mxu0 0.0
    %2601 = vmatprep.subr.mxu0 0.0
    %2602 = vmatpush2.msra.mxu0 0.0
    %2603 = vmatprep.subr.mxu0 0.0
    %2604 = vmatpush2.msra.mxu0 0.0
    %2605 = vmatprep.subr.mxu0 0.0
    %2606 = vmatpush2.msra.mxu0 0.0
    %2607 = vmatprep.subr.mxu0 0.0
    %2608 = vmatpush2.msra.mxu0 0.0
    %2609 = vmatprep.subr.mxu0 0.0
    %2610 = vmatpush2.msra.mxu0 0.0
    %2611 = vmatprep.subr.mxu0 0.0
    %2612 = vmatpush2.msra.mxu0 0.0
    %2613 = vmatprep.subr.mxu0 0.0
    %2614 = vmatpush2.msra.mxu0 0.0
    %2615 = vmatprep.subr.mxu0 0.0
    %2616 = vmatpush2.msra.mxu0 0.0
    %2617 = vmatprep.mubr.f32.mxu0 0.0
    %v2618 = vand.u32 %v2279, 4294901760
    %v2619 = vsub.f32 %v2279, %v2618
    %v2620 = vand.u32 %v2619, 4294901760
    %2621 = vmatmul.mubr.f32.gmra.mxu0 %v2620
    %v2622 = vpop.f32.mrf.mxu0
    %v2623 = vadd.f32 %v2544, %v2622
    %v2624 = vpop.f32.mrf.mxu0
    %2625 = vdwg.mxu0
    %2626 = vmatprep.subr.mxu0 0.0
    %2627 = vmatpush1.msra.mxu0 0.0
    %2628 = vmatprep.subr.mxu0 0.0
    %2629 = vmatpush1.msra.mxu0 0.0
    %2630 = vmatprep.subr.mxu0 0.0
    %2631 = vmatpush1.msra.mxu0 0.0
    %2632 = vmatprep.subr.mxu0 0.0
    %2633 = vmatpush1.msra.mxu0 0.0
    %2634 = vmatprep.subr.mxu0 0.0
    %2635 = vmatpush1.msra.mxu0 0.0
    %2636 = vmatprep.subr.mxu0 0.0
    %2637 = vmatpush1.msra.mxu0 0.0
    %2638 = vmatprep.subr.mxu0 0.0
    %2639 = vmatpush1.msra.mxu0 0.0
    %2640 = vmatprep.subr.mxu0 0.0
    %2641 = vmatpush1.msra.mxu0 0.0
    %2642 = vmatprep.subr.mxu0 0.0
    %2643 = vmatpush1.msra.mxu0 0.0
    %2644 = vmatprep.subr.mxu0 0.0
    %2645 = vmatpush1.msra.mxu0 0.0
    %2646 = vmatprep.subr.mxu0 0.0
    %v2647 = vand.u32 %v2277, 4294901760
    %v2648 = vsub.f32 %v2277, %v2647
    %v2649 = vand.u32 %v2648, 4294901760
    %2650 = vmatpush1.msra.mxu0 %v2649
    %2651 = vmatprep.subr.mxu0 0.0
    %v2652 = vand.u32 %v2276, 4294901760
    %v2653 = vsub.f32 %v2276, %v2652
    %v2654 = vand.u32 %v2653, 4294901760
    %2655 = vmatpush1.msra.mxu0 %v2654
    %2656 = vmatprep.subr.mxu0 0.0
    %v2657 = vand.u32 %v2275, 4294901760
    %v2658 = vsub.f32 %v2275, %v2657
    %v2659 = vand.u32 %v2658, 4294901760
    %2660 = vmatpush1.msra.mxu0 %v2659
    %2661 = vmatprep.subr.mxu0 0.0
    %v2662 = vand.u32 %v2274, 4294901760
    %v2663 = vsub.f32 %v2274, %v2662
    %v2664 = vand.u32 %v2663, 4294901760
    %2665 = vmatpush1.msra.mxu0 %v2664
    %2666 = vmatprep.subr.mxu0 0.0
    %v2667 = vand.u32 %v2273, 4294901760
    %v2668 = vsub.f32 %v2273, %v2667
    %v2669 = vand.u32 %v2668, 4294901760
    %2670 = vmatpush1.msra.mxu0 %v2669
    %2671 = vmatprep.subr.mxu0 0.0
    %v2672 = vand.u32 %v2272, 4294901760
    %v2673 = vsub.f32 %v2272, %v2672
    %v2674 = vand.u32 %v2673, 4294901760
    %2675 = vmatpush1.msra.mxu0 %v2674
    %2676 = vmatprep.subr.mxu0 0.0
    %2677 = vmatpush2.msra.mxu0 0.0
    %2678 = vmatprep.subr.mxu0 0.0
    %2679 = vmatpush2.msra.mxu0 0.0
    %2680 = vmatprep.subr.mxu0 0.0
    %2681 = vmatpush2.msra.mxu0 0.0
    %2682 = vmatprep.subr.mxu0 0.0
    %2683 = vmatpush2.msra.mxu0 0.0
    %2684 = vmatprep.subr.mxu0 0.0
    %2685 = vmatpush2.msra.mxu0 0.0
    %2686 = vmatprep.subr.mxu0 0.0
    %2687 = vmatpush2.msra.mxu0 0.0
    %2688 = vmatprep.subr.mxu0 0.0
    %2689 = vmatpush2.msra.mxu0 0.0
    %2690 = vmatprep.subr.mxu0 0.0
    %2691 = vmatpush2.msra.mxu0 0.0
    %2692 = vmatprep.subr.mxu0 0.0
    %2693 = vmatpush2.msra.mxu0 0.0
    %2694 = vmatprep.subr.mxu0 0.0
    %2695 = vmatpush2.msra.mxu0 0.0
    %2696 = vmatprep.subr.mxu0 0.0
    %2697 = vmatpush2.msra.mxu0 0.0
    %2698 = vmatprep.subr.mxu0 0.0
    %2699 = vmatpush2.msra.mxu0 0.0
    %2700 = vmatprep.subr.mxu0 0.0
    %2701 = vmatpush2.msra.mxu0 0.0
    %2702 = vmatprep.subr.mxu0 0.0
    %2703 = vmatpush2.msra.mxu0 0.0
    %2704 = vmatprep.subr.mxu0 0.0
    %2705 = vmatpush2.msra.mxu0 0.0
    %2706 = vmatprep.subr.mxu0 0.0
    %2707 = vmatpush2.msra.mxu0 0.0
    %2708 = vmatprep.mubr.f32.mxu0 0.0
    %v2709 = vand.u32 %v2279, 4294901760
    %2710 = vmatmul.mubr.f32.gmra.mxu0 %v2709
    %v2711 = vpop.f32.mrf.mxu0
    %v2712 = vadd.f32 %v2623, %v2711
    %v2713 = vpop.f32.mrf.mxu0
    %2714 = vdwg.mxu0
    %2715 = vmatprep.subr.mxu0 0.0
    %2716 = vmatpush1.msra.mxu0 0.0
    %2717 = vmatprep.subr.mxu0 0.0
    %2718 = vmatpush1.msra.mxu0 0.0
    %2719 = vmatprep.subr.mxu0 0.0
    %2720 = vmatpush1.msra.mxu0 0.0
    %2721 = vmatprep.subr.mxu0 0.0
    %2722 = vmatpush1.msra.mxu0 0.0
    %2723 = vmatprep.subr.mxu0 0.0
    %2724 = vmatpush1.msra.mxu0 0.0
    %2725 = vmatprep.subr.mxu0 0.0
    %2726 = vmatpush1.msra.mxu0 0.0
    %2727 = vmatprep.subr.mxu0 0.0
    %2728 = vmatpush1.msra.mxu0 0.0
    %2729 = vmatprep.subr.mxu0 0.0
    %2730 = vmatpush1.msra.mxu0 0.0
    %2731 = vmatprep.subr.mxu0 0.0
    %2732 = vmatpush1.msra.mxu0 0.0
    %2733 = vmatprep.subr.mxu0 0.0
    %2734 = vmatpush1.msra.mxu0 0.0
    %2735 = vmatprep.subr.mxu0 0.0
    %v2736 = vand.u32 %v2277, 4294901760
    %2737 = vmatpush1.msra.mxu0 %v2736
    %2738 = vmatprep.subr.mxu0 0.0
    %v2739 = vand.u32 %v2276, 4294901760
    %2740 = vmatpush1.msra.mxu0 %v2739
    %2741 = vmatprep.subr.mxu0 0.0
    %v2742 = vand.u32 %v2275, 4294901760
    %2743 = vmatpush1.msra.mxu0 %v2742
    %2744 = vmatprep.subr.mxu0 0.0
    %v2745 = vand.u32 %v2274, 4294901760
    %2746 = vmatpush1.msra.mxu0 %v2745
    %2747 = vmatprep.subr.mxu0 0.0
    %v2748 = vand.u32 %v2273, 4294901760
    %2749 = vmatpush1.msra.mxu0 %v2748
    %2750 = vmatprep.subr.mxu0 0.0
    %v2751 = vand.u32 %v2272, 4294901760
    %2752 = vmatpush1.msra.mxu0 %v2751
    %2753 = vmatprep.subr.mxu0 0.0
    %2754 = vmatpush2.msra.mxu0 0.0
    %2755 = vmatprep.subr.mxu0 0.0
    %2756 = vmatpush2.msra.mxu0 0.0
    %2757 = vmatprep.subr.mxu0 0.0
    %2758 = vmatpush2.msra.mxu0 0.0
    %2759 = vmatprep.subr.mxu0 0.0
    %2760 = vmatpush2.msra.mxu0 0.0
    %2761 = vmatprep.subr.mxu0 0.0
    %2762 = vmatpush2.msra.mxu0 0.0
    %2763 = vmatprep.subr.mxu0 0.0
    %2764 = vmatpush2.msra.mxu0 0.0
    %2765 = vmatprep.subr.mxu0 0.0
    %2766 = vmatpush2.msra.mxu0 0.0
    %2767 = vmatprep.subr.mxu0 0.0
    %2768 = vmatpush2.msra.mxu0 0.0
    %2769 = vmatprep.subr.mxu0 0.0
    %2770 = vmatpush2.msra.mxu0 0.0
    %2771 = vmatprep.subr.mxu0 0.0
    %2772 = vmatpush2.msra.mxu0 0.0
    %2773 = vmatprep.subr.mxu0 0.0
    %2774 = vmatpush2.msra.mxu0 0.0
    %2775 = vmatprep.subr.mxu0 0.0
    %2776 = vmatpush2.msra.mxu0 0.0
    %2777 = vmatprep.subr.mxu0 0.0
    %2778 = vmatpush2.msra.mxu0 0.0
    %2779 = vmatprep.subr.mxu0 0.0
    %2780 = vmatpush2.msra.mxu0 0.0
    %2781 = vmatprep.subr.mxu0 0.0
    %2782 = vmatpush2.msra.mxu0 0.0
    %2783 = vmatprep.subr.mxu0 0.0
    %2784 = vmatpush2.msra.mxu0 0.0
    %2785 = vmatprep.mubr.f32.mxu0 0.0
    %v2786 = vand.u32 %v2279, 4294901760
    %2787 = vmatmul.mubr.f32.gmra.mxu0 %v2786
    %v2788 = vpop.f32.mrf.mxu0
    %v2789 = vadd.f32 %v2712, %v2788
    %v2790 = vpop.f32.mrf.mxu0
    %2791 = vdwg.mxu0
    %2792 = vst.msk [vmem:[#allocation10] sm:$0x1] %vm72, %v2789
    // Predicated region
    $region78: #{forward.1} parent=1 // pred_check
      _
    $region79: #{forward.1} parent=1 // pred_check_branch
      %2794 = sbr.rel (0) target = $region81
    $region80: #{forward.1} parent=1 // pred_region
      %s2796 = ssub.s32 16, 16
      %2797 = vsyncadd [#allocation8], %s2796
      %s2799 = sshll.u32 [#allocation9], 4
      %s2800 = int_to_ptr.vmem [resolvable:$true] %s2799
      %2802 = dma.vmem_to_hbm [thread:$0]  %s2800, 16, %s6, [#allocation8]
    $region81: #{forward.1} parent=1 // pred_fallthru
      _
    // Predicated region
    $region82: #{forward.1} parent=1 // pred_check
      _
    $region83: #{forward.1} parent=1 // pred_check_branch
      %2804 = sbr.rel (0) target = $region85
    $region84: #{forward.1} parent=1 // pred_region
      %s2806 = ssub.s32 16, 16
      %2807 = vsyncadd [#allocation11], %s2806
      %s2809 = sshll.u32 [#allocation10], 4
      %s2810 = int_to_ptr.vmem [resolvable:$true] %s2809
      %2812 = dma.vmem_to_hbm [thread:$0]  %s2810, 16, %s7, [#allocation11]
    $region85: #{forward.1} parent=1 // pred_fallthru
      _
    // Predicated region
    $region86: #{forward.1} parent=1 // pred_check
      _
    $region87: #{forward.1} parent=1 // pred_check_branch
      %2814 = sbr.rel (0) target = $region89
    $region88: #{forward.1} parent=1 // pred_region
      %2815 = dma.done [#allocation8], 16
    $region89: #{forward.1} parent=1 // pred_fallthru
      _
    // Predicated region
    $region90: #{forward.1} parent=1 // pred_check
      _
    $region91: #{forward.1} parent=1 // pred_check_branch
      %2817 = sbr.rel (0) target = $region93
    $region92: #{forward.1} parent=1 // pred_region
      %2818 = dma.done [#allocation11], 16
    $region93: #{forward.1} parent=1 // pred_fallthru
      _
    %2819 = vsyncpa [#allocation7], 1
    %2820 = vsyncpa [#allocation8], 1
    %2821 = vsyncpa [#allocation11], 1
  %2822 = vsyncmov [#allocation5]
  %s2823 = vpop.sfrf %2822
  %p2824 = scmp.eq.s32.totalorder %s2823, 0
  %p2825 = pneg %p2824
  %2827 = shalt.err (%p2825)
  %s2828 = scalar_lea.sflag [#allocation5], 1
  %2829 = vsyncmov %s2828
  %s2830 = vpop.sfrf %2829
  %p2831 = scmp.eq.s32.totalorder %s2830, 0
  %p2832 = pneg %p2831
  %2834 = shalt.err (%p2832)
  %s2835 = scalar_lea.sflag [#allocation5], 2
  %2836 = vsyncmov %s2835
  %s2837 = vpop.sfrf %2836
  %p2838 = scmp.eq.s32.totalorder %s2837, 0
  %p2839 = pneg %p2838
  %2841 = shalt.err (%p2839)
  %s2842 = scalar_lea.sflag [#allocation5], 3
  %2843 = vsyncmov %s2842
  %s2844 = vpop.sfrf %2843
  %p2845 = scmp.eq.s32.totalorder %s2844, 0
  %p2846 = pneg %p2845
  %2848 = shalt.err (%p2846)

</llo_original>
